<compile_context>
chip_gen: v7x
topology: tpu7x:2x2x1
jax: 0.10.0
libtpu: 0.0.40
codegen_flags: <defaults>
</compile_context>

<pallas_src>
import functools
import math

import jax
import jax.numpy as jnp
import numpy as np
from jax.experimental import pallas as pl
from jax.experimental.pallas import tpu as pltpu

EPS = 1e-5


def _layernorm(v, gamma, beta):
    # v: (M, E) f32; gamma/beta: (1, E) f32
    mu = jnp.mean(v, axis=-1, keepdims=True)
    var = jnp.mean((v - mu) ** 2, axis=-1, keepdims=True)
    return (v - mu) * jax.lax.rsqrt(var + EPS) * gamma + beta


def encoder_layer_kernel(
    x_ref,                 # (bt*S, E) f32, rows are batch-major (b, s)
    wqkv_ref,              # (E, 3E)  bf16, columns [q|k|v]; 1/sqrt(D) folded into q part
    wo_ref,                # (E, E)   bf16 (out_proj_weight.T)
    w1_ref,                # (E, 4E)  bf16 (linear1_weight.T)
    w2_ref,                # (4E, E)  bf16 (linear2_weight.T)
    vecs_ref,              # (1, 13E) f32, packed [bqkv|bo|b1|b2|g1|be1|g2|be2]
    o_ref,                 # (bt*S, E) f32
    ctx_ref,               # (bt*S, E) f32 VMEM scratch (head-merge staging buffer)
    *,
    seq_len,
    num_heads,
):
    f32, bf16 = jnp.float32, jnp.bfloat16
    M, E = x_ref.shape
    S = seq_len
    H = num_heads
    D = E // H
    Bt = M // S

    x = x_ref[...]                                 # (M, E) f32
    wqkv = wqkv_ref[...]
    wo = wo_ref[...]
    w1 = w1_ref[...]
    w2 = w2_ref[...]

    # Packed small params: static lane slices of one grid-constant operand.
    bqkv = vecs_ref[:, 0:3 * E]
    bo = vecs_ref[:, 3 * E:4 * E]
    b1 = vecs_ref[:, 4 * E:8 * E]
    b2 = vecs_ref[:, 8 * E:9 * E]
    g1 = vecs_ref[:, 9 * E:10 * E]
    be1 = vecs_ref[:, 10 * E:11 * E]
    g2 = vecs_ref[:, 11 * E:12 * E]
    be2 = vecs_ref[:, 12 * E:13 * E]

    def split_heads(t):
        # (M, E) -> (H*Bt, S, D): static D-lane slices stacked on a leading untiled
        # axis, then an 8-aligned sublane split of M into (Bt, S) (identity for Bt=1).
        # The attention matmuls below stay single, fully batched dot_generals.
        hmd = jnp.stack([t[:, h * D:(h + 1) * D] for h in range(H)], axis=0)  # (H, M, D)
        return hmd.reshape(H * Bt, S, D)

    # ---- self-attention block: x + out_proj(MHA(norm1(x))) ----
    h1 = _layernorm(x, g1, be1)                                             # (M, E) f32
    # Fused QKV projection: one (M, E) x (E, 3E) MXU matmul (bf16 operands, f32 acc).
    qkv = jnp.dot(h1.astype(bf16), wqkv, preferred_element_type=f32) + bqkv  # (M, 3E)

    # NOTE: Q/K/V are re-rounded to bf16 before the score / context matmuls; this
    # double rounding (plus bf16 weights) is an intentional inference-precision choice.
    qh = split_heads(qkv[:, 0:E]).astype(bf16)       # scale already folded into wqkv/bqkv
    kh = split_heads(qkv[:, E:2 * E]).astype(bf16)
    vh = split_heads(qkv[:, 2 * E:3 * E]).astype(bf16)

    s = jnp.einsum("bqd,bkd->bqk", qh, kh, preferred_element_type=f32)      # (H*Bt, S, S)
    s = s - jnp.max(s, axis=-1, keepdims=True)
    p = jnp.exp(s)
    # approx reciprocal runs on the EUP slot; ~1e-3 rel error vs exact softmax is an
    # accepted inference tradeoff (use approx=False for tighter parity with PyTorch).
    p = p * pl.reciprocal(jnp.sum(p, axis=-1, keepdims=True), approx=True)
    ctx = jnp.einsum("bqk,bkd->bqd", p.astype(bf16), vh,
                     preferred_element_type=f32)                            # (H*Bt, S, D)

    # Head merge: D-lane stores into a small VMEM scratch (masked vst on tiny strips),
    # so the out-projection is a single (M, E) x (E, E) matmul and the head reduction
    # happens for free inside the MXU K-contraction.
    ctx_hmd = ctx.reshape(H, M, D)
    for h in range(H):
        ctx_ref[:, h * D:(h + 1) * D] = ctx_hmd[h]
    attn = jnp.dot(ctx_ref[...].astype(bf16), wo, preferred_element_type=f32) + bo
    x = x + attn                                                 # dropout1 = identity

    # ---- feed-forward block: x + W2 relu(W1 norm2(x)) ----
    h2 = _layernorm(x, g2, be2)
    ff = jnp.dot(h2.astype(bf16), w1, preferred_element_type=f32) + b1      # (M, 4E)
    ff = jnp.maximum(ff, 0.0)                                    # dropout  = identity
    ff = jnp.dot(ff.astype(bf16), w2, preferred_element_type=f32) + b2      # (M, E)
    x = x + ff                                                   # dropout2 = identity

    o_ref[...] = x.astype(o_ref.dtype)


def prepare_kernel_params(p, *, num_heads):
    """Rearrange PyTorch-layout parameters into kernel-friendly layouts (host side)."""
    E = p["out_proj_weight"].shape[0]
    H = num_heads
    D = E // H
    scale = 1.0 / math.sqrt(D)
    f32, bf16 = jnp.float32, jnp.bfloat16

    # Fused QKV: qkv = x @ Wqkv + bqkv, with the 1/sqrt(D) scale folded into the Q part.
    wqkv = jnp.transpose(p["in_proj_weight"]).astype(f32)                  # (E, 3E)
    col_scale = jnp.concatenate([jnp.full((E,), scale, f32), jnp.ones((2 * E,), f32)])
    wqkv = wqkv * col_scale[None, :]
    bqkv = p["in_proj_bias"].astype(f32) * col_scale

    # All tiny bias / layernorm vectors packed into one (1, 13E) operand.
    vecs = jnp.concatenate([
        bqkv,                                  # (3E,)
        p["out_proj_bias"].astype(f32),        # (E,)
        p["linear1_bias"].astype(f32),         # (4E,)
        p["linear2_bias"].astype(f32),         # (E,)
        p["norm1_weight"].astype(f32),         # (E,)
        p["norm1_bias"].astype(f32),           # (E,)
        p["norm2_weight"].astype(f32),         # (E,)
        p["norm2_bias"].astype(f32),           # (E,)
    ]).reshape(1, 13 * E)

    return {
        "wqkv": wqkv.astype(bf16),                                     # (E, 3E)
        "wo": jnp.transpose(p["out_proj_weight"]).astype(bf16),        # (E, E)
        "w1": jnp.transpose(p["linear1_weight"]).astype(bf16),         # (E, 4E)
        "w2": jnp.transpose(p["linear2_weight"]).astype(bf16),         # (4E, E)
        "vecs": vecs,                                                  # (1, 13E) f32
    }


def _default_batch_tile(B, S, target_rows=512):
    # Prefer >= 2 grid steps (v7x has 2 TensorCores; also lets the pipeline overlap the
    # next tile's activation DMA) while keeping bt*S large enough to feed the MXU M dim.
    if S % 8 != 0:
        return B  # single full block (in-kernel head reshape needs 8-aligned S otherwise)
    divisors = [d for d in range(1, B + 1) if B % d == 0]
    candidates = [d for d in divisors if d < B] or divisors
    fitting = [d for d in candidates if d * S <= target_rows] or candidates
    return max(fitting)


def _vmem_limit_bytes(bt, S, E, H, single_buffer_weights):
    M = bt * S
    act_io = 2 * 2 * M * E * 4                            # double-buffered in + out blocks
    wbuf = 1 if single_buffer_weights else 2
    weights = wbuf * (12 * E * E * 2 + 16 * E * 4)        # bf16 weights + packed f32 vecs
    inter = M * 18 * E * 4 + H * bt * S * S * 2 * 4       # f32 intermediates (rough)
    est = act_io + weights + 2 * inter + (2 << 20)
    # 32 MiB floor raises v5e's 16 MiB default scoped limit; 48 MiB cap stays well under
    # v7x's 64 MiB physical VMEM.
    return int(min(max(est, 32 << 20), 48 << 20))


def temporal_encoder_layer(src, params, *, num_heads, batch_tile=None,
                           src_mask=None, src_key_padding_mask=None,
                           single_buffer_weights=True):
    """src: (S, B, E) float32 in the PyTorch nn.MultiheadAttention layout."""
    if src_mask is not None or src_key_padding_mask is not None:
        # TODO(synk): attn_mask / key_padding_mask support (always None in this module).
        raise NotImplementedError("attn_mask / key_padding_mask are not supported")

    S, B, E = src.shape
    if E % num_heads != 0:
        raise ValueError("embed_dim must be divisible by num_heads")

    bt = _default_batch_tile(B, S) if batch_tile is None else batch_tile
    if B % bt != 0:
        raise ValueError("batch_tile must divide the batch size")
    if bt > 1 and bt != B and S % 8 != 0:
        raise ValueError("seq_len must be a multiple of 8 when 1 < batch_tile < B")
    if bt != B and (bt * S) % 8 != 0:
        raise ValueError("batch_tile * seq_len must be a multiple of 8 (or batch_tile == B)")

    kp = prepare_kernel_params(params, num_heads=num_heads)

    # One cheap wrapper-side transpose to a batch-major (B*S, E) layout: the kernel then
    # reads/writes dense row blocks (the DMA handles the batch stride; no per-batch
    # sublane slicing inside the kernel).
    x2 = jnp.transpose(src, (1, 0, 2)).reshape(B * S, E)

    M_blk = bt * S
    grid = (B // bt,)
    kern = functools.partial(encoder_layer_kernel, seq_len=S, num_heads=num_heads)
    vmem_limit = _vmem_limit_bytes(bt, S, E, num_heads, single_buffer_weights)
    weight_names = ["wqkv", "wo", "w1", "w2", "vecs"]
    operands = (x2,) + tuple(kp[n] for n in weight_names)

    def run(single_buffer):
        def const_spec(arr):
            kwargs = {}
            if single_buffer:
                # Grid-constant weights: one VMEM buffer instead of the default two.
                kwargs["pipeline_mode"] = pl.Buffered(1)
            return pl.BlockSpec(arr.shape, lambda i: (0, 0), **kwargs)

        in_specs = [pl.BlockSpec((M_blk, E), lambda i: (i, 0))]
        in_specs += [const_spec(kp[n]) for n in weight_names]
        out = pl.pallas_call(
            kern,
            out_shape=jax.ShapeDtypeStruct((B * S, E), src.dtype),
            grid=grid,
            in_specs=in_specs,
            out_specs=pl.BlockSpec((M_blk, E), lambda i: (i, 0)),
            scratch_shapes=[pltpu.VMEM((M_blk, E), jnp.float32)],
            compiler_params=pltpu.CompilerParams(
                dimension_semantics=("parallel",),
                vmem_limit_bytes=vmem_limit,
            ),
        )(*operands)
        return jax.block_until_ready(out)

    if single_buffer_weights:
        try:
            out2 = run(True)
        except Exception:
            # Older Pallas builds may reject pl.Buffered(1); fall back to the default
            # double-buffering of the (tiny, grid-constant) weight blocks.
            out2 = run(False)
    else:
        out2 = run(False)

    return out2.reshape(B, S, E).transpose(1, 0, 2)


# ---------------- pure-JAX reference (f32, for correctness check) ----------------
def reference(src, p, *, num_heads):
    S, B, E = src.shape
    H = num_heads
    D = E // H
    x = jnp.transpose(src, (1, 0, 2))                                # (B, S, E)

    def ln(v, g, b):
        mu = jnp.mean(v, axis=-1, keepdims=True)
        var = jnp.mean((v - mu) ** 2, axis=-1, keepdims=True)
        return (v - mu) / jnp.sqrt(var + EPS) * g + b

    h = ln(x, p["norm1_weight"], p["norm1_bias"])
    qkv = jnp.einsum("bse,fe->bsf", h, p["in_proj_weight"]) + p["in_proj_bias"]
    q, k, v = jnp.split(qkv, 3, axis=-1)
    q = q.reshape(B, S, H, D).transpose(0, 2, 1, 3) / math.sqrt(D)
    k = k.reshape(B, S, H, D).transpose(0, 2, 1, 3)
    v = v.reshape(B, S, H, D).transpose(0, 2, 1, 3)
    s = jnp.einsum("bhqd,bhkd->bhqk", q, k)
    a = jax.nn.softmax(s, axis=-1)
    o = jnp.einsum("bhqk,bhkd->bhqd", a, v).transpose(0, 2, 1, 3).reshape(B, S, E)
    o = jnp.einsum("bse,fe->bsf", o, p["out_proj_weight"]) + p["out_proj_bias"]
    x = x + o
    h2 = ln(x, p["norm2_weight"], p["norm2_bias"])
    ff = jnp.maximum(jnp.einsum("bse,fe->bsf", h2, p["linear1_weight"]) + p["linear1_bias"], 0.0)
    ff = jnp.einsum("bsf,ef->bse", ff, p["linear2_weight"]) + p["linear2_bias"]
    x = x + ff
    return jnp.transpose(x, (1, 0, 2))                               # back to (S, B, E)


def make_params(key, embed_dim):
    E = embed_dim
    ks = jax.random.split(key, 8)
    sc = 0.1
    n = lambda k, shape: sc * jax.random.normal(k, shape, jnp.float32)
    return {
        "in_proj_weight": n(ks[0], (3 * E, E)),
        "in_proj_bias": n(ks[1], (3 * E,)),
        "out_proj_weight": n(ks[2], (E, E)),
        "out_proj_bias": n(ks[3], (E,)),
        "linear1_weight": n(ks[4], (4 * E, E)),
        "linear1_bias": n(ks[5], (4 * E,)),
        "linear2_weight": n(ks[6], (E, 4 * E)),
        "linear2_bias": n(ks[7], (E,)),
        "norm1_weight": jnp.ones((E,), jnp.float32),
        "norm1_bias": jnp.zeros((E,), jnp.float32),
        "norm2_weight": jnp.ones((E,), jnp.float32),
        "norm2_bias": jnp.zeros((E,), jnp.float32),
    }


if __name__ == "__main__":
    S, B, E, H = 8, 2, 32, 8  # seq=8, batch=2, embed_dim=32, num_heads=8

    key = jax.random.PRNGKey(0)
    kx, kp = jax.random.split(key)
    src = jax.random.normal(kx, (S, B, E), jnp.float32)
    params = make_params(kp, E)

    # Default batch_tile -> 1, i.e. grid=(2,) "parallel" steps (>= 2 for v7x megacore).
    out = jax.block_until_ready(temporal_encoder_layer(src, params, num_heads=H))
    ref = jax.block_until_ready(reference(src, params, num_heads=H))

    assert out.shape == (S, B, E)
    # bf16 matmul operands (f32 accumulation) + approx softmax reciprocal -> looser
    # tolerance than the pure-f32 reference.
    np.testing.assert_allclose(np.asarray(out), np.asarray(ref), rtol=2e-2, atol=2e-2)

    print("KERNEL_OK")
</pallas_src>

<mosaic_0001>
module attributes {stable_mosaic.version = 11 : i64} {
  func.func @encoder_layer_kernel(%arg0: i32, %arg1: memref<8x32xf32, #tpu.memory_space<vmem>>, %arg2: memref<32x96xbf16, #tpu.memory_space<vmem>>, %arg3: memref<32x32xbf16, #tpu.memory_space<vmem>>, %arg4: memref<32x128xbf16, #tpu.memory_space<vmem>>, %arg5: memref<128x32xbf16, #tpu.memory_space<vmem>>, %arg6: memref<1x416xf32, #tpu.memory_space<vmem>>, %arg7: memref<8x32xf32, #tpu.memory_space<vmem>>, %arg8: memref<8x32xf32, #tpu.memory_space<vmem>>) attributes {dimension_semantics = [#tpu.dimension_semantics<parallel>], iteration_bounds = array<i64: 2>, scalar_prefetch = 0 : i64, scratch_operands = 1 : i64, tpu.core_type = #tpu.core_type<tc>, window_params = [{transform_indices = @transform_0, window_bounds = array<i64: 8, 32>}, {pipeline_mode = #tpu.pipeline_mode<synchronous>, transform_indices = @transform_1, window_bounds = array<i64: 32, 96>}, {pipeline_mode = #tpu.pipeline_mode<synchronous>, transform_indices = @transform_2, window_bounds = array<i64: 32, 32>}, {pipeline_mode = #tpu.pipeline_mode<synchronous>, transform_indices = @transform_3, window_bounds = array<i64: 32, 128>}, {pipeline_mode = #tpu.pipeline_mode<synchronous>, transform_indices = @transform_4, window_bounds = array<i64: 128, 32>}, {pipeline_mode = #tpu.pipeline_mode<synchronous>, transform_indices = @transform_5, window_bounds = array<i64: 1, 416>}, {transform_indices = @transform_6, window_bounds = array<i64: 8, 32>}]} {
    %c0 = arith.constant 0 : index
    %c0_0 = arith.constant 0 : index
    %0 = vector.load %arg1[%c0, %c0_0] : memref<8x32xf32, #tpu.memory_space<vmem>>, vector<8x32xf32>
    %c0_1 = arith.constant 0 : index
    %c0_2 = arith.constant 0 : index
    %1 = vector.load %arg2[%c0_1, %c0_2] : memref<32x96xbf16, #tpu.memory_space<vmem>>, vector<32x96xbf16>
    %c0_3 = arith.constant 0 : index
    %c0_4 = arith.constant 0 : index
    %2 = vector.load %arg3[%c0_3, %c0_4] : memref<32x32xbf16, #tpu.memory_space<vmem>>, vector<32x32xbf16>
    %c0_5 = arith.constant 0 : index
    %c0_6 = arith.constant 0 : index
    %3 = vector.load %arg4[%c0_5, %c0_6] : memref<32x128xbf16, #tpu.memory_space<vmem>>, vector<32x128xbf16>
    %c0_7 = arith.constant 0 : index
    %c0_8 = arith.constant 0 : index
    %4 = vector.load %arg5[%c0_7, %c0_8] : memref<128x32xbf16, #tpu.memory_space<vmem>>, vector<128x32xbf16>
    %c0_9 = arith.constant 0 : index
    %c0_10 = arith.constant 0 : index
    %5 = vector.load %arg6[%c0_9, %c0_10] : memref<1x416xf32, #tpu.memory_space<vmem>>, vector<1x96xf32>
    %c0_11 = arith.constant 0 : index
    %c96 = arith.constant 96 : index
    %6 = vector.load %arg6[%c0_11, %c96] : memref<1x416xf32, #tpu.memory_space<vmem>>, vector<1x32xf32>
    %c0_12 = arith.constant 0 : index
    %c128 = arith.constant 128 : index
    %7 = vector.load %arg6[%c0_12, %c128] : memref<1x416xf32, #tpu.memory_space<vmem>>, vector<1x128xf32>
    %c0_13 = arith.constant 0 : index
    %c256 = arith.constant 256 : index
    %8 = vector.load %arg6[%c0_13, %c256] : memref<1x416xf32, #tpu.memory_space<vmem>>, vector<1x32xf32>
    %c0_14 = arith.constant 0 : index
    %c288 = arith.constant 288 : index
    %9 = vector.load %arg6[%c0_14, %c288] : memref<1x416xf32, #tpu.memory_space<vmem>>, vector<1x32xf32>
    %c0_15 = arith.constant 0 : index
    %c320 = arith.constant 320 : index
    %10 = vector.load %arg6[%c0_15, %c320] : memref<1x416xf32, #tpu.memory_space<vmem>>, vector<1x32xf32>
    %c0_16 = arith.constant 0 : index
    %c352 = arith.constant 352 : index
    %11 = vector.load %arg6[%c0_16, %c352] : memref<1x416xf32, #tpu.memory_space<vmem>>, vector<1x32xf32>
    %c0_17 = arith.constant 0 : index
    %c384 = arith.constant 384 : index
    %12 = vector.load %arg6[%c0_17, %c384] : memref<1x416xf32, #tpu.memory_space<vmem>>, vector<1x32xf32>
    %cst = arith.constant dense<0.000000e+00> : vector<8xf32>
    %13 = vector.multi_reduction <add>, %0, %cst [1] : vector<8x32xf32> to vector<8xf32>
    %14 = vector.shape_cast %13 : vector<8xf32> to vector<8x1xf32>
    %cst_18 = arith.constant 3.200000e+01 : f32
    %15 = vector.broadcast %cst_18 : f32 to vector<8x1xf32>
    %16 = arith.divf %14, %15 : vector<8x1xf32>
    %17 = vector.broadcast %16 : vector<8x1xf32> to vector<8x32xf32>
    %18 = arith.subf %0, %17 : vector<8x32xf32>
    %19 = arith.mulf %18, %18 : vector<8x32xf32>
    %cst_19 = arith.constant dense<0.000000e+00> : vector<8xf32>
    %20 = vector.multi_reduction <add>, %19, %cst_19 [1] : vector<8x32xf32> to vector<8xf32>
    %21 = vector.shape_cast %20 : vector<8xf32> to vector<8x1xf32>
    %cst_20 = arith.constant 3.200000e+01 : f32
    %22 = vector.broadcast %cst_20 : f32 to vector<8x1xf32>
    %23 = arith.divf %21, %22 : vector<8x1xf32>
    %24 = vector.broadcast %16 : vector<8x1xf32> to vector<8x32xf32>
    %25 = arith.subf %0, %24 : vector<8x32xf32>
    %cst_21 = arith.constant 9.99999974E-6 : f32
    %26 = vector.broadcast %cst_21 : f32 to vector<8x1xf32>
    %27 = arith.addf %23, %26 : vector<8x1xf32>
    %28 = math.rsqrt %27 : vector<8x1xf32>
    %29 = vector.broadcast %28 : vector<8x1xf32> to vector<8x32xf32>
    %30 = arith.mulf %25, %29 : vector<8x32xf32>
    %31 = vector.broadcast %9 : vector<1x32xf32> to vector<8x32xf32>
    %32 = arith.mulf %30, %31 : vector<8x32xf32>
    %33 = vector.broadcast %10 : vector<1x32xf32> to vector<8x32xf32>
    %34 = arith.addf %32, %33 : vector<8x32xf32>
    %35 = arith.truncf %34 : vector<8x32xf32> to vector<8x32xbf16>
    %cst_22 = arith.constant dense<0.000000e+00> : vector<8x96xf32>
    %36 = tpu.matmul %35, %1, %cst_22 {dimension_numbers = #tpu.dot_dimension_numbers<[1], [0], [0], [1], [0, 0, 1, 1], [], []>} : vector<8x32xbf16>, vector<32x96xbf16>, vector<8x96xf32> -> vector<8x96xf32>
    %37 = vector.broadcast %5 : vector<1x96xf32> to vector<8x96xf32>
    %38 = arith.addf %36, %37 : vector<8x96xf32>
    %39 = vector.extract_strided_slice %38 {offsets = [0, 0], sizes = [8, 32], strides = [1, 1]} : vector<8x96xf32> to vector<8x32xf32>
    %40 = vector.extract_strided_slice %39 {offsets = [0, 0], sizes = [8, 4], strides = [1, 1]} : vector<8x32xf32> to vector<8x4xf32>
    %41 = vector.extract_strided_slice %39 {offsets = [0, 4], sizes = [8, 4], strides = [1, 1]} : vector<8x32xf32> to vector<8x4xf32>
    %42 = vector.extract_strided_slice %39 {offsets = [0, 8], sizes = [8, 4], strides = [1, 1]} : vector<8x32xf32> to vector<8x4xf32>
    %43 = vector.extract_strided_slice %39 {offsets = [0, 12], sizes = [8, 4], strides = [1, 1]} : vector<8x32xf32> to vector<8x4xf32>
    %44 = vector.extract_strided_slice %39 {offsets = [0, 16], sizes = [8, 4], strides = [1, 1]} : vector<8x32xf32> to vector<8x4xf32>
    %45 = vector.extract_strided_slice %39 {offsets = [0, 20], sizes = [8, 4], strides = [1, 1]} : vector<8x32xf32> to vector<8x4xf32>
    %46 = vector.extract_strided_slice %39 {offsets = [0, 24], sizes = [8, 4], strides = [1, 1]} : vector<8x32xf32> to vector<8x4xf32>
    %47 = vector.extract_strided_slice %39 {offsets = [0, 28], sizes = [8, 4], strides = [1, 1]} : vector<8x32xf32> to vector<8x4xf32>
    %48 = vector.shape_cast %40 : vector<8x4xf32> to vector<1x8x4xf32>
    %49 = vector.shape_cast %41 : vector<8x4xf32> to vector<1x8x4xf32>
    %50 = vector.shape_cast %42 : vector<8x4xf32> to vector<1x8x4xf32>
    %51 = vector.shape_cast %43 : vector<8x4xf32> to vector<1x8x4xf32>
    %52 = vector.shape_cast %44 : vector<8x4xf32> to vector<1x8x4xf32>
    %53 = vector.shape_cast %45 : vector<8x4xf32> to vector<1x8x4xf32>
    %54 = vector.shape_cast %46 : vector<8x4xf32> to vector<1x8x4xf32>
    %55 = vector.shape_cast %47 : vector<8x4xf32> to vector<1x8x4xf32>
    %56 = tpu.concatenate %48, %49, %50, %51, %52, %53, %54, %55 in 0 : vector<1x8x4xf32>, vector<1x8x4xf32>, vector<1x8x4xf32>, vector<1x8x4xf32>, vector<1x8x4xf32>, vector<1x8x4xf32>, vector<1x8x4xf32>, vector<1x8x4xf32> -> vector<8x8x4xf32>
    %57 = arith.truncf %56 : vector<8x8x4xf32> to vector<8x8x4xbf16>
    %58 = vector.extract_strided_slice %38 {offsets = [0, 32], sizes = [8, 32], strides = [1, 1]} : vector<8x96xf32> to vector<8x32xf32>
    %59 = vector.extract_strided_slice %58 {offsets = [0, 0], sizes = [8, 4], strides = [1, 1]} : vector<8x32xf32> to vector<8x4xf32>
    %60 = vector.extract_strided_slice %58 {offsets = [0, 4], sizes = [8, 4], strides = [1, 1]} : vector<8x32xf32> to vector<8x4xf32>
    %61 = vector.extract_strided_slice %58 {offsets = [0, 8], sizes = [8, 4], strides = [1, 1]} : vector<8x32xf32> to vector<8x4xf32>
    %62 = vector.extract_strided_slice %58 {offsets = [0, 12], sizes = [8, 4], strides = [1, 1]} : vector<8x32xf32> to vector<8x4xf32>
    %63 = vector.extract_strided_slice %58 {offsets = [0, 16], sizes = [8, 4], strides = [1, 1]} : vector<8x32xf32> to vector<8x4xf32>
    %64 = vector.extract_strided_slice %58 {offsets = [0, 20], sizes = [8, 4], strides = [1, 1]} : vector<8x32xf32> to vector<8x4xf32>
    %65 = vector.extract_strided_slice %58 {offsets = [0, 24], sizes = [8, 4], strides = [1, 1]} : vector<8x32xf32> to vector<8x4xf32>
    %66 = vector.extract_strided_slice %58 {offsets = [0, 28], sizes = [8, 4], strides = [1, 1]} : vector<8x32xf32> to vector<8x4xf32>
    %67 = vector.shape_cast %59 : vector<8x4xf32> to vector<1x8x4xf32>
    %68 = vector.shape_cast %60 : vector<8x4xf32> to vector<1x8x4xf32>
    %69 = vector.shape_cast %61 : vector<8x4xf32> to vector<1x8x4xf32>
    %70 = vector.shape_cast %62 : vector<8x4xf32> to vector<1x8x4xf32>
    %71 = vector.shape_cast %63 : vector<8x4xf32> to vector<1x8x4xf32>
    %72 = vector.shape_cast %64 : vector<8x4xf32> to vector<1x8x4xf32>
    %73 = vector.shape_cast %65 : vector<8x4xf32> to vector<1x8x4xf32>
    %74 = vector.shape_cast %66 : vector<8x4xf32> to vector<1x8x4xf32>
    %75 = tpu.concatenate %67, %68, %69, %70, %71, %72, %73, %74 in 0 : vector<1x8x4xf32>, vector<1x8x4xf32>, vector<1x8x4xf32>, vector<1x8x4xf32>, vector<1x8x4xf32>, vector<1x8x4xf32>, vector<1x8x4xf32>, vector<1x8x4xf32> -> vector<8x8x4xf32>
    %76 = arith.truncf %75 : vector<8x8x4xf32> to vector<8x8x4xbf16>
    %77 = vector.extract_strided_slice %38 {offsets = [0, 64], sizes = [8, 32], strides = [1, 1]} : vector<8x96xf32> to vector<8x32xf32>
    %78 = vector.extract_strided_slice %77 {offsets = [0, 0], sizes = [8, 4], strides = [1, 1]} : vector<8x32xf32> to vector<8x4xf32>
    %79 = vector.extract_strided_slice %77 {offsets = [0, 4], sizes = [8, 4], strides = [1, 1]} : vector<8x32xf32> to vector<8x4xf32>
    %80 = vector.extract_strided_slice %77 {offsets = [0, 8], sizes = [8, 4], strides = [1, 1]} : vector<8x32xf32> to vector<8x4xf32>
    %81 = vector.extract_strided_slice %77 {offsets = [0, 12], sizes = [8, 4], strides = [1, 1]} : vector<8x32xf32> to vector<8x4xf32>
    %82 = vector.extract_strided_slice %77 {offsets = [0, 16], sizes = [8, 4], strides = [1, 1]} : vector<8x32xf32> to vector<8x4xf32>
    %83 = vector.extract_strided_slice %77 {offsets = [0, 20], sizes = [8, 4], strides = [1, 1]} : vector<8x32xf32> to vector<8x4xf32>
    %84 = vector.extract_strided_slice %77 {offsets = [0, 24], sizes = [8, 4], strides = [1, 1]} : vector<8x32xf32> to vector<8x4xf32>
    %85 = vector.extract_strided_slice %77 {offsets = [0, 28], sizes = [8, 4], strides = [1, 1]} : vector<8x32xf32> to vector<8x4xf32>
    %86 = vector.shape_cast %78 : vector<8x4xf32> to vector<1x8x4xf32>
    %87 = vector.shape_cast %79 : vector<8x4xf32> to vector<1x8x4xf32>
    %88 = vector.shape_cast %80 : vector<8x4xf32> to vector<1x8x4xf32>
    %89 = vector.shape_cast %81 : vector<8x4xf32> to vector<1x8x4xf32>
    %90 = vector.shape_cast %82 : vector<8x4xf32> to vector<1x8x4xf32>
    %91 = vector.shape_cast %83 : vector<8x4xf32> to vector<1x8x4xf32>
    %92 = vector.shape_cast %84 : vector<8x4xf32> to vector<1x8x4xf32>
    %93 = vector.shape_cast %85 : vector<8x4xf32> to vector<1x8x4xf32>
    %94 = tpu.concatenate %86, %87, %88, %89, %90, %91, %92, %93 in 0 : vector<1x8x4xf32>, vector<1x8x4xf32>, vector<1x8x4xf32>, vector<1x8x4xf32>, vector<1x8x4xf32>, vector<1x8x4xf32>, vector<1x8x4xf32>, vector<1x8x4xf32> -> vector<8x8x4xf32>
    %95 = arith.truncf %94 : vector<8x8x4xf32> to vector<8x8x4xbf16>
    "tpu.trace_start"() <{level = 10 : i32, message = "bqd,bkd->bqk"}> : () -> ()
    %cst_23 = arith.constant dense<0.000000e+00> : vector<8x8x8xf32>
    %96 = tpu.matmul %57, %76, %cst_23 {dimension_numbers = #tpu.dot_dimension_numbers<[2], [2], [1], [1], [0, 0, 0, 1, 1, 1], [0], [0]>} : vector<8x8x4xbf16>, vector<8x8x4xbf16>, vector<8x8x8xf32> -> vector<8x8x8xf32>
    "tpu.trace_stop"() : () -> ()
    %cst_24 = arith.constant dense<0xFF800000> : vector<8x8xf32>
    %97 = vector.multi_reduction <maximumf>, %96, %cst_24 [2] : vector<8x8x8xf32> to vector<8x8xf32>
    %98 = vector.shape_cast %97 : vector<8x8xf32> to vector<8x8x1xf32>
    %99 = vector.broadcast %98 : vector<8x8x1xf32> to vector<8x8x8xf32>
    %100 = arith.subf %96, %99 : vector<8x8x8xf32>
    %101 = math.exp %100 : vector<8x8x8xf32>
    %cst_25 = arith.constant dense<0.000000e+00> : vector<8x8xf32>
    %102 = vector.multi_reduction <add>, %101, %cst_25 [2] : vector<8x8x8xf32> to vector<8x8xf32>
    %103 = vector.shape_cast %102 : vector<8x8xf32> to vector<8x8x1xf32>
    %104 = tpu.reciprocal %103 {approx = true} : vector<8x8x1xf32> -> vector<8x8x1xf32>
    %105 = vector.broadcast %104 : vector<8x8x1xf32> to vector<8x8x8xf32>
    %106 = arith.mulf %101, %105 : vector<8x8x8xf32>
    %107 = arith.truncf %106 : vector<8x8x8xf32> to vector<8x8x8xbf16>
    "tpu.trace_start"() <{level = 10 : i32, message = "bqk,bkd->bqd"}> : () -> ()
    %cst_26 = arith.constant dense<0.000000e+00> : vector<8x8x4xf32>
    %108 = tpu.matmul %107, %95, %cst_26 {dimension_numbers = #tpu.dot_dimension_numbers<[2], [1], [1], [2], [0, 0, 0, 1, 1, 2], [0], [0]>} : vector<8x8x8xbf16>, vector<8x8x4xbf16>, vector<8x8x4xf32> -> vector<8x8x4xf32>
    "tpu.trace_stop"() : () -> ()
    %109 = vector.extract_strided_slice %108 {offsets = [0, 0, 0], sizes = [1, 8, 4], strides = [1, 1, 1]} : vector<8x8x4xf32> to vector<1x8x4xf32>
    %110 = vector.shape_cast %109 : vector<1x8x4xf32> to vector<8x4xf32>
    %c0_27 = arith.constant 0 : index
    %c0_28 = arith.constant 0 : index
    %111 = vector.load %arg8[%c0_27, %c0_28] : memref<8x32xf32, #tpu.memory_space<vmem>>, vector<8x4xf32>
    tpu.vector_store %arg8[%c0_27, %c0_28], %110 {strides = array<i32>} : memref<8x32xf32, #tpu.memory_space<vmem>>, vector<8x4xf32>,
    %112 = vector.extract_strided_slice %108 {offsets = [1, 0, 0], sizes = [1, 8, 4], strides = [1, 1, 1]} : vector<8x8x4xf32> to vector<1x8x4xf32>
    %113 = vector.shape_cast %112 : vector<1x8x4xf32> to vector<8x4xf32>
    %c0_29 = arith.constant 0 : index
    %c4 = arith.constant 4 : index
    %114 = vector.load %arg8[%c0_29, %c4] : memref<8x32xf32, #tpu.memory_space<vmem>>, vector<8x4xf32>
    tpu.vector_store %arg8[%c0_29, %c4], %113 {strides = array<i32>} : memref<8x32xf32, #tpu.memory_space<vmem>>, vector<8x4xf32>,
    %115 = vector.extract_strided_slice %108 {offsets = [2, 0, 0], sizes = [1, 8, 4], strides = [1, 1, 1]} : vector<8x8x4xf32> to vector<1x8x4xf32>
    %116 = vector.shape_cast %115 : vector<1x8x4xf32> to vector<8x4xf32>
    %c0_30 = arith.constant 0 : index
    %c8 = arith.constant 8 : index
    %117 = vector.load %arg8[%c0_30, %c8] : memref<8x32xf32, #tpu.memory_space<vmem>>, vector<8x4xf32>
    tpu.vector_store %arg8[%c0_30, %c8], %116 {strides = array<i32>} : memref<8x32xf32, #tpu.memory_space<vmem>>, vector<8x4xf32>,
    %118 = vector.extract_strided_slice %108 {offsets = [3, 0, 0], sizes = [1, 8, 4], strides = [1, 1, 1]} : vector<8x8x4xf32> to vector<1x8x4xf32>
    %119 = vector.shape_cast %118 : vector<1x8x4xf32> to vector<8x4xf32>
    %c0_31 = arith.constant 0 : index
    %c12 = arith.constant 12 : index
    %120 = vector.load %arg8[%c0_31, %c12] : memref<8x32xf32, #tpu.memory_space<vmem>>, vector<8x4xf32>
    tpu.vector_store %arg8[%c0_31, %c12], %119 {strides = array<i32>} : memref<8x32xf32, #tpu.memory_space<vmem>>, vector<8x4xf32>,
    %121 = vector.extract_strided_slice %108 {offsets = [4, 0, 0], sizes = [1, 8, 4], strides = [1, 1, 1]} : vector<8x8x4xf32> to vector<1x8x4xf32>
    %122 = vector.shape_cast %121 : vector<1x8x4xf32> to vector<8x4xf32>
    %c0_32 = arith.constant 0 : index
    %c16 = arith.constant 16 : index
    %123 = vector.load %arg8[%c0_32, %c16] : memref<8x32xf32, #tpu.memory_space<vmem>>, vector<8x4xf32>
    tpu.vector_store %arg8[%c0_32, %c16], %122 {strides = array<i32>} : memref<8x32xf32, #tpu.memory_space<vmem>>, vector<8x4xf32>,
    %124 = vector.extract_strided_slice %108 {offsets = [5, 0, 0], sizes = [1, 8, 4], strides = [1, 1, 1]} : vector<8x8x4xf32> to vector<1x8x4xf32>
    %125 = vector.shape_cast %124 : vector<1x8x4xf32> to vector<8x4xf32>
    %c0_33 = arith.constant 0 : index
    %c20 = arith.constant 20 : index
    %126 = vector.load %arg8[%c0_33, %c20] : memref<8x32xf32, #tpu.memory_space<vmem>>, vector<8x4xf32>
    tpu.vector_store %arg8[%c0_33, %c20], %125 {strides = array<i32>} : memref<8x32xf32, #tpu.memory_space<vmem>>, vector<8x4xf32>,
    %127 = vector.extract_strided_slice %108 {offsets = [6, 0, 0], sizes = [1, 8, 4], strides = [1, 1, 1]} : vector<8x8x4xf32> to vector<1x8x4xf32>
    %128 = vector.shape_cast %127 : vector<1x8x4xf32> to vector<8x4xf32>
    %c0_34 = arith.constant 0 : index
    %c24 = arith.constant 24 : index
    %129 = vector.load %arg8[%c0_34, %c24] : memref<8x32xf32, #tpu.memory_space<vmem>>, vector<8x4xf32>
    tpu.vector_store %arg8[%c0_34, %c24], %128 {strides = array<i32>} : memref<8x32xf32, #tpu.memory_space<vmem>>, vector<8x4xf32>,
    %130 = vector.extract_strided_slice %108 {offsets = [7, 0, 0], sizes = [1, 8, 4], strides = [1, 1, 1]} : vector<8x8x4xf32> to vector<1x8x4xf32>
    %131 = vector.shape_cast %130 : vector<1x8x4xf32> to vector<8x4xf32>
    %c0_35 = arith.constant 0 : index
    %c28 = arith.constant 28 : index
    %132 = vector.load %arg8[%c0_35, %c28] : memref<8x32xf32, #tpu.memory_space<vmem>>, vector<8x4xf32>
    tpu.vector_store %arg8[%c0_35, %c28], %131 {strides = array<i32>} : memref<8x32xf32, #tpu.memory_space<vmem>>, vector<8x4xf32>,
    %c0_36 = arith.constant 0 : index
    %c0_37 = arith.constant 0 : index
    %133 = vector.load %arg8[%c0_36, %c0_37] : memref<8x32xf32, #tpu.memory_space<vmem>>, vector<8x32xf32>
    %134 = arith.truncf %133 : vector<8x32xf32> to vector<8x32xbf16>
    %cst_38 = arith.constant dense<0.000000e+00> : vector<8x32xf32>
    %135 = tpu.matmul %134, %2, %cst_38 {dimension_numbers = #tpu.dot_dimension_numbers<[1], [0], [0], [1], [0, 0, 1, 1], [], []>} : vector<8x32xbf16>, vector<32x32xbf16>, vector<8x32xf32> -> vector<8x32xf32>
    %136 = vector.broadcast %6 : vector<1x32xf32> to vector<8x32xf32>
    %137 = arith.addf %135, %136 : vector<8x32xf32>
    %138 = arith.addf %0, %137 : vector<8x32xf32>
    %cst_39 = arith.constant dense<0.000000e+00> : vector<8xf32>
    %139 = vector.multi_reduction <add>, %138, %cst_39 [1] : vector<8x32xf32> to vector<8xf32>
    %140 = vector.shape_cast %139 : vector<8xf32> to vector<8x1xf32>
    %cst_40 = arith.constant 3.200000e+01 : f32
    %141 = vector.broadcast %cst_40 : f32 to vector<8x1xf32>
    %142 = arith.divf %140, %141 : vector<8x1xf32>
    %143 = vector.broadcast %142 : vector<8x1xf32> to vector<8x32xf32>
    %144 = arith.subf %138, %143 : vector<8x32xf32>
    %145 = arith.mulf %144, %144 : vector<8x32xf32>
    %cst_41 = arith.constant dense<0.000000e+00> : vector<8xf32>
    %146 = vector.multi_reduction <add>, %145, %cst_41 [1] : vector<8x32xf32> to vector<8xf32>
    %147 = vector.shape_cast %146 : vector<8xf32> to vector<8x1xf32>
    %cst_42 = arith.constant 3.200000e+01 : f32
    %148 = vector.broadcast %cst_42 : f32 to vector<8x1xf32>
    %149 = arith.divf %147, %148 : vector<8x1xf32>
    %150 = vector.broadcast %142 : vector<8x1xf32> to vector<8x32xf32>
    %151 = arith.subf %138, %150 : vector<8x32xf32>
    %cst_43 = arith.constant 9.99999974E-6 : f32
    %152 = vector.broadcast %cst_43 : f32 to vector<8x1xf32>
    %153 = arith.addf %149, %152 : vector<8x1xf32>
    %154 = math.rsqrt %153 : vector<8x1xf32>
    %155 = vector.broadcast %154 : vector<8x1xf32> to vector<8x32xf32>
    %156 = arith.mulf %151, %155 : vector<8x32xf32>
    %157 = vector.broadcast %11 : vector<1x32xf32> to vector<8x32xf32>
    %158 = arith.mulf %156, %157 : vector<8x32xf32>
    %159 = vector.broadcast %12 : vector<1x32xf32> to vector<8x32xf32>
    %160 = arith.addf %158, %159 : vector<8x32xf32>
    %161 = arith.truncf %160 : vector<8x32xf32> to vector<8x32xbf16>
    %cst_44 = arith.constant dense<0.000000e+00> : vector<8x128xf32>
    %162 = tpu.matmul %161, %3, %cst_44 {dimension_numbers = #tpu.dot_dimension_numbers<[1], [0], [0], [1], [0, 0, 1, 1], [], []>} : vector<8x32xbf16>, vector<32x128xbf16>, vector<8x128xf32> -> vector<8x128xf32>
    %163 = vector.broadcast %7 : vector<1x128xf32> to vector<8x128xf32>
    %164 = arith.addf %162, %163 : vector<8x128xf32>
    %cst_45 = arith.constant 0.000000e+00 : f32
    %165 = vector.broadcast %cst_45 : f32 to vector<8x128xf32>
    %166 = arith.maximumf %164, %165 : vector<8x128xf32>
    %167 = arith.truncf %166 : vector<8x128xf32> to vector<8x128xbf16>
    %cst_46 = arith.constant dense<0.000000e+00> : vector<8x32xf32>
    %168 = tpu.matmul %167, %4, %cst_46 {dimension_numbers = #tpu.dot_dimension_numbers<[1], [0], [0], [1], [0, 0, 1, 1], [], []>} : vector<8x128xbf16>, vector<128x32xbf16>, vector<8x32xf32> -> vector<8x32xf32>
    %169 = vector.broadcast %8 : vector<1x32xf32> to vector<8x32xf32>
    %170 = arith.addf %168, %169 : vector<8x32xf32>
    %171 = arith.addf %138, %170 : vector<8x32xf32>
    %c0_47 = arith.constant 0 : index
    %c0_48 = arith.constant 0 : index
    %172 = vector.load %arg7[%c0_47, %c0_48] : memref<8x32xf32, #tpu.memory_space<vmem>>, vector<8x32xf32>
    tpu.vector_store %arg7[%c0_47, %c0_48], %171 {strides = array<i32>} : memref<8x32xf32, #tpu.memory_space<vmem>>, vector<8x32xf32>,
    return
  }
  func.func @transform_0(%arg0: i32) -> (i32, i32) {
    %c0_i32 = arith.constant 0 : i32
    %c0_i32_0 = arith.constant 0 : i32
    return %arg0, %c0_i32 : i32, i32
  }
  func.func @transform_1(%arg0: i32) -> (i32, i32) {
    %c0_i32 = arith.constant 0 : i32
    %c0_i32_0 = arith.constant 0 : i32
    %c0_i32_1 = arith.constant 0 : i32
    return %c0_i32, %c0_i32_0 : i32, i32
  }
  func.func @transform_2(%arg0: i32) -> (i32, i32) {
    %c0_i32 = arith.constant 0 : i32
    %c0_i32_0 = arith.constant 0 : i32
    %c0_i32_1 = arith.constant 0 : i32
    return %c0_i32, %c0_i32_0 : i32, i32
  }
  func.func @transform_3(%arg0: i32) -> (i32, i32) {
    %c0_i32 = arith.constant 0 : i32
    %c0_i32_0 = arith.constant 0 : i32
    %c0_i32_1 = arith.constant 0 : i32
    return %c0_i32, %c0_i32_0 : i32, i32
  }
  func.func @transform_4(%arg0: i32) -> (i32, i32) {
    %c0_i32 = arith.constant 0 : i32
    %c0_i32_0 = arith.constant 0 : i32
    %c0_i32_1 = arith.constant 0 : i32
    return %c0_i32, %c0_i32_0 : i32, i32
  }
  func.func @transform_5(%arg0: i32) -> (i32, i32) {
    %c0_i32 = arith.constant 0 : i32
    %c0_i32_0 = arith.constant 0 : i32
    %c0_i32_1 = arith.constant 0 : i32
    return %c0_i32, %c0_i32_0 : i32, i32
  }
  func.func @transform_6(%arg0: i32) -> (i32, i32) {
    %c0_i32 = arith.constant 0 : i32
    %c0_i32_0 = arith.constant 0 : i32
    return %arg0, %c0_i32 : i32, i32
  }
}

module attributes {stable_mosaic.version = 11 : i64} {
  func.func @encoder_layer_kernel(%arg0: i32, %arg1: memref<8x32xf32, #tpu.memory_space<vmem>>, %arg2: memref<32x96xbf16, #tpu.memory_space<vmem>>, %arg3: memref<32x32xbf16, #tpu.memory_space<vmem>>, %arg4: memref<32x128xbf16, #tpu.memory_space<vmem>>, %arg5: memref<128x32xbf16, #tpu.memory_space<vmem>>, %arg6: memref<1x416xf32, #tpu.memory_space<vmem>>, %arg7: memref<8x32xf32, #tpu.memory_space<vmem>>, %arg8: memref<8x32xf32, #tpu.memory_space<vmem>>) attributes {dimension_semantics = [#tpu.dimension_semantics<parallel>], iteration_bounds = array<i64: 2>, scalar_prefetch = 0 : i64, scratch_operands = 1 : i64, tpu.core_type = #tpu.core_type<tc>, window_params = [{transform_indices = @transform_0, window_bounds = array<i64: 8, 32>}, {pipeline_mode = #tpu.pipeline_mode<synchronous>, transform_indices = @transform_1, window_bounds = array<i64: 32, 96>}, {pipeline_mode = #tpu.pipeline_mode<synchronous>, transform_indices = @transform_2, window_bounds = array<i64: 32, 32>}, {pipeline_mode = #tpu.pipeline_mode<synchronous>, transform_indices = @transform_3, window_bounds = array<i64: 32, 128>}, {pipeline_mode = #tpu.pipeline_mode<synchronous>, transform_indices = @transform_4, window_bounds = array<i64: 128, 32>}, {pipeline_mode = #tpu.pipeline_mode<synchronous>, transform_indices = @transform_5, window_bounds = array<i64: 1, 416>}, {transform_indices = @transform_6, window_bounds = array<i64: 8, 32>}]} {
    %c0 = arith.constant 0 : index
    %c0_0 = arith.constant 0 : index
    %0 = vector.load %arg1[%c0, %c0_0] : memref<8x32xf32, #tpu.memory_space<vmem>>, vector<8x32xf32>
    %c0_1 = arith.constant 0 : index
    %c0_2 = arith.constant 0 : index
    %1 = vector.load %arg2[%c0_1, %c0_2] : memref<32x96xbf16, #tpu.memory_space<vmem>>, vector<32x96xbf16>
    %c0_3 = arith.constant 0 : index
    %c0_4 = arith.constant 0 : index
    %2 = vector.load %arg3[%c0_3, %c0_4] : memref<32x32xbf16, #tpu.memory_space<vmem>>, vector<32x32xbf16>
    %c0_5 = arith.constant 0 : index
    %c0_6 = arith.constant 0 : index
    %3 = vector.load %arg4[%c0_5, %c0_6] : memref<32x128xbf16, #tpu.memory_space<vmem>>, vector<32x128xbf16>
    %c0_7 = arith.constant 0 : index
    %c0_8 = arith.constant 0 : index
    %4 = vector.load %arg5[%c0_7, %c0_8] : memref<128x32xbf16, #tpu.memory_space<vmem>>, vector<128x32xbf16>
    %c0_9 = arith.constant 0 : index
    %c0_10 = arith.constant 0 : index
    %5 = vector.load %arg6[%c0_9, %c0_10] : memref<1x416xf32, #tpu.memory_space<vmem>>, vector<1x96xf32>
    %c0_11 = arith.constant 0 : index
    %c96 = arith.constant 96 : index
    %6 = vector.load %arg6[%c0_11, %c96] : memref<1x416xf32, #tpu.memory_space<vmem>>, vector<1x32xf32>
    %c0_12 = arith.constant 0 : index
    %c128 = arith.constant 128 : index
    %7 = vector.load %arg6[%c0_12, %c128] : memref<1x416xf32, #tpu.memory_space<vmem>>, vector<1x128xf32>
    %c0_13 = arith.constant 0 : index
    %c256 = arith.constant 256 : index
    %8 = vector.load %arg6[%c0_13, %c256] : memref<1x416xf32, #tpu.memory_space<vmem>>, vector<1x32xf32>
    %c0_14 = arith.constant 0 : index
    %c288 = arith.constant 288 : index
    %9 = vector.load %arg6[%c0_14, %c288] : memref<1x416xf32, #tpu.memory_space<vmem>>, vector<1x32xf32>
    %c0_15 = arith.constant 0 : index
    %c320 = arith.constant 320 : index
    %10 = vector.load %arg6[%c0_15, %c320] : memref<1x416xf32, #tpu.memory_space<vmem>>, vector<1x32xf32>
    %c0_16 = arith.constant 0 : index
    %c352 = arith.constant 352 : index
    %11 = vector.load %arg6[%c0_16, %c352] : memref<1x416xf32, #tpu.memory_space<vmem>>, vector<1x32xf32>
    %c0_17 = arith.constant 0 : index
    %c384 = arith.constant 384 : index
    %12 = vector.load %arg6[%c0_17, %c384] : memref<1x416xf32, #tpu.memory_space<vmem>>, vector<1x32xf32>
    %cst = arith.constant dense<0.000000e+00> : vector<8xf32>
    %13 = vector.multi_reduction <add>, %0, %cst [1] : vector<8x32xf32> to vector<8xf32>
    %14 = vector.shape_cast %13 : vector<8xf32> to vector<8x1xf32>
    %cst_18 = arith.constant 3.200000e+01 : f32
    %15 = vector.broadcast %cst_18 : f32 to vector<8x1xf32>
    %16 = arith.divf %14, %15 : vector<8x1xf32>
    %17 = vector.broadcast %16 : vector<8x1xf32> to vector<8x32xf32>
    %18 = arith.subf %0, %17 : vector<8x32xf32>
    %19 = arith.mulf %18, %18 : vector<8x32xf32>
    %cst_19 = arith.constant dense<0.000000e+00> : vector<8xf32>
    %20 = vector.multi_reduction <add>, %19, %cst_19 [1] : vector<8x32xf32> to vector<8xf32>
    %21 = vector.shape_cast %20 : vector<8xf32> to vector<8x1xf32>
    %cst_20 = arith.constant 3.200000e+01 : f32
    %22 = vector.broadcast %cst_20 : f32 to vector<8x1xf32>
    %23 = arith.divf %21, %22 : vector<8x1xf32>
    %24 = vector.broadcast %16 : vector<8x1xf32> to vector<8x32xf32>
    %25 = arith.subf %0, %24 : vector<8x32xf32>
    %cst_21 = arith.constant 9.99999974E-6 : f32
    %26 = vector.broadcast %cst_21 : f32 to vector<8x1xf32>
    %27 = arith.addf %23, %26 : vector<8x1xf32>
    %28 = math.rsqrt %27 : vector<8x1xf32>
    %29 = vector.broadcast %28 : vector<8x1xf32> to vector<8x32xf32>
    %30 = arith.mulf %25, %29 : vector<8x32xf32>
    %31 = vector.broadcast %9 : vector<1x32xf32> to vector<8x32xf32>
    %32 = arith.mulf %30, %31 : vector<8x32xf32>
    %33 = vector.broadcast %10 : vector<1x32xf32> to vector<8x32xf32>
    %34 = arith.addf %32, %33 : vector<8x32xf32>
    %35 = arith.truncf %34 : vector<8x32xf32> to vector<8x32xbf16>
    %cst_22 = arith.constant dense<0.000000e+00> : vector<8x96xf32>
    %36 = tpu.matmul %35, %1, %cst_22 {dimension_numbers = #tpu.dot_dimension_numbers<[1], [0], [0], [1], [0, 0, 1, 1], [], []>} : vector<8x32xbf16>, vector<32x96xbf16>, vector<8x96xf32> -> vector<8x96xf32>
    %37 = vector.broadcast %5 : vector<1x96xf32> to vector<8x96xf32>
    %38 = arith.addf %36, %37 : vector<8x96xf32>
    %39 = vector.extract_strided_slice %38 {offsets = [0, 0], sizes = [8, 32], strides = [1, 1]} : vector<8x96xf32> to vector<8x32xf32>
    %40 = vector.extract_strided_slice %39 {offsets = [0, 0], sizes = [8, 4], strides = [1, 1]} : vector<8x32xf32> to vector<8x4xf32>
    %41 = vector.extract_strided_slice %39 {offsets = [0, 4], sizes = [8, 4], strides = [1, 1]} : vector<8x32xf32> to vector<8x4xf32>
    %42 = vector.extract_strided_slice %39 {offsets = [0, 8], sizes = [8, 4], strides = [1, 1]} : vector<8x32xf32> to vector<8x4xf32>
    %43 = vector.extract_strided_slice %39 {offsets = [0, 12], sizes = [8, 4], strides = [1, 1]} : vector<8x32xf32> to vector<8x4xf32>
    %44 = vector.extract_strided_slice %39 {offsets = [0, 16], sizes = [8, 4], strides = [1, 1]} : vector<8x32xf32> to vector<8x4xf32>
    %45 = vector.extract_strided_slice %39 {offsets = [0, 20], sizes = [8, 4], strides = [1, 1]} : vector<8x32xf32> to vector<8x4xf32>
    %46 = vector.extract_strided_slice %39 {offsets = [0, 24], sizes = [8, 4], strides = [1, 1]} : vector<8x32xf32> to vector<8x4xf32>
    %47 = vector.extract_strided_slice %39 {offsets = [0, 28], sizes = [8, 4], strides = [1, 1]} : vector<8x32xf32> to vector<8x4xf32>
    %48 = vector.shape_cast %40 : vector<8x4xf32> to vector<1x8x4xf32>
    %49 = vector.shape_cast %41 : vector<8x4xf32> to vector<1x8x4xf32>
    %50 = vector.shape_cast %42 : vector<8x4xf32> to vector<1x8x4xf32>
    %51 = vector.shape_cast %43 : vector<8x4xf32> to vector<1x8x4xf32>
    %52 = vector.shape_cast %44 : vector<8x4xf32> to vector<1x8x4xf32>
    %53 = vector.shape_cast %45 : vector<8x4xf32> to vector<1x8x4xf32>
    %54 = vector.shape_cast %46 : vector<8x4xf32> to vector<1x8x4xf32>
    %55 = vector.shape_cast %47 : vector<8x4xf32> to vector<1x8x4xf32>
    %56 = tpu.concatenate %48, %49, %50, %51, %52, %53, %54, %55 in 0 : vector<1x8x4xf32>, vector<1x8x4xf32>, vector<1x8x4xf32>, vector<1x8x4xf32>, vector<1x8x4xf32>, vector<1x8x4xf32>, vector<1x8x4xf32>, vector<1x8x4xf32> -> vector<8x8x4xf32>
    %57 = arith.truncf %56 : vector<8x8x4xf32> to vector<8x8x4xbf16>
    %58 = vector.extract_strided_slice %38 {offsets = [0, 32], sizes = [8, 32], strides = [1, 1]} : vector<8x96xf32> to vector<8x32xf32>
    %59 = vector.extract_strided_slice %58 {offsets = [0, 0], sizes = [8, 4], strides = [1, 1]} : vector<8x32xf32> to vector<8x4xf32>
    %60 = vector.extract_strided_slice %58 {offsets = [0, 4], sizes = [8, 4], strides = [1, 1]} : vector<8x32xf32> to vector<8x4xf32>
    %61 = vector.extract_strided_slice %58 {offsets = [0, 8], sizes = [8, 4], strides = [1, 1]} : vector<8x32xf32> to vector<8x4xf32>
    %62 = vector.extract_strided_slice %58 {offsets = [0, 12], sizes = [8, 4], strides = [1, 1]} : vector<8x32xf32> to vector<8x4xf32>
    %63 = vector.extract_strided_slice %58 {offsets = [0, 16], sizes = [8, 4], strides = [1, 1]} : vector<8x32xf32> to vector<8x4xf32>
    %64 = vector.extract_strided_slice %58 {offsets = [0, 20], sizes = [8, 4], strides = [1, 1]} : vector<8x32xf32> to vector<8x4xf32>
    %65 = vector.extract_strided_slice %58 {offsets = [0, 24], sizes = [8, 4], strides = [1, 1]} : vector<8x32xf32> to vector<8x4xf32>
    %66 = vector.extract_strided_slice %58 {offsets = [0, 28], sizes = [8, 4], strides = [1, 1]} : vector<8x32xf32> to vector<8x4xf32>
    %67 = vector.shape_cast %59 : vector<8x4xf32> to vector<1x8x4xf32>
    %68 = vector.shape_cast %60 : vector<8x4xf32> to vector<1x8x4xf32>
    %69 = vector.shape_cast %61 : vector<8x4xf32> to vector<1x8x4xf32>
    %70 = vector.shape_cast %62 : vector<8x4xf32> to vector<1x8x4xf32>
    %71 = vector.shape_cast %63 : vector<8x4xf32> to vector<1x8x4xf32>
    %72 = vector.shape_cast %64 : vector<8x4xf32> to vector<1x8x4xf32>
    %73 = vector.shape_cast %65 : vector<8x4xf32> to vector<1x8x4xf32>
    %74 = vector.shape_cast %66 : vector<8x4xf32> to vector<1x8x4xf32>
    %75 = tpu.concatenate %67, %68, %69, %70, %71, %72, %73, %74 in 0 : vector<1x8x4xf32>, vector<1x8x4xf32>, vector<1x8x4xf32>, vector<1x8x4xf32>, vector<1x8x4xf32>, vector<1x8x4xf32>, vector<1x8x4xf32>, vector<1x8x4xf32> -> vector<8x8x4xf32>
    %76 = arith.truncf %75 : vector<8x8x4xf32> to vector<8x8x4xbf16>
    %77 = vector.extract_strided_slice %38 {offsets = [0, 64], sizes = [8, 32], strides = [1, 1]} : vector<8x96xf32> to vector<8x32xf32>
    %78 = vector.extract_strided_slice %77 {offsets = [0, 0], sizes = [8, 4], strides = [1, 1]} : vector<8x32xf32> to vector<8x4xf32>
    %79 = vector.extract_strided_slice %77 {offsets = [0, 4], sizes = [8, 4], strides = [1, 1]} : vector<8x32xf32> to vector<8x4xf32>
    %80 = vector.extract_strided_slice %77 {offsets = [0, 8], sizes = [8, 4], strides = [1, 1]} : vector<8x32xf32> to vector<8x4xf32>
    %81 = vector.extract_strided_slice %77 {offsets = [0, 12], sizes = [8, 4], strides = [1, 1]} : vector<8x32xf32> to vector<8x4xf32>
    %82 = vector.extract_strided_slice %77 {offsets = [0, 16], sizes = [8, 4], strides = [1, 1]} : vector<8x32xf32> to vector<8x4xf32>
    %83 = vector.extract_strided_slice %77 {offsets = [0, 20], sizes = [8, 4], strides = [1, 1]} : vector<8x32xf32> to vector<8x4xf32>
    %84 = vector.extract_strided_slice %77 {offsets = [0, 24], sizes = [8, 4], strides = [1, 1]} : vector<8x32xf32> to vector<8x4xf32>
    %85 = vector.extract_strided_slice %77 {offsets = [0, 28], sizes = [8, 4], strides = [1, 1]} : vector<8x32xf32> to vector<8x4xf32>
    %86 = vector.shape_cast %78 : vector<8x4xf32> to vector<1x8x4xf32>
    %87 = vector.shape_cast %79 : vector<8x4xf32> to vector<1x8x4xf32>
    %88 = vector.shape_cast %80 : vector<8x4xf32> to vector<1x8x4xf32>
    %89 = vector.shape_cast %81 : vector<8x4xf32> to vector<1x8x4xf32>
    %90 = vector.shape_cast %82 : vector<8x4xf32> to vector<1x8x4xf32>
    %91 = vector.shape_cast %83 : vector<8x4xf32> to vector<1x8x4xf32>
    %92 = vector.shape_cast %84 : vector<8x4xf32> to vector<1x8x4xf32>
    %93 = vector.shape_cast %85 : vector<8x4xf32> to vector<1x8x4xf32>
    %94 = tpu.concatenate %86, %87, %88, %89, %90, %91, %92, %93 in 0 : vector<1x8x4xf32>, vector<1x8x4xf32>, vector<1x8x4xf32>, vector<1x8x4xf32>, vector<1x8x4xf32>, vector<1x8x4xf32>, vector<1x8x4xf32>, vector<1x8x4xf32> -> vector<8x8x4xf32>
    %95 = arith.truncf %94 : vector<8x8x4xf32> to vector<8x8x4xbf16>
    "tpu.trace_start"() <{level = 10 : i32, message = "bqd,bkd->bqk"}> : () -> ()
    %cst_23 = arith.constant dense<0.000000e+00> : vector<8x8x8xf32>
    %96 = tpu.matmul %57, %76, %cst_23 {dimension_numbers = #tpu.dot_dimension_numbers<[2], [2], [1], [1], [0, 0, 0, 1, 1, 1], [0], [0]>} : vector<8x8x4xbf16>, vector<8x8x4xbf16>, vector<8x8x8xf32> -> vector<8x8x8xf32>
    "tpu.trace_stop"() : () -> ()
    %cst_24 = arith.constant dense<0xFF800000> : vector<8x8xf32>
    %97 = vector.multi_reduction <maximumf>, %96, %cst_24 [2] : vector<8x8x8xf32> to vector<8x8xf32>
    %98 = vector.shape_cast %97 : vector<8x8xf32> to vector<8x8x1xf32>
    %99 = vector.broadcast %98 : vector<8x8x1xf32> to vector<8x8x8xf32>
    %100 = arith.subf %96, %99 : vector<8x8x8xf32>
    %101 = math.exp %100 : vector<8x8x8xf32>
    %cst_25 = arith.constant dense<0.000000e+00> : vector<8x8xf32>
    %102 = vector.multi_reduction <add>, %101, %cst_25 [2] : vector<8x8x8xf32> to vector<8x8xf32>
    %103 = vector.shape_cast %102 : vector<8x8xf32> to vector<8x8x1xf32>
    %104 = tpu.reciprocal %103 {approx = true} : vector<8x8x1xf32> -> vector<8x8x1xf32>
    %105 = vector.broadcast %104 : vector<8x8x1xf32> to vector<8x8x8xf32>
    %106 = arith.mulf %101, %105 : vector<8x8x8xf32>
    %107 = arith.truncf %106 : vector<8x8x8xf32> to vector<8x8x8xbf16>
    "tpu.trace_start"() <{level = 10 : i32, message = "bqk,bkd->bqd"}> : () -> ()
    %cst_26 = arith.constant dense<0.000000e+00> : vector<8x8x4xf32>
    %108 = tpu.matmul %107, %95, %cst_26 {dimension_numbers = #tpu.dot_dimension_numbers<[2], [1], [1], [2], [0, 0, 0, 1, 1, 2], [0], [0]>} : vector<8x8x8xbf16>, vector<8x8x4xbf16>, vector<8x8x4xf32> -> vector<8x8x4xf32>
    "tpu.trace_stop"() : () -> ()
    %109 = vector.extract_strided_slice %108 {offsets = [0, 0, 0], sizes = [1, 8, 4], strides = [1, 1, 1]} : vector<8x8x4xf32> to vector<1x8x4xf32>
    %110 = vector.shape_cast %109 : vector<1x8x4xf32> to vector<8x4xf32>
    %c0_27 = arith.constant 0 : index
    %c0_28 = arith.constant 0 : index
    %111 = vector.load %arg8[%c0_27, %c0_28] : memref<8x32xf32, #tpu.memory_space<vmem>>, vector<8x4xf32>
    tpu.vector_store %arg8[%c0_27, %c0_28], %110 {strides = array<i32>} : memref<8x32xf32, #tpu.memory_space<vmem>>, vector<8x4xf32>,
    %112 = vector.extract_strided_slice %108 {offsets = [1, 0, 0], sizes = [1, 8, 4], strides = [1, 1, 1]} : vector<8x8x4xf32> to vector<1x8x4xf32>
    %113 = vector.shape_cast %112 : vector<1x8x4xf32> to vector<8x4xf32>
    %c0_29 = arith.constant 0 : index
    %c4 = arith.constant 4 : index
    %114 = vector.load %arg8[%c0_29, %c4] : memref<8x32xf32, #tpu.memory_space<vmem>>, vector<8x4xf32>
    tpu.vector_store %arg8[%c0_29, %c4], %113 {strides = array<i32>} : memref<8x32xf32, #tpu.memory_space<vmem>>, vector<8x4xf32>,
    %115 = vector.extract_strided_slice %108 {offsets = [2, 0, 0], sizes = [1, 8, 4], strides = [1, 1, 1]} : vector<8x8x4xf32> to vector<1x8x4xf32>
    %116 = vector.shape_cast %115 : vector<1x8x4xf32> to vector<8x4xf32>
    %c0_30 = arith.constant 0 : index
    %c8 = arith.constant 8 : index
    %117 = vector.load %arg8[%c0_30, %c8] : memref<8x32xf32, #tpu.memory_space<vmem>>, vector<8x4xf32>
    tpu.vector_store %arg8[%c0_30, %c8], %116 {strides = array<i32>} : memref<8x32xf32, #tpu.memory_space<vmem>>, vector<8x4xf32>,
    %118 = vector.extract_strided_slice %108 {offsets = [3, 0, 0], sizes = [1, 8, 4], strides = [1, 1, 1]} : vector<8x8x4xf32> to vector<1x8x4xf32>
    %119 = vector.shape_cast %118 : vector<1x8x4xf32> to vector<8x4xf32>
    %c0_31 = arith.constant 0 : index
    %c12 = arith.constant 12 : index
    %120 = vector.load %arg8[%c0_31, %c12] : memref<8x32xf32, #tpu.memory_space<vmem>>, vector<8x4xf32>
    tpu.vector_store %arg8[%c0_31, %c12], %119 {strides = array<i32>} : memref<8x32xf32, #tpu.memory_space<vmem>>, vector<8x4xf32>,
    %121 = vector.extract_strided_slice %108 {offsets = [4, 0, 0], sizes = [1, 8, 4], strides = [1, 1, 1]} : vector<8x8x4xf32> to vector<1x8x4xf32>
    %122 = vector.shape_cast %121 : vector<1x8x4xf32> to vector<8x4xf32>
    %c0_32 = arith.constant 0 : index
    %c16 = arith.constant 16 : index
    %123 = vector.load %arg8[%c0_32, %c16] : memref<8x32xf32, #tpu.memory_space<vmem>>, vector<8x4xf32>
    tpu.vector_store %arg8[%c0_32, %c16], %122 {strides = array<i32>} : memref<8x32xf32, #tpu.memory_space<vmem>>, vector<8x4xf32>,
    %124 = vector.extract_strided_slice %108 {offsets = [5, 0, 0], sizes = [1, 8, 4], strides = [1, 1, 1]} : vector<8x8x4xf32> to vector<1x8x4xf32>
    %125 = vector.shape_cast %124 : vector<1x8x4xf32> to vector<8x4xf32>
    %c0_33 = arith.constant 0 : index
    %c20 = arith.constant 20 : index
    %126 = vector.load %arg8[%c0_33, %c20] : memref<8x32xf32, #tpu.memory_space<vmem>>, vector<8x4xf32>
    tpu.vector_store %arg8[%c0_33, %c20], %125 {strides = array<i32>} : memref<8x32xf32, #tpu.memory_space<vmem>>, vector<8x4xf32>,
    %127 = vector.extract_strided_slice %108 {offsets = [6, 0, 0], sizes = [1, 8, 4], strides = [1, 1, 1]} : vector<8x8x4xf32> to vector<1x8x4xf32>
    %128 = vector.shape_cast %127 : vector<1x8x4xf32> to vector<8x4xf32>
    %c0_34 = arith.constant 0 : index
    %c24 = arith.constant 24 : index
    %129 = vector.load %arg8[%c0_34, %c24] : memref<8x32xf32, #tpu.memory_space<vmem>>, vector<8x4xf32>
    tpu.vector_store %arg8[%c0_34, %c24], %128 {strides = array<i32>} : memref<8x32xf32, #tpu.memory_space<vmem>>, vector<8x4xf32>,
    %130 = vector.extract_strided_slice %108 {offsets = [7, 0, 0], sizes = [1, 8, 4], strides = [1, 1, 1]} : vector<8x8x4xf32> to vector<1x8x4xf32>
    %131 = vector.shape_cast %130 : vector<1x8x4xf32> to vector<8x4xf32>
    %c0_35 = arith.constant 0 : index
    %c28 = arith.constant 28 : index
    %132 = vector.load %arg8[%c0_35, %c28] : memref<8x32xf32, #tpu.memory_space<vmem>>, vector<8x4xf32>
    tpu.vector_store %arg8[%c0_35, %c28], %131 {strides = array<i32>} : memref<8x32xf32, #tpu.memory_space<vmem>>, vector<8x4xf32>,
    %c0_36 = arith.constant 0 : index
    %c0_37 = arith.constant 0 : index
    %133 = vector.load %arg8[%c0_36, %c0_37] : memref<8x32xf32, #tpu.memory_space<vmem>>, vector<8x32xf32>
    %134 = arith.truncf %133 : vector<8x32xf32> to vector<8x32xbf16>
    %cst_38 = arith.constant dense<0.000000e+00> : vector<8x32xf32>
    %135 = tpu.matmul %134, %2, %cst_38 {dimension_numbers = #tpu.dot_dimension_numbers<[1], [0], [0], [1], [0, 0, 1, 1], [], []>} : vector<8x32xbf16>, vector<32x32xbf16>, vector<8x32xf32> -> vector<8x32xf32>
    %136 = vector.broadcast %6 : vector<1x32xf32> to vector<8x32xf32>
    %137 = arith.addf %135, %136 : vector<8x32xf32>
    %138 = arith.addf %0, %137 : vector<8x32xf32>
    %cst_39 = arith.constant dense<0.000000e+00> : vector<8xf32>
    %139 = vector.multi_reduction <add>, %138, %cst_39 [1] : vector<8x32xf32> to vector<8xf32>
    %140 = vector.shape_cast %139 : vector<8xf32> to vector<8x1xf32>
    %cst_40 = arith.constant 3.200000e+01 : f32
    %141 = vector.broadcast %cst_40 : f32 to vector<8x1xf32>
    %142 = arith.divf %140, %141 : vector<8x1xf32>
    %143 = vector.broadcast %142 : vector<8x1xf32> to vector<8x32xf32>
    %144 = arith.subf %138, %143 : vector<8x32xf32>
    %145 = arith.mulf %144, %144 : vector<8x32xf32>
    %cst_41 = arith.constant dense<0.000000e+00> : vector<8xf32>
    %146 = vector.multi_reduction <add>, %145, %cst_41 [1] : vector<8x32xf32> to vector<8xf32>
    %147 = vector.shape_cast %146 : vector<8xf32> to vector<8x1xf32>
    %cst_42 = arith.constant 3.200000e+01 : f32
    %148 = vector.broadcast %cst_42 : f32 to vector<8x1xf32>
    %149 = arith.divf %147, %148 : vector<8x1xf32>
    %150 = vector.broadcast %142 : vector<8x1xf32> to vector<8x32xf32>
    %151 = arith.subf %138, %150 : vector<8x32xf32>
    %cst_43 = arith.constant 9.99999974E-6 : f32
    %152 = vector.broadcast %cst_43 : f32 to vector<8x1xf32>
    %153 = arith.addf %149, %152 : vector<8x1xf32>
    %154 = math.rsqrt %153 : vector<8x1xf32>
    %155 = vector.broadcast %154 : vector<8x1xf32> to vector<8x32xf32>
    %156 = arith.mulf %151, %155 : vector<8x32xf32>
    %157 = vector.broadcast %11 : vector<1x32xf32> to vector<8x32xf32>
    %158 = arith.mulf %156, %157 : vector<8x32xf32>
    %159 = vector.broadcast %12 : vector<1x32xf32> to vector<8x32xf32>
    %160 = arith.addf %158, %159 : vector<8x32xf32>
    %161 = arith.truncf %160 : vector<8x32xf32> to vector<8x32xbf16>
    %cst_44 = arith.constant dense<0.000000e+00> : vector<8x128xf32>
    %162 = tpu.matmul %161, %3, %cst_44 {dimension_numbers = #tpu.dot_dimension_numbers<[1], [0], [0], [1], [0, 0, 1, 1], [], []>} : vector<8x32xbf16>, vector<32x128xbf16>, vector<8x128xf32> -> vector<8x128xf32>
    %163 = vector.broadcast %7 : vector<1x128xf32> to vector<8x128xf32>
    %164 = arith.addf %162, %163 : vector<8x128xf32>
    %cst_45 = arith.constant 0.000000e+00 : f32
    %165 = vector.broadcast %cst_45 : f32 to vector<8x128xf32>
    %166 = arith.maximumf %164, %165 : vector<8x128xf32>
    %167 = arith.truncf %166 : vector<8x128xf32> to vector<8x128xbf16>
    %cst_46 = arith.constant dense<0.000000e+00> : vector<8x32xf32>
    %168 = tpu.matmul %167, %4, %cst_46 {dimension_numbers = #tpu.dot_dimension_numbers<[1], [0], [0], [1], [0, 0, 1, 1], [], []>} : vector<8x128xbf16>, vector<128x32xbf16>, vector<8x32xf32> -> vector<8x32xf32>
    %169 = vector.broadcast %8 : vector<1x32xf32> to vector<8x32xf32>
    %170 = arith.addf %168, %169 : vector<8x32xf32>
    %171 = arith.addf %138, %170 : vector<8x32xf32>
    %c0_47 = arith.constant 0 : index
    %c0_48 = arith.constant 0 : index
    %172 = vector.load %arg7[%c0_47, %c0_48] : memref<8x32xf32, #tpu.memory_space<vmem>>, vector<8x32xf32>
    tpu.vector_store %arg7[%c0_47, %c0_48], %171 {strides = array<i32>} : memref<8x32xf32, #tpu.memory_space<vmem>>, vector<8x32xf32>,
    return
  }
  func.func @transform_0(%arg0: i32) -> (i32, i32) {
    %c0_i32 = arith.constant 0 : i32
    %c0_i32_0 = arith.constant 0 : i32
    return %arg0, %c0_i32 : i32, i32
  }
  func.func @transform_1(%arg0: i32) -> (i32, i32) {
    %c0_i32 = arith.constant 0 : i32
    %c0_i32_0 = arith.constant 0 : i32
    %c0_i32_1 = arith.constant 0 : i32
    return %c0_i32, %c0_i32_0 : i32, i32
  }
  func.func @transform_2(%arg0: i32) -> (i32, i32) {
    %c0_i32 = arith.constant 0 : i32
    %c0_i32_0 = arith.constant 0 : i32
    %c0_i32_1 = arith.constant 0 : i32
    return %c0_i32, %c0_i32_0 : i32, i32
  }
  func.func @transform_3(%arg0: i32) -> (i32, i32) {
    %c0_i32 = arith.constant 0 : i32
    %c0_i32_0 = arith.constant 0 : i32
    %c0_i32_1 = arith.constant 0 : i32
    return %c0_i32, %c0_i32_0 : i32, i32
  }
  func.func @transform_4(%arg0: i32) -> (i32, i32) {
    %c0_i32 = arith.constant 0 : i32
    %c0_i32_0 = arith.constant 0 : i32
    %c0_i32_1 = arith.constant 0 : i32
    return %c0_i32, %c0_i32_0 : i32, i32
  }
  func.func @transform_5(%arg0: i32) -> (i32, i32) {
    %c0_i32 = arith.constant 0 : i32
    %c0_i32_0 = arith.constant 0 : i32
    %c0_i32_1 = arith.constant 0 : i32
    return %c0_i32, %c0_i32_0 : i32, i32
  }
  func.func @transform_6(%arg0: i32) -> (i32, i32) {
    %c0_i32 = arith.constant 0 : i32
    %c0_i32_0 = arith.constant 0 : i32
    return %arg0, %c0_i32 : i32, i32
  }
}

</mosaic_0001>

<llo_original>
// kernel: tpu_custom_call.1
$region0: #{tpu_custom_call.1}
  #allocation0 [shape = 'u32[]', space=smem, size = 0x4, offset = 0x4, fixed_abs, tag = 'smem constant byte address 0x4 - core index']
  #allocation1 [shape = 'u32[144,128]{1,0:T(1,128)}', space=vmem, size = 0x12000, scoped, tag = 'internal scratch']
  #allocation2 [shape = 'f32[8,32]{1,0:T(8,128)}', space=vmem, size = 0x1000, scoped, tag = 'scratch operand']
  %s0 = inlined_call_operand.vmem [shape: f32[16,32], index: 0, kind: input, shape index: {}]
  %s1 = inlined_call_operand.vmem [shape: bf16[32,96], index: 1, kind: input, shape index: {}]
  %s2 = inlined_call_operand.vmem [shape: bf16[32,32], index: 2, kind: input, shape index: {}]
  %s3 = inlined_call_operand.vmem [shape: bf16[32,128], index: 3, kind: input, shape index: {}]
  %s4 = inlined_call_operand.vmem [shape: bf16[128,32], index: 4, kind: input, shape index: {}]
  %s5 = inlined_call_operand.vmem [shape: f32[1,416], index: 5, kind: input, shape index: {}]
  %s6 = inlined_call_operand.hbm [shape: f32[16,32], index: 6, kind: output, shape index: {}]
  %s7 = sld [smem:[#allocation0]]
  $region57: #{tpu_custom_call.1} parent=0
    _
  %s9 = ssub.s32 1, %s7
  %s10 = scalar_select 0, %s9, %s7
  $region1: #{tpu_custom_call.1} parent=0
    #allocation3 [shape = 'u8[8192]{0}', space=vmem, size = 0x2000, scoped, tag = 'output window, operand 0']
    #allocation4 [shape = 's32[2]{0}', space=sflag, size = 0x8, scoped, tag = 'scoped memory for tpu_custom_call.1']
    %11 = vsyncpa [#allocation4], 0
    %s12 = scalar_lea.sflag [#allocation4], 1
    %13 = vsyncpa %s12, 0
    loop: start=0, step=1, limit=4
    $region2: #{tpu_custom_call.1} parent=1 // loop_pre_header
      _
    $region3: #{tpu_custom_call.1} parent=1 // loop_header
      %s15 = sphi 0, %s19
      %p16 = scmp.ge.s32.totalorder %s15, 4
      %s25 = sphi 0, %s27
      %s28 = sphi 0, %s25
      %s29 = sphi 0, %s28
      %s45 = sphi 0, %s29
      %s49 = sphi 0, %s49
      %s51 = sphi 0, %s49
      %s52 = sphi 0, %s51
      %s66 = sphi 0, %s52
      %s70 = sphi 0, %s70
      %s72 = sphi 0, %s70
      %s73 = sphi 0, %s72
      %s87 = sphi 0, %s73
      %s91 = sphi 0, %s91
      %s93 = sphi 0, %s91
      %s94 = sphi 0, %s93
      %s108 = sphi 0, %s94
      %s112 = sphi 0, %s112
      %s114 = sphi 0, %s112
      %s115 = sphi 0, %s114
      %s129 = sphi 0, %s115
      %s133 = sphi 0, %s133
      %s135 = sphi 0, %s133
      %s136 = sphi 0, %s135
      %s150 = sphi 0, %s136
      %s156 = sphi 0, %s158
      %s159 = sphi 0, %s156
      %s160 = sphi 0, %s159
      %s176 = sphi 0, %s160
    $region4: #{tpu_custom_call.1} parent=1 // loop_header_branch
      %18 = sbr.rel (%p16) target = $region8
    $region5: #{tpu_custom_call.1} parent=1 // loop_body
      %s20 = ssub.s32 %s15, 1
      %s21 = ssub.s32 %s15, 2
      %s22 = sadd.s32 %s15, 1
      %s23 = ssub.s32 %s15, %s22
      %p24 = scmp.eq.s32.totalorder %s23, 0
      %s26 = sadd.s32 %s25, 1
      %s27 = scalar_select %p24, %s25, %s26
      %p30 = pneg %p24
      %p31 = scmp.eq.s32.totalorder %s15, 1
      %p32 = por %p30, %p31
      %p33 = scmp.ne.s32.totalorder %s25, %s28
      %p34 = scmp.eq.s32.totalorder %s15, 0
      %p35 = por %p33, %p34
      %p36 = scmp.ne.s32.totalorder %s25, %s28
      %p37 = scmp.eq.s32.totalorder %s20, 1
      %p38 = por %p36, %p37
      %p39 = scmp.ne.s32.totalorder %s28, %s29
      %p40 = scmp.eq.s32.totalorder %s20, 0
      %p41 = por %p39, %p40
      %p42 = scmp.ne.s32.totalorder %s28, %s29
      %p43 = scmp.eq.s32.totalorder %s21, 1
      %p44 = por %p42, %p43
      %p46 = scmp.ne.s32.totalorder %s29, %s45
      %p47 = scmp.eq.s32.totalorder %s21, 0
      %p48 = por %p46, %p47
      %s50 = sadd.s32 %s49, 1
      %p53 = scmp.eq.s32.totalorder %s15, 1
      %p54 = scmp.ne.s32.totalorder %s49, %s51
      %p55 = scmp.eq.s32.totalorder %s15, 0
      %p56 = por %p54, %p55
      %p57 = scmp.ne.s32.totalorder %s49, %s51
      %p58 = scmp.eq.s32.totalorder %s20, 1
      %p59 = por %p57, %p58
      %p60 = scmp.ne.s32.totalorder %s51, %s52
      %p61 = scmp.eq.s32.totalorder %s20, 0
      %p62 = por %p60, %p61
      %p63 = scmp.ne.s32.totalorder %s51, %s52
      %p64 = scmp.eq.s32.totalorder %s21, 1
      %p65 = por %p63, %p64
      %p67 = scmp.ne.s32.totalorder %s52, %s66
      %p68 = scmp.eq.s32.totalorder %s21, 0
      %p69 = por %p67, %p68
      %s71 = sadd.s32 %s70, 1
      %p74 = scmp.eq.s32.totalorder %s15, 1
      %p75 = scmp.ne.s32.totalorder %s70, %s72
      %p76 = scmp.eq.s32.totalorder %s15, 0
      %p77 = por %p75, %p76
      %p78 = scmp.ne.s32.totalorder %s70, %s72
      %p79 = scmp.eq.s32.totalorder %s20, 1
      %p80 = por %p78, %p79
      %p81 = scmp.ne.s32.totalorder %s72, %s73
      %p82 = scmp.eq.s32.totalorder %s20, 0
      %p83 = por %p81, %p82
      %p84 = scmp.ne.s32.totalorder %s72, %s73
      %p85 = scmp.eq.s32.totalorder %s21, 1
      %p86 = por %p84, %p85
      %p88 = scmp.ne.s32.totalorder %s73, %s87
      %p89 = scmp.eq.s32.totalorder %s21, 0
      %p90 = por %p88, %p89
      %s92 = sadd.s32 %s91, 1
      %p95 = scmp.eq.s32.totalorder %s15, 1
      %p96 = scmp.ne.s32.totalorder %s91, %s93
      %p97 = scmp.eq.s32.totalorder %s15, 0
      %p98 = por %p96, %p97
      %p99 = scmp.ne.s32.totalorder %s91, %s93
      %p100 = scmp.eq.s32.totalorder %s20, 1
      %p101 = por %p99, %p100
      %p102 = scmp.ne.s32.totalorder %s93, %s94
      %p103 = scmp.eq.s32.totalorder %s20, 0
      %p104 = por %p102, %p103
      %p105 = scmp.ne.s32.totalorder %s93, %s94
      %p106 = scmp.eq.s32.totalorder %s21, 1
      %p107 = por %p105, %p106
      %p109 = scmp.ne.s32.totalorder %s94, %s108
      %p110 = scmp.eq.s32.totalorder %s21, 0
      %p111 = por %p109, %p110
      %s113 = sadd.s32 %s112, 1
      %p116 = scmp.eq.s32.totalorder %s15, 1
      %p117 = scmp.ne.s32.totalorder %s112, %s114
      %p118 = scmp.eq.s32.totalorder %s15, 0
      %p119 = por %p117, %p118
      %p120 = scmp.ne.s32.totalorder %s112, %s114
      %p121 = scmp.eq.s32.totalorder %s20, 1
      %p122 = por %p120, %p121
      %p123 = scmp.ne.s32.totalorder %s114, %s115
      %p124 = scmp.eq.s32.totalorder %s20, 0
      %p125 = por %p123, %p124
      %p126 = scmp.ne.s32.totalorder %s114, %s115
      %p127 = scmp.eq.s32.totalorder %s21, 1
      %p128 = por %p126, %p127
      %p130 = scmp.ne.s32.totalorder %s115, %s129
      %p131 = scmp.eq.s32.totalorder %s21, 0
      %p132 = por %p130, %p131
      %s134 = sadd.s32 %s133, 1
      %p137 = scmp.eq.s32.totalorder %s15, 1
      %p138 = scmp.ne.s32.totalorder %s133, %s135
      %p139 = scmp.eq.s32.totalorder %s15, 0
      %p140 = por %p138, %p139
      %p141 = scmp.ne.s32.totalorder %s133, %s135
      %p142 = scmp.eq.s32.totalorder %s20, 1
      %p143 = por %p141, %p142
      %p144 = scmp.ne.s32.totalorder %s135, %s136
      %p145 = scmp.eq.s32.totalorder %s20, 0
      %p146 = por %p144, %p145
      %p147 = scmp.ne.s32.totalorder %s135, %s136
      %p148 = scmp.eq.s32.totalorder %s21, 1
      %p149 = por %p147, %p148
      %p151 = scmp.ne.s32.totalorder %s136, %s150
      %p152 = scmp.eq.s32.totalorder %s21, 0
      %p153 = por %p151, %p152
      %s154 = ssub.s32 %s15, %s22
      %p155 = scmp.eq.s32.totalorder %s154, 0
      %s157 = sadd.s32 %s156, 1
      %s158 = scalar_select %p155, %s156, %s157
      %p161 = pneg %p155
      %p162 = scmp.eq.s32.totalorder %s15, 1
      %p163 = por %p161, %p162
      %p164 = scmp.ne.s32.totalorder %s156, %s159
      %p165 = scmp.eq.s32.totalorder %s15, 0
      %p166 = por %p164, %p165
      %p167 = scmp.ne.s32.totalorder %s156, %s159
      %p168 = scmp.eq.s32.totalorder %s20, 1
      %p169 = por %p167, %p168
      %p170 = scmp.ne.s32.totalorder %s159, %s160
      %p171 = scmp.eq.s32.totalorder %s20, 0
      %p172 = por %p170, %p171
      %p173 = scmp.ne.s32.totalorder %s159, %s160
      %p174 = scmp.eq.s32.totalorder %s21, 1
      %p175 = por %p173, %p174
      %p177 = scmp.ne.s32.totalorder %s160, %s176
      %p178 = scmp.eq.s32.totalorder %s21, 0
      %p179 = por %p177, %p178
      %p180 = scmp.le.s32.totalorder 1, %s15
      %p181 = scmp.lt.s32.totalorder %s15, 3
      %p182 = pnand %p180, %p181
      %p183 = pneg %p182
      // Predicated region
      $region9: #{tpu_custom_call.1} parent=5 // pred_check
        _
      $region10: #{tpu_custom_call.1} parent=5 // pred_check_branch
        %185 = sbr.rel (%p182) target = $region12
      $region11: #{tpu_custom_call.1} parent=5 // pred_region
        %s186 = ssub.s32 %s15, 1
        // Predicated region
        $region13: #{tpu_custom_call.1} parent=11 // pred_check
          %p187 = pneg %p62
        $region14: #{tpu_custom_call.1} parent=11 // pred_check_branch
          %189 = sbr.rel (%p187) target = $region16
        $region15: #{tpu_custom_call.1} parent=11 // pred_region
          _
        $region16: #{tpu_custom_call.1} parent=11 // pred_fallthru
          _
        // Predicated region
        $region17: #{tpu_custom_call.1} parent=11 // pred_check
          %p190 = pneg %p83
        $region18: #{tpu_custom_call.1} parent=11 // pred_check_branch
          %192 = sbr.rel (%p190) target = $region20
        $region19: #{tpu_custom_call.1} parent=11 // pred_region
          _
        $region20: #{tpu_custom_call.1} parent=11 // pred_fallthru
          _
        // Predicated region
        $region21: #{tpu_custom_call.1} parent=11 // pred_check
          %p193 = pneg %p104
        $region22: #{tpu_custom_call.1} parent=11 // pred_check_branch
          %195 = sbr.rel (%p193) target = $region24
        $region23: #{tpu_custom_call.1} parent=11 // pred_region
          _
        $region24: #{tpu_custom_call.1} parent=11 // pred_fallthru
          _
        // Predicated region
        $region25: #{tpu_custom_call.1} parent=11 // pred_check
          %p196 = pneg %p125
        $region26: #{tpu_custom_call.1} parent=11 // pred_check_branch
          %198 = sbr.rel (%p196) target = $region28
        $region27: #{tpu_custom_call.1} parent=11 // pred_region
          _
        $region28: #{tpu_custom_call.1} parent=11 // pred_fallthru
          _
        // Predicated region
        $region29: #{tpu_custom_call.1} parent=11 // pred_check
          %p199 = pneg %p146
        $region30: #{tpu_custom_call.1} parent=11 // pred_check_branch
          %201 = sbr.rel (%p199) target = $region32
        $region31: #{tpu_custom_call.1} parent=11 // pred_region
          _
        $region32: #{tpu_custom_call.1} parent=11 // pred_fallthru
          _
      $region12: #{tpu_custom_call.1} parent=5 // pred_fallthru
        _
      %p202 = scmp.lt.s32.totalorder %s15, 2
      // Predicated region
      $region33: #{tpu_custom_call.1} parent=5 // pred_check
        %p203 = pneg %p202
      $region34: #{tpu_custom_call.1} parent=5 // pred_check_branch
        %205 = sbr.rel (%p203) target = $region36
      $region35: #{tpu_custom_call.1} parent=5 // pred_region
        // Predicated region
        $region37: #{tpu_custom_call.1} parent=35 // pred_check
          %p206 = pneg %p35
        $region38: #{tpu_custom_call.1} parent=35 // pred_check_branch
          %208 = sbr.rel (%p206) target = $region40
        $region39: #{tpu_custom_call.1} parent=35 // pred_region
          %p209 = scmp.lt.s32.totalorder %s15, 1
          %s210 = scalar_select %p209, %s15, 1
          %s211 = smul.addr %s210, 8
          %s212 = scalar_lea.vmem %s0, %s211
        $region40: #{tpu_custom_call.1} parent=35 // pred_fallthru
          _
      $region36: #{tpu_custom_call.1} parent=5 // pred_fallthru
        _
      %p213 = scmp.le.s32.totalorder 1, %s15
      %p214 = scmp.lt.s32.totalorder %s15, 3
      %p215 = pnand %p213, %p214
      %p216 = pneg %p215
      // Predicated region
      $region41: #{tpu_custom_call.1} parent=5 // pred_check
        _
      $region42: #{tpu_custom_call.1} parent=5 // pred_check_branch
        %218 = sbr.rel (%p215) target = $region44
      $region43: #{tpu_custom_call.1} parent=5 // pred_region
        %s219 = ssub.s32 %s15, 1
        %p220 = scmp.lt.s32.totalorder %s20, 1
        %s221 = scalar_select %p220, %s20, 1
        %s222 = smul.addr %s221, 8
        %s223 = scalar_lea.vmem %s0, %s222
        %p224 = pneg %p41
        %p225 = pneg %p38
        %p226 = pneg %p62
        %p227 = pneg %p59
        %p228 = pneg %p83
        %p229 = pneg %p80
        %p230 = pneg %p104
        %p231 = pneg %p101
        %p232 = pneg %p125
        %p233 = pneg %p122
        %p234 = pneg %p146
        %p235 = pneg %p143
        %p236 = pneg %p172
        %p237 = pneg %p169
        %s238 = sand.u32 %s159, 1
        %s239 = scalar_lea.sflag [#allocation4], %s238
        %s240 = sand.u32 %s159, 1
        %s241 = smul.addr %s240, 8
        %s242 = scalar_lea.vmem [#allocation3], %s241
        %p243 = scmp.lt.s32.totalorder %s20, 1
        %s244 = scalar_select %p243, %s20, 1
        %s245 = smul.addr %s244, 8
        %s246 = scalar_lea.vmem %s0, %s245
        %v248 = vld [vmem:[%s246] sm:$0xff]
        %v249 = vld [vmem:[%s1] sm:$0xf]
        %v250 = vld [vmem:[%s1 + $0x4] sm:$0xf]
        %v251 = vld [vmem:[%s1 + $0x8] sm:$0xf]
        %v252 = vld [vmem:[%s1 + $0xc] sm:$0xf]
        %v253 = vld [vmem:[%s2] sm:$0xf]
        %v254 = vld [vmem:[%s2 + $0x4] sm:$0xf]
        %v255 = vld [vmem:[%s2 + $0x8] sm:$0xf]
        %v256 = vld [vmem:[%s2 + $0xc] sm:$0xf]
        %v257 = vld [vmem:[%s3] sm:$0xf]
        %v258 = vld [vmem:[%s3 + $0x4] sm:$0xf]
        %v259 = vld [vmem:[%s3 + $0x8] sm:$0xf]
        %v260 = vld [vmem:[%s3 + $0xc] sm:$0xf]
        %v261 = vld [vmem:[%s4] sm:$0xf]
        %v262 = vld [vmem:[%s4 + $0x4] sm:$0xf]
        %v263 = vld [vmem:[%s4 + $0x8] sm:$0xf]
        %v264 = vld [vmem:[%s4 + $0xc] sm:$0xf]
        %v265 = vld [vmem:[%s4 + $0x10] sm:$0xf]
        %v266 = vld [vmem:[%s4 + $0x14] sm:$0xf]
        %v267 = vld [vmem:[%s4 + $0x18] sm:$0xf]
        %v268 = vld [vmem:[%s4 + $0x1c] sm:$0xf]
        %v269 = vld [vmem:[%s4 + $0x20] sm:$0xf]
        %v270 = vld [vmem:[%s4 + $0x24] sm:$0xf]
        %v271 = vld [vmem:[%s4 + $0x28] sm:$0xf]
        %v272 = vld [vmem:[%s4 + $0x2c] sm:$0xf]
        %v273 = vld [vmem:[%s4 + $0x30] sm:$0xf]
        %v274 = vld [vmem:[%s4 + $0x34] sm:$0xf]
        %v275 = vld [vmem:[%s4 + $0x38] sm:$0xf]
        %v276 = vld [vmem:[%s4 + $0x3c] sm:$0xf]
        %v277 = vld [vmem:[%s5] sm:$0x1]
        %v278 = vld [vmem:[%s5 + $0x1] sm:$0x1]
        %v279 = vld [vmem:[%s5 + $0x2] sm:$0x1]
        %v280 = vld [vmem:[%s5 + $0x3] sm:$0x1]
        %vm281 = vcmask 261120
        %v282 = vsel %vm281, %v248, 0.0
        %283 = vadd.xlane.f32.xlu0 %v282
        %v284 = vpop.xlane.xlu0 %283
        %v285 = vrcp.pop 32.0
        %v286 = vmul.f32 %v284, %v285
        %v287 = vsub.f32 %v248, %v286
        %v288 = vmul.f32 %v287, %v287
        %v289 = vsel %vm281, %v288, 0.0
        %290 = vadd.xlane.f32.xlu0 %v289
        %v291 = vpop.xlane.xlu0 %290
        %v292 = vmul.f32 %v291, %v285
        %v293 = vadd.f32 %v292, 1e-05
        %v294 = vrsqrt.pop %v293
        %v295 = vmul.f32 %v287, %v294
        %v297 = vlaneseq
        %v298 = vshrl.u32 %v297, 7
        %v299 = vsub.s32 0, %v298
        %v300 = vrot.slane %v279, %v299
        %301 = vrot.lane.b32.xlu0 %v300, 96
        %v302 = vpop.permute.xlu0 %301
        %v304 = vmul.f32 %v295, %v302
        %305 = vrot.lane.b32.xlu0 %v300, 64
        %v306 = vpop.permute.xlu0 %305
        %v308 = vadd.f32 %v304, %v306
        %v309 = vpack.c.bf16 %v308, %v308
        %v311 = vlaneseq
        %v312 = vshrl.u32 %v311, 7
        %v313 = vsub.s32 0, %v312
        %v314 = vrot.slane %v277, %v313
        %v320 = vunpack.c.l.b16 %v249
        %v321 = vunpack.c.l.b16 %v250
        %v322 = vunpack.c.l.b16 %v251
        %v323 = vunpack.c.l.b16 %v252
        %v324 = vpack.c.b16 %v321, %v320
        %v325 = vpack.c.b16 %v323, %v322
        %v329 = vsel %vm281, %v309, 0
        %331 = vmatprep.subr.bf16.mxu0 0
        %332 = vmatpush1.bf16.msra.mxu0 %v324
        %333 = vmatprep.subr.bf16.mxu0 0
        %334 = vmatpush1.bf16.msra.mxu0 %v325
        %335 = vmatprep.subr.bf16.mxu0 0
        %336 = vmatpush1.bf16.msra.mxu0 0
        %337 = vmatprep.subr.bf16.mxu0 0
        %338 = vmatpush1.bf16.msra.mxu0 0
        %339 = vmatprep.subr.bf16.mxu0 0
        %340 = vmatpush1.bf16.msra.mxu0 0
        %341 = vmatprep.subr.bf16.mxu0 0
        %342 = vmatpush1.bf16.msra.mxu0 0
        %343 = vmatprep.subr.bf16.mxu0 0
        %344 = vmatpush1.bf16.msra.mxu0 0
        %345 = vmatprep.subr.bf16.mxu0 0
        %346 = vmatpush1.bf16.msra.mxu0 0
        %347 = vmatprep.subr.bf16.mxu0 0
        %348 = vmatpush1.bf16.msra.mxu0 0
        %349 = vmatprep.subr.bf16.mxu0 0
        %350 = vmatpush1.bf16.msra.mxu0 0
        %351 = vmatprep.subr.bf16.mxu0 0
        %352 = vmatpush1.bf16.msra.mxu0 0
        %353 = vmatprep.subr.bf16.mxu0 0
        %354 = vmatpush1.bf16.msra.mxu0 0
        %355 = vmatprep.subr.bf16.mxu0 0
        %356 = vmatpush1.bf16.msra.mxu0 0
        %357 = vmatprep.subr.bf16.mxu0 0
        %358 = vmatpush1.bf16.msra.mxu0 0
        %359 = vmatprep.subr.bf16.mxu0 0
        %360 = vmatpush1.bf16.msra.mxu0 0
        %361 = vmatprep.subr.bf16.mxu0 0
        %362 = vmatpush1.bf16.msra.mxu0 0
        %363 = vmatprep.mubr.bf16.mxu0 0
        %364 = vmatmul.mubr.bf16.gmra.mrb[0].mxu0 %v329
        %v365 = vpop.f32.mrb[0].mxu0
        %v366 = vadd.f32 %v314, %v365
        %v367 = vpop.f32.mrb[0].mxu0
        %v368 = vpop.f32.mrb[0].mxu0
        %v369 = vpop.f32.mrb[0].mxu0
        %370 = vdwg.mxu0
        %372 = vrot.lane.b32.xlu0 %v366, 124
        %v373 = vpop.permute.xlu0 %372
        %375 = vrot.lane.b32.xlu0 %v366, 120
        %v376 = vpop.permute.xlu0 %375
        %378 = vrot.lane.b32.xlu0 %v366, 116
        %v379 = vpop.permute.xlu0 %378
        %381 = vrot.lane.b32.xlu0 %v366, 112
        %v382 = vpop.permute.xlu0 %381
        %384 = vrot.lane.b32.xlu0 %v366, 108
        %v385 = vpop.permute.xlu0 %384
        %387 = vrot.lane.b32.xlu0 %v366, 104
        %v388 = vpop.permute.xlu0 %387
        %390 = vrot.lane.b32.xlu0 %v366, 100
        %v391 = vpop.permute.xlu0 %390
        %v393 = vpack.c.bf16 %v366, %v366
        %v394 = vpack.c.bf16 %v373, %v373
        %v395 = vpack.c.bf16 %v376, %v376
        %v396 = vpack.c.bf16 %v379, %v379
        %v397 = vpack.c.bf16 %v382, %v382
        %v398 = vpack.c.bf16 %v385, %v385
        %v399 = vpack.c.bf16 %v388, %v388
        %v400 = vpack.c.bf16 %v391, %v391
        %402 = vrot.lane.b32.xlu0 %v393, 96
        %v403 = vpop.permute.xlu0 %402
        %vm404 = vcmask 31744
        %v406 = vsel %vm404, %v393, 0
        %v409 = vsel %vm404, %v403, 0
        %411 = vmatprep.subr.bf16.mxu0 0
        %412 = vmatpush1.bf16.xpose.msra.mxu0 %v409
        %413 = vmatprep.subr.bf16.mxu0 0
        %414 = vmatpush1.bf16.xpose.msra.mxu0 0
        %415 = vmatprep.subr.bf16.mxu0 0
        %416 = vmatpush1.bf16.xpose.msra.mxu0 0
        %417 = vmatprep.subr.bf16.mxu0 0
        %418 = vmatpush1.bf16.xpose.msra.mxu0 0
        %419 = vmatprep.subr.bf16.mxu0 0
        %420 = vmatpush1.bf16.xpose.msra.mxu0 0
        %421 = vmatprep.subr.bf16.mxu0 0
        %422 = vmatpush1.bf16.xpose.msra.mxu0 0
        %423 = vmatprep.subr.bf16.mxu0 0
        %424 = vmatpush1.bf16.xpose.msra.mxu0 0
        %425 = vmatprep.subr.bf16.mxu0 0
        %426 = vmatpush1.bf16.xpose.msra.mxu0 0
        %427 = vmatprep.subr.bf16.mxu0 0
        %428 = vmatpush1.bf16.xpose.msra.mxu0 0
        %429 = vmatprep.subr.bf16.mxu0 0
        %430 = vmatpush1.bf16.xpose.msra.mxu0 0
        %431 = vmatprep.subr.bf16.mxu0 0
        %432 = vmatpush1.bf16.xpose.msra.mxu0 0
        %433 = vmatprep.subr.bf16.mxu0 0
        %434 = vmatpush1.bf16.xpose.msra.mxu0 0
        %435 = vmatprep.subr.bf16.mxu0 0
        %436 = vmatpush1.bf16.xpose.msra.mxu0 0
        %437 = vmatprep.subr.bf16.mxu0 0
        %438 = vmatpush1.bf16.xpose.msra.mxu0 0
        %439 = vmatprep.subr.bf16.mxu0 0
        %440 = vmatpush1.bf16.xpose.msra.mxu0 0
        %441 = vmatprep.subr.bf16.mxu0 0
        %442 = vmatpush1.bf16.xpose.msra.mxu0 0
        %443 = vmatprep.mubr.bf16.mxu0 0
        %444 = vmatmul.mubr.bf16.gmra.mrb[0].mxu0 %v406
        %v445 = vpop.f32.mrb[0].mxu0
        %v446 = vadd.f32 0.0, %v445
        %v447 = vpop.f32.mrb[0].mxu0
        %v448 = vpop.f32.mrb[0].mxu0
        %v449 = vpop.f32.mrb[0].mxu0
        %450 = vdwg.mxu0
        %452 = vrot.lane.b32.xlu0 %v394, 96
        %v453 = vpop.permute.xlu0 %452
        %v455 = vsel %vm404, %v394, 0
        %v458 = vsel %vm404, %v453, 0
        %460 = vmatprep.subr.bf16.mxu0 0
        %461 = vmatpush1.bf16.xpose.msra.mxu0 %v458
        %462 = vmatprep.subr.bf16.mxu0 0
        %463 = vmatpush1.bf16.xpose.msra.mxu0 0
        %464 = vmatprep.subr.bf16.mxu0 0
        %465 = vmatpush1.bf16.xpose.msra.mxu0 0
        %466 = vmatprep.subr.bf16.mxu0 0
        %467 = vmatpush1.bf16.xpose.msra.mxu0 0
        %468 = vmatprep.subr.bf16.mxu0 0
        %469 = vmatpush1.bf16.xpose.msra.mxu0 0
        %470 = vmatprep.subr.bf16.mxu0 0
        %471 = vmatpush1.bf16.xpose.msra.mxu0 0
        %472 = vmatprep.subr.bf16.mxu0 0
        %473 = vmatpush1.bf16.xpose.msra.mxu0 0
        %474 = vmatprep.subr.bf16.mxu0 0
        %475 = vmatpush1.bf16.xpose.msra.mxu0 0
        %476 = vmatprep.subr.bf16.mxu0 0
        %477 = vmatpush1.bf16.xpose.msra.mxu0 0
        %478 = vmatprep.subr.bf16.mxu0 0
        %479 = vmatpush1.bf16.xpose.msra.mxu0 0
        %480 = vmatprep.subr.bf16.mxu0 0
        %481 = vmatpush1.bf16.xpose.msra.mxu0 0
        %482 = vmatprep.subr.bf16.mxu0 0
        %483 = vmatpush1.bf16.xpose.msra.mxu0 0
        %484 = vmatprep.subr.bf16.mxu0 0
        %485 = vmatpush1.bf16.xpose.msra.mxu0 0
        %486 = vmatprep.subr.bf16.mxu0 0
        %487 = vmatpush1.bf16.xpose.msra.mxu0 0
        %488 = vmatprep.subr.bf16.mxu0 0
        %489 = vmatpush1.bf16.xpose.msra.mxu0 0
        %490 = vmatprep.subr.bf16.mxu0 0
        %491 = vmatpush1.bf16.xpose.msra.mxu0 0
        %492 = vmatprep.mubr.bf16.mxu0 0
        %493 = vmatmul.mubr.bf16.gmra.mrb[0].mxu0 %v455
        %v494 = vpop.f32.mrb[0].mxu0
        %v495 = vadd.f32 0.0, %v494
        %v496 = vpop.f32.mrb[0].mxu0
        %v497 = vpop.f32.mrb[0].mxu0
        %v498 = vpop.f32.mrb[0].mxu0
        %499 = vdwg.mxu0
        %501 = vrot.lane.b32.xlu0 %v395, 96
        %v502 = vpop.permute.xlu0 %501
        %v504 = vsel %vm404, %v395, 0
        %v507 = vsel %vm404, %v502, 0
        %509 = vmatprep.subr.bf16.mxu0 0
        %510 = vmatpush1.bf16.xpose.msra.mxu0 %v507
        %511 = vmatprep.subr.bf16.mxu0 0
        %512 = vmatpush1.bf16.xpose.msra.mxu0 0
        %513 = vmatprep.subr.bf16.mxu0 0
        %514 = vmatpush1.bf16.xpose.msra.mxu0 0
        %515 = vmatprep.subr.bf16.mxu0 0
        %516 = vmatpush1.bf16.xpose.msra.mxu0 0
        %517 = vmatprep.subr.bf16.mxu0 0
        %518 = vmatpush1.bf16.xpose.msra.mxu0 0
        %519 = vmatprep.subr.bf16.mxu0 0
        %520 = vmatpush1.bf16.xpose.msra.mxu0 0
        %521 = vmatprep.subr.bf16.mxu0 0
        %522 = vmatpush1.bf16.xpose.msra.mxu0 0
        %523 = vmatprep.subr.bf16.mxu0 0
        %524 = vmatpush1.bf16.xpose.msra.mxu0 0
        %525 = vmatprep.subr.bf16.mxu0 0
        %526 = vmatpush1.bf16.xpose.msra.mxu0 0
        %527 = vmatprep.subr.bf16.mxu0 0
        %528 = vmatpush1.bf16.xpose.msra.mxu0 0
        %529 = vmatprep.subr.bf16.mxu0 0
        %530 = vmatpush1.bf16.xpose.msra.mxu0 0
        %531 = vmatprep.subr.bf16.mxu0 0
        %532 = vmatpush1.bf16.xpose.msra.mxu0 0
        %533 = vmatprep.subr.bf16.mxu0 0
        %534 = vmatpush1.bf16.xpose.msra.mxu0 0
        %535 = vmatprep.subr.bf16.mxu0 0
        %536 = vmatpush1.bf16.xpose.msra.mxu0 0
        %537 = vmatprep.subr.bf16.mxu0 0
        %538 = vmatpush1.bf16.xpose.msra.mxu0 0
        %539 = vmatprep.subr.bf16.mxu0 0
        %540 = vmatpush1.bf16.xpose.msra.mxu0 0
        %541 = vmatprep.mubr.bf16.mxu0 0
        %542 = vmatmul.mubr.bf16.gmra.mrb[0].mxu0 %v504
        %v543 = vpop.f32.mrb[0].mxu0
        %v544 = vadd.f32 0.0, %v543
        %v545 = vpop.f32.mrb[0].mxu0
        %v546 = vpop.f32.mrb[0].mxu0
        %v547 = vpop.f32.mrb[0].mxu0
        %548 = vdwg.mxu0
        %550 = vrot.lane.b32.xlu0 %v396, 96
        %v551 = vpop.permute.xlu0 %550
        %v553 = vsel %vm404, %v396, 0
        %v556 = vsel %vm404, %v551, 0
        %558 = vmatprep.subr.bf16.mxu0 0
        %559 = vmatpush1.bf16.xpose.msra.mxu0 %v556
        %560 = vmatprep.subr.bf16.mxu0 0
        %561 = vmatpush1.bf16.xpose.msra.mxu0 0
        %562 = vmatprep.subr.bf16.mxu0 0
        %563 = vmatpush1.bf16.xpose.msra.mxu0 0
        %564 = vmatprep.subr.bf16.mxu0 0
        %565 = vmatpush1.bf16.xpose.msra.mxu0 0
        %566 = vmatprep.subr.bf16.mxu0 0
        %567 = vmatpush1.bf16.xpose.msra.mxu0 0
        %568 = vmatprep.subr.bf16.mxu0 0
        %569 = vmatpush1.bf16.xpose.msra.mxu0 0
        %570 = vmatprep.subr.bf16.mxu0 0
        %571 = vmatpush1.bf16.xpose.msra.mxu0 0
        %572 = vmatprep.subr.bf16.mxu0 0
        %573 = vmatpush1.bf16.xpose.msra.mxu0 0
        %574 = vmatprep.subr.bf16.mxu0 0
        %575 = vmatpush1.bf16.xpose.msra.mxu0 0
        %576 = vmatprep.subr.bf16.mxu0 0
        %577 = vmatpush1.bf16.xpose.msra.mxu0 0
        %578 = vmatprep.subr.bf16.mxu0 0
        %579 = vmatpush1.bf16.xpose.msra.mxu0 0
        %580 = vmatprep.subr.bf16.mxu0 0
        %581 = vmatpush1.bf16.xpose.msra.mxu0 0
        %582 = vmatprep.subr.bf16.mxu0 0
        %583 = vmatpush1.bf16.xpose.msra.mxu0 0
        %584 = vmatprep.subr.bf16.mxu0 0
        %585 = vmatpush1.bf16.xpose.msra.mxu0 0
        %586 = vmatprep.subr.bf16.mxu0 0
        %587 = vmatpush1.bf16.xpose.msra.mxu0 0
        %588 = vmatprep.subr.bf16.mxu0 0
        %589 = vmatpush1.bf16.xpose.msra.mxu0 0
        %590 = vmatprep.mubr.bf16.mxu0 0
        %591 = vmatmul.mubr.bf16.gmra.mrb[0].mxu0 %v553
        %v592 = vpop.f32.mrb[0].mxu0
        %v593 = vadd.f32 0.0, %v592
        %v594 = vpop.f32.mrb[0].mxu0
        %v595 = vpop.f32.mrb[0].mxu0
        %v596 = vpop.f32.mrb[0].mxu0
        %597 = vdwg.mxu0
        %599 = vrot.lane.b32.xlu0 %v397, 96
        %v600 = vpop.permute.xlu0 %599
        %v602 = vsel %vm404, %v397, 0
        %v605 = vsel %vm404, %v600, 0
        %607 = vmatprep.subr.bf16.mxu0 0
        %608 = vmatpush1.bf16.xpose.msra.mxu0 %v605
        %609 = vmatprep.subr.bf16.mxu0 0
        %610 = vmatpush1.bf16.xpose.msra.mxu0 0
        %611 = vmatprep.subr.bf16.mxu0 0
        %612 = vmatpush1.bf16.xpose.msra.mxu0 0
        %613 = vmatprep.subr.bf16.mxu0 0
        %614 = vmatpush1.bf16.xpose.msra.mxu0 0
        %615 = vmatprep.subr.bf16.mxu0 0
        %616 = vmatpush1.bf16.xpose.msra.mxu0 0
        %617 = vmatprep.subr.bf16.mxu0 0
        %618 = vmatpush1.bf16.xpose.msra.mxu0 0
        %619 = vmatprep.subr.bf16.mxu0 0
        %620 = vmatpush1.bf16.xpose.msra.mxu0 0
        %621 = vmatprep.subr.bf16.mxu0 0
        %622 = vmatpush1.bf16.xpose.msra.mxu0 0
        %623 = vmatprep.subr.bf16.mxu0 0
        %624 = vmatpush1.bf16.xpose.msra.mxu0 0
        %625 = vmatprep.subr.bf16.mxu0 0
        %626 = vmatpush1.bf16.xpose.msra.mxu0 0
        %627 = vmatprep.subr.bf16.mxu0 0
        %628 = vmatpush1.bf16.xpose.msra.mxu0 0
        %629 = vmatprep.subr.bf16.mxu0 0
        %630 = vmatpush1.bf16.xpose.msra.mxu0 0
        %631 = vmatprep.subr.bf16.mxu0 0
        %632 = vmatpush1.bf16.xpose.msra.mxu0 0
        %633 = vmatprep.subr.bf16.mxu0 0
        %634 = vmatpush1.bf16.xpose.msra.mxu0 0
        %635 = vmatprep.subr.bf16.mxu0 0
        %636 = vmatpush1.bf16.xpose.msra.mxu0 0
        %637 = vmatprep.subr.bf16.mxu0 0
        %638 = vmatpush1.bf16.xpose.msra.mxu0 0
        %639 = vmatprep.mubr.bf16.mxu0 0
        %640 = vmatmul.mubr.bf16.gmra.mrb[0].mxu0 %v602
        %v641 = vpop.f32.mrb[0].mxu0
        %v642 = vadd.f32 0.0, %v641
        %v643 = vpop.f32.mrb[0].mxu0
        %v644 = vpop.f32.mrb[0].mxu0
        %v645 = vpop.f32.mrb[0].mxu0
        %646 = vdwg.mxu0
        %648 = vrot.lane.b32.xlu0 %v398, 96
        %v649 = vpop.permute.xlu0 %648
        %v651 = vsel %vm404, %v398, 0
        %v654 = vsel %vm404, %v649, 0
        %656 = vmatprep.subr.bf16.mxu0 0
        %657 = vmatpush1.bf16.xpose.msra.mxu0 %v654
        %658 = vmatprep.subr.bf16.mxu0 0
        %659 = vmatpush1.bf16.xpose.msra.mxu0 0
        %660 = vmatprep.subr.bf16.mxu0 0
        %661 = vmatpush1.bf16.xpose.msra.mxu0 0
        %662 = vmatprep.subr.bf16.mxu0 0
        %663 = vmatpush1.bf16.xpose.msra.mxu0 0
        %664 = vmatprep.subr.bf16.mxu0 0
        %665 = vmatpush1.bf16.xpose.msra.mxu0 0
        %666 = vmatprep.subr.bf16.mxu0 0
        %667 = vmatpush1.bf16.xpose.msra.mxu0 0
        %668 = vmatprep.subr.bf16.mxu0 0
        %669 = vmatpush1.bf16.xpose.msra.mxu0 0
        %670 = vmatprep.subr.bf16.mxu0 0
        %671 = vmatpush1.bf16.xpose.msra.mxu0 0
        %672 = vmatprep.subr.bf16.mxu0 0
        %673 = vmatpush1.bf16.xpose.msra.mxu0 0
        %674 = vmatprep.subr.bf16.mxu0 0
        %675 = vmatpush1.bf16.xpose.msra.mxu0 0
        %676 = vmatprep.subr.bf16.mxu0 0
        %677 = vmatpush1.bf16.xpose.msra.mxu0 0
        %678 = vmatprep.subr.bf16.mxu0 0
        %679 = vmatpush1.bf16.xpose.msra.mxu0 0
        %680 = vmatprep.subr.bf16.mxu0 0
        %681 = vmatpush1.bf16.xpose.msra.mxu0 0
        %682 = vmatprep.subr.bf16.mxu0 0
        %683 = vmatpush1.bf16.xpose.msra.mxu0 0
        %684 = vmatprep.subr.bf16.mxu0 0
        %685 = vmatpush1.bf16.xpose.msra.mxu0 0
        %686 = vmatprep.subr.bf16.mxu0 0
        %687 = vmatpush1.bf16.xpose.msra.mxu0 0
        %688 = vmatprep.mubr.bf16.mxu0 0
        %689 = vmatmul.mubr.bf16.gmra.mrb[0].mxu0 %v651
        %v690 = vpop.f32.mrb[0].mxu0
        %v691 = vadd.f32 0.0, %v690
        %v692 = vpop.f32.mrb[0].mxu0
        %v693 = vpop.f32.mrb[0].mxu0
        %v694 = vpop.f32.mrb[0].mxu0
        %695 = vdwg.mxu0
        %697 = vrot.lane.b32.xlu0 %v399, 96
        %v698 = vpop.permute.xlu0 %697
        %v700 = vsel %vm404, %v399, 0
        %v703 = vsel %vm404, %v698, 0
        %705 = vmatprep.subr.bf16.mxu0 0
        %706 = vmatpush1.bf16.xpose.msra.mxu0 %v703
        %707 = vmatprep.subr.bf16.mxu0 0
        %708 = vmatpush1.bf16.xpose.msra.mxu0 0
        %709 = vmatprep.subr.bf16.mxu0 0
        %710 = vmatpush1.bf16.xpose.msra.mxu0 0
        %711 = vmatprep.subr.bf16.mxu0 0
        %712 = vmatpush1.bf16.xpose.msra.mxu0 0
        %713 = vmatprep.subr.bf16.mxu0 0
        %714 = vmatpush1.bf16.xpose.msra.mxu0 0
        %715 = vmatprep.subr.bf16.mxu0 0
        %716 = vmatpush1.bf16.xpose.msra.mxu0 0
        %717 = vmatprep.subr.bf16.mxu0 0
        %718 = vmatpush1.bf16.xpose.msra.mxu0 0
        %719 = vmatprep.subr.bf16.mxu0 0
        %720 = vmatpush1.bf16.xpose.msra.mxu0 0
        %721 = vmatprep.subr.bf16.mxu0 0
        %722 = vmatpush1.bf16.xpose.msra.mxu0 0
        %723 = vmatprep.subr.bf16.mxu0 0
        %724 = vmatpush1.bf16.xpose.msra.mxu0 0
        %725 = vmatprep.subr.bf16.mxu0 0
        %726 = vmatpush1.bf16.xpose.msra.mxu0 0
        %727 = vmatprep.subr.bf16.mxu0 0
        %728 = vmatpush1.bf16.xpose.msra.mxu0 0
        %729 = vmatprep.subr.bf16.mxu0 0
        %730 = vmatpush1.bf16.xpose.msra.mxu0 0
        %731 = vmatprep.subr.bf16.mxu0 0
        %732 = vmatpush1.bf16.xpose.msra.mxu0 0
        %733 = vmatprep.subr.bf16.mxu0 0
        %734 = vmatpush1.bf16.xpose.msra.mxu0 0
        %735 = vmatprep.subr.bf16.mxu0 0
        %736 = vmatpush1.bf16.xpose.msra.mxu0 0
        %737 = vmatprep.mubr.bf16.mxu0 0
        %738 = vmatmul.mubr.bf16.gmra.mrb[0].mxu0 %v700
        %v739 = vpop.f32.mrb[0].mxu0
        %v740 = vadd.f32 0.0, %v739
        %v741 = vpop.f32.mrb[0].mxu0
        %v742 = vpop.f32.mrb[0].mxu0
        %v743 = vpop.f32.mrb[0].mxu0
        %744 = vdwg.mxu0
        %746 = vrot.lane.b32.xlu0 %v400, 96
        %v747 = vpop.permute.xlu0 %746
        %v749 = vsel %vm404, %v400, 0
        %v752 = vsel %vm404, %v747, 0
        %754 = vmatprep.subr.bf16.mxu0 0
        %755 = vmatpush1.bf16.xpose.msra.mxu0 %v752
        %756 = vmatprep.subr.bf16.mxu0 0
        %757 = vmatpush1.bf16.xpose.msra.mxu0 0
        %758 = vmatprep.subr.bf16.mxu0 0
        %759 = vmatpush1.bf16.xpose.msra.mxu0 0
        %760 = vmatprep.subr.bf16.mxu0 0
        %761 = vmatpush1.bf16.xpose.msra.mxu0 0
        %762 = vmatprep.subr.bf16.mxu0 0
        %763 = vmatpush1.bf16.xpose.msra.mxu0 0
        %764 = vmatprep.subr.bf16.mxu0 0
        %765 = vmatpush1.bf16.xpose.msra.mxu0 0
        %766 = vmatprep.subr.bf16.mxu0 0
        %767 = vmatpush1.bf16.xpose.msra.mxu0 0
        %768 = vmatprep.subr.bf16.mxu0 0
        %769 = vmatpush1.bf16.xpose.msra.mxu0 0
        %770 = vmatprep.subr.bf16.mxu0 0
        %771 = vmatpush1.bf16.xpose.msra.mxu0 0
        %772 = vmatprep.subr.bf16.mxu0 0
        %773 = vmatpush1.bf16.xpose.msra.mxu0 0
        %774 = vmatprep.subr.bf16.mxu0 0
        %775 = vmatpush1.bf16.xpose.msra.mxu0 0
        %776 = vmatprep.subr.bf16.mxu0 0
        %777 = vmatpush1.bf16.xpose.msra.mxu0 0
        %778 = vmatprep.subr.bf16.mxu0 0
        %779 = vmatpush1.bf16.xpose.msra.mxu0 0
        %780 = vmatprep.subr.bf16.mxu0 0
        %781 = vmatpush1.bf16.xpose.msra.mxu0 0
        %782 = vmatprep.subr.bf16.mxu0 0
        %783 = vmatpush1.bf16.xpose.msra.mxu0 0
        %784 = vmatprep.subr.bf16.mxu0 0
        %785 = vmatpush1.bf16.xpose.msra.mxu0 0
        %786 = vmatprep.mubr.bf16.mxu0 0
        %787 = vmatmul.mubr.bf16.gmra.mrb[0].mxu0 %v749
        %v788 = vpop.f32.mrb[0].mxu0
        %v789 = vadd.f32 0.0, %v788
        %v790 = vpop.f32.mrb[0].mxu0
        %v791 = vpop.f32.mrb[0].mxu0
        %v792 = vpop.f32.mrb[0].mxu0
        %793 = vdwg.mxu0
        %vm794 = vcmask 64512
        %v795 = vsel %vm794, %v446, -inf
        %796 = vmax.xlane.f32.xlu0 %v795
        %v797 = vpop.xlane.xlu0 %796
        %v798 = vsel %vm794, %v495, -inf
        %799 = vmax.xlane.f32.xlu0 %v798
        %v800 = vpop.xlane.xlu0 %799
        %v801 = vsel %vm794, %v544, -inf
        %802 = vmax.xlane.f32.xlu0 %v801
        %v803 = vpop.xlane.xlu0 %802
        %v804 = vsel %vm794, %v593, -inf
        %805 = vmax.xlane.f32.xlu0 %v804
        %v806 = vpop.xlane.xlu0 %805
        %v807 = vsel %vm794, %v642, -inf
        %808 = vmax.xlane.f32.xlu0 %v807
        %v809 = vpop.xlane.xlu0 %808
        %v810 = vsel %vm794, %v691, -inf
        %811 = vmax.xlane.f32.xlu0 %v810
        %v812 = vpop.xlane.xlu0 %811
        %v813 = vsel %vm794, %v740, -inf
        %814 = vmax.xlane.f32.xlu0 %v813
        %v815 = vpop.xlane.xlu0 %814
        %v816 = vsel %vm794, %v789, -inf
        %817 = vmax.xlane.f32.xlu0 %v816
        %v818 = vpop.xlane.xlu0 %817
        %v819 = vsub.f32 %v446, %v797
        %v820 = vsub.f32 %v495, %v800
        %v821 = vsub.f32 %v544, %v803
        %v822 = vsub.f32 %v593, %v806
        %v823 = vsub.f32 %v642, %v809
        %v824 = vsub.f32 %v691, %v812
        %v825 = vsub.f32 %v740, %v815
        %v826 = vsub.f32 %v789, %v818
        %v827 = vmul.f32 %v819, 1.442695
        %v828 = vpow.pop %v827
        %v829 = vmul.f32 %v820, 1.442695
        %v830 = vpow.pop %v829
        %v831 = vmul.f32 %v821, 1.442695
        %v832 = vpow.pop %v831
        %v833 = vmul.f32 %v822, 1.442695
        %v834 = vpow.pop %v833
        %v835 = vmul.f32 %v823, 1.442695
        %v836 = vpow.pop %v835
        %v837 = vmul.f32 %v824, 1.442695
        %v838 = vpow.pop %v837
        %v839 = vmul.f32 %v825, 1.442695
        %v840 = vpow.pop %v839
        %v841 = vmul.f32 %v826, 1.442695
        %v842 = vpow.pop %v841
        %v843 = vsel %vm794, %v828, 0.0
        %844 = vadd.xlane.f32.xlu0 %v843
        %v845 = vpop.xlane.xlu0 %844
        %v846 = vsel %vm794, %v830, 0.0
        %847 = vadd.xlane.f32.xlu0 %v846
        %v848 = vpop.xlane.xlu0 %847
        %v849 = vsel %vm794, %v832, 0.0
        %850 = vadd.xlane.f32.xlu0 %v849
        %v851 = vpop.xlane.xlu0 %850
        %v852 = vsel %vm794, %v834, 0.0
        %853 = vadd.xlane.f32.xlu0 %v852
        %v854 = vpop.xlane.xlu0 %853
        %v855 = vsel %vm794, %v836, 0.0
        %856 = vadd.xlane.f32.xlu0 %v855
        %v857 = vpop.xlane.xlu0 %856
        %v858 = vsel %vm794, %v838, 0.0
        %859 = vadd.xlane.f32.xlu0 %v858
        %v860 = vpop.xlane.xlu0 %859
        %v861 = vsel %vm794, %v840, 0.0
        %862 = vadd.xlane.f32.xlu0 %v861
        %v863 = vpop.xlane.xlu0 %862
        %v864 = vsel %vm794, %v842, 0.0
        %865 = vadd.xlane.f32.xlu0 %v864
        %v866 = vpop.xlane.xlu0 %865
        %v867 = vrcp.pop %v845
        %v868 = vrcp.pop %v848
        %v869 = vrcp.pop %v851
        %v870 = vrcp.pop %v854
        %v871 = vrcp.pop %v857
        %v872 = vrcp.pop %v860
        %v873 = vrcp.pop %v863
        %v874 = vrcp.pop %v866
        %v875 = vmul.f32 %v828, %v867
        %v876 = vmul.f32 %v830, %v868
        %v877 = vmul.f32 %v832, %v869
        %v878 = vmul.f32 %v834, %v870
        %v879 = vmul.f32 %v836, %v871
        %v880 = vmul.f32 %v838, %v872
        %v881 = vmul.f32 %v840, %v873
        %v882 = vmul.f32 %v842, %v874
        %v883 = vpack.c.bf16 %v875, %v875
        %v884 = vpack.c.bf16 %v876, %v876
        %v885 = vpack.c.bf16 %v877, %v877
        %v886 = vpack.c.bf16 %v878, %v878
        %v887 = vpack.c.bf16 %v879, %v879
        %v888 = vpack.c.bf16 %v880, %v880
        %v889 = vpack.c.bf16 %v881, %v881
        %v890 = vpack.c.bf16 %v882, %v882
        %891 = vrot.lane.b32.xlu0 %v393, 64
        %v892 = vpop.permute.xlu0 %891
        %v894 = vsel %vm794, %v883, 0
        %vm896 = vcmask 1043456
        %v898 = vsel %vm896, %v892, 0
        %900 = vmatprep.subr.bf16.mxu0 0
        %901 = vmatpush1.bf16.msra.mxu0 %v898
        %902 = vmatprep.subr.bf16.mxu0 0
        %903 = vmatpush1.bf16.msra.mxu0 0
        %904 = vmatprep.subr.bf16.mxu0 0
        %905 = vmatpush1.bf16.msra.mxu0 0
        %906 = vmatprep.subr.bf16.mxu0 0
        %907 = vmatpush1.bf16.msra.mxu0 0
        %908 = vmatprep.subr.bf16.mxu0 0
        %909 = vmatpush1.bf16.msra.mxu0 0
        %910 = vmatprep.subr.bf16.mxu0 0
        %911 = vmatpush1.bf16.msra.mxu0 0
        %912 = vmatprep.subr.bf16.mxu0 0
        %913 = vmatpush1.bf16.msra.mxu0 0
        %914 = vmatprep.subr.bf16.mxu0 0
        %915 = vmatpush1.bf16.msra.mxu0 0
        %916 = vmatprep.subr.bf16.mxu0 0
        %917 = vmatpush1.bf16.msra.mxu0 0
        %918 = vmatprep.subr.bf16.mxu0 0
        %919 = vmatpush1.bf16.msra.mxu0 0
        %920 = vmatprep.subr.bf16.mxu0 0
        %921 = vmatpush1.bf16.msra.mxu0 0
        %922 = vmatprep.subr.bf16.mxu0 0
        %923 = vmatpush1.bf16.msra.mxu0 0
        %924 = vmatprep.subr.bf16.mxu0 0
        %925 = vmatpush1.bf16.msra.mxu0 0
        %926 = vmatprep.subr.bf16.mxu0 0
        %927 = vmatpush1.bf16.msra.mxu0 0
        %928 = vmatprep.subr.bf16.mxu0 0
        %929 = vmatpush1.bf16.msra.mxu0 0
        %930 = vmatprep.subr.bf16.mxu0 0
        %931 = vmatpush1.bf16.msra.mxu0 0
        %932 = vmatprep.mubr.bf16.mxu0 0
        %933 = vmatmul.mubr.bf16.gmra.mrb[0].mxu0 %v894
        %v934 = vpop.f32.mrb[0].mxu0
        %v935 = vadd.f32 0.0, %v934
        %v936 = vpop.f32.mrb[0].mxu0
        %v937 = vpop.f32.mrb[0].mxu0
        %v938 = vpop.f32.mrb[0].mxu0
        %939 = vdwg.mxu0
        %940 = vrot.lane.b32.xlu0 %v394, 64
        %v941 = vpop.permute.xlu0 %940
        %v943 = vsel %vm794, %v884, 0
        %v946 = vsel %vm896, %v941, 0
        %948 = vmatprep.subr.bf16.mxu0 0
        %949 = vmatpush1.bf16.msra.mxu0 %v946
        %950 = vmatprep.subr.bf16.mxu0 0
        %951 = vmatpush1.bf16.msra.mxu0 0
        %952 = vmatprep.subr.bf16.mxu0 0
        %953 = vmatpush1.bf16.msra.mxu0 0
        %954 = vmatprep.subr.bf16.mxu0 0
        %955 = vmatpush1.bf16.msra.mxu0 0
        %956 = vmatprep.subr.bf16.mxu0 0
        %957 = vmatpush1.bf16.msra.mxu0 0
        %958 = vmatprep.subr.bf16.mxu0 0
        %959 = vmatpush1.bf16.msra.mxu0 0
        %960 = vmatprep.subr.bf16.mxu0 0
        %961 = vmatpush1.bf16.msra.mxu0 0
        %962 = vmatprep.subr.bf16.mxu0 0
        %963 = vmatpush1.bf16.msra.mxu0 0
        %964 = vmatprep.subr.bf16.mxu0 0
        %965 = vmatpush1.bf16.msra.mxu0 0
        %966 = vmatprep.subr.bf16.mxu0 0
        %967 = vmatpush1.bf16.msra.mxu0 0
        %968 = vmatprep.subr.bf16.mxu0 0
        %969 = vmatpush1.bf16.msra.mxu0 0
        %970 = vmatprep.subr.bf16.mxu0 0
        %971 = vmatpush1.bf16.msra.mxu0 0
        %972 = vmatprep.subr.bf16.mxu0 0
        %973 = vmatpush1.bf16.msra.mxu0 0
        %974 = vmatprep.subr.bf16.mxu0 0
        %975 = vmatpush1.bf16.msra.mxu0 0
        %976 = vmatprep.subr.bf16.mxu0 0
        %977 = vmatpush1.bf16.msra.mxu0 0
        %978 = vmatprep.subr.bf16.mxu0 0
        %979 = vmatpush1.bf16.msra.mxu0 0
        %980 = vmatprep.mubr.bf16.mxu0 0
        %981 = vmatmul.mubr.bf16.gmra.mrb[0].mxu0 %v943
        %v982 = vpop.f32.mrb[0].mxu0
        %v983 = vadd.f32 0.0, %v982
        %v984 = vpop.f32.mrb[0].mxu0
        %v985 = vpop.f32.mrb[0].mxu0
        %v986 = vpop.f32.mrb[0].mxu0
        %987 = vdwg.mxu0
        %988 = vrot.lane.b32.xlu0 %v395, 64
        %v989 = vpop.permute.xlu0 %988
        %v991 = vsel %vm794, %v885, 0
        %v994 = vsel %vm896, %v989, 0
        %996 = vmatprep.subr.bf16.mxu0 0
        %997 = vmatpush1.bf16.msra.mxu0 %v994
        %998 = vmatprep.subr.bf16.mxu0 0
        %999 = vmatpush1.bf16.msra.mxu0 0
        %1000 = vmatprep.subr.bf16.mxu0 0
        %1001 = vmatpush1.bf16.msra.mxu0 0
        %1002 = vmatprep.subr.bf16.mxu0 0
        %1003 = vmatpush1.bf16.msra.mxu0 0
        %1004 = vmatprep.subr.bf16.mxu0 0
        %1005 = vmatpush1.bf16.msra.mxu0 0
        %1006 = vmatprep.subr.bf16.mxu0 0
        %1007 = vmatpush1.bf16.msra.mxu0 0
        %1008 = vmatprep.subr.bf16.mxu0 0
        %1009 = vmatpush1.bf16.msra.mxu0 0
        %1010 = vmatprep.subr.bf16.mxu0 0
        %1011 = vmatpush1.bf16.msra.mxu0 0
        %1012 = vmatprep.subr.bf16.mxu0 0
        %1013 = vmatpush1.bf16.msra.mxu0 0
        %1014 = vmatprep.subr.bf16.mxu0 0
        %1015 = vmatpush1.bf16.msra.mxu0 0
        %1016 = vmatprep.subr.bf16.mxu0 0
        %1017 = vmatpush1.bf16.msra.mxu0 0
        %1018 = vmatprep.subr.bf16.mxu0 0
        %1019 = vmatpush1.bf16.msra.mxu0 0
        %1020 = vmatprep.subr.bf16.mxu0 0
        %1021 = vmatpush1.bf16.msra.mxu0 0
        %1022 = vmatprep.subr.bf16.mxu0 0
        %1023 = vmatpush1.bf16.msra.mxu0 0
        %1024 = vmatprep.subr.bf16.mxu0 0
        %1025 = vmatpush1.bf16.msra.mxu0 0
        %1026 = vmatprep.subr.bf16.mxu0 0
        %1027 = vmatpush1.bf16.msra.mxu0 0
        %1028 = vmatprep.mubr.bf16.mxu0 0
        %1029 = vmatmul.mubr.bf16.gmra.mrb[0].mxu0 %v991
        %v1030 = vpop.f32.mrb[0].mxu0
        %v1031 = vadd.f32 0.0, %v1030
        %v1032 = vpop.f32.mrb[0].mxu0
        %v1033 = vpop.f32.mrb[0].mxu0
        %v1034 = vpop.f32.mrb[0].mxu0
        %1035 = vdwg.mxu0
        %1036 = vrot.lane.b32.xlu0 %v396, 64
        %v1037 = vpop.permute.xlu0 %1036
        %v1039 = vsel %vm794, %v886, 0
        %v1042 = vsel %vm896, %v1037, 0
        %1044 = vmatprep.subr.bf16.mxu0 0
        %1045 = vmatpush1.bf16.msra.mxu0 %v1042
        %1046 = vmatprep.subr.bf16.mxu0 0
        %1047 = vmatpush1.bf16.msra.mxu0 0
        %1048 = vmatprep.subr.bf16.mxu0 0
        %1049 = vmatpush1.bf16.msra.mxu0 0
        %1050 = vmatprep.subr.bf16.mxu0 0
        %1051 = vmatpush1.bf16.msra.mxu0 0
        %1052 = vmatprep.subr.bf16.mxu0 0
        %1053 = vmatpush1.bf16.msra.mxu0 0
        %1054 = vmatprep.subr.bf16.mxu0 0
        %1055 = vmatpush1.bf16.msra.mxu0 0
        %1056 = vmatprep.subr.bf16.mxu0 0
        %1057 = vmatpush1.bf16.msra.mxu0 0
        %1058 = vmatprep.subr.bf16.mxu0 0
        %1059 = vmatpush1.bf16.msra.mxu0 0
        %1060 = vmatprep.subr.bf16.mxu0 0
        %1061 = vmatpush1.bf16.msra.mxu0 0
        %1062 = vmatprep.subr.bf16.mxu0 0
        %1063 = vmatpush1.bf16.msra.mxu0 0
        %1064 = vmatprep.subr.bf16.mxu0 0
        %1065 = vmatpush1.bf16.msra.mxu0 0
        %1066 = vmatprep.subr.bf16.mxu0 0
        %1067 = vmatpush1.bf16.msra.mxu0 0
        %1068 = vmatprep.subr.bf16.mxu0 0
        %1069 = vmatpush1.bf16.msra.mxu0 0
        %1070 = vmatprep.subr.bf16.mxu0 0
        %1071 = vmatpush1.bf16.msra.mxu0 0
        %1072 = vmatprep.subr.bf16.mxu0 0
        %1073 = vmatpush1.bf16.msra.mxu0 0
        %1074 = vmatprep.subr.bf16.mxu0 0
        %1075 = vmatpush1.bf16.msra.mxu0 0
        %1076 = vmatprep.mubr.bf16.mxu0 0
        %1077 = vmatmul.mubr.bf16.gmra.mrb[0].mxu0 %v1039
        %v1078 = vpop.f32.mrb[0].mxu0
        %v1079 = vadd.f32 0.0, %v1078
        %v1080 = vpop.f32.mrb[0].mxu0
        %v1081 = vpop.f32.mrb[0].mxu0
        %v1082 = vpop.f32.mrb[0].mxu0
        %1083 = vdwg.mxu0
        %1084 = vrot.lane.b32.xlu0 %v397, 64
        %v1085 = vpop.permute.xlu0 %1084
        %v1087 = vsel %vm794, %v887, 0
        %v1090 = vsel %vm896, %v1085, 0
        %1092 = vmatprep.subr.bf16.mxu0 0
        %1093 = vmatpush1.bf16.msra.mxu0 %v1090
        %1094 = vmatprep.subr.bf16.mxu0 0
        %1095 = vmatpush1.bf16.msra.mxu0 0
        %1096 = vmatprep.subr.bf16.mxu0 0
        %1097 = vmatpush1.bf16.msra.mxu0 0
        %1098 = vmatprep.subr.bf16.mxu0 0
        %1099 = vmatpush1.bf16.msra.mxu0 0
        %1100 = vmatprep.subr.bf16.mxu0 0
        %1101 = vmatpush1.bf16.msra.mxu0 0
        %1102 = vmatprep.subr.bf16.mxu0 0
        %1103 = vmatpush1.bf16.msra.mxu0 0
        %1104 = vmatprep.subr.bf16.mxu0 0
        %1105 = vmatpush1.bf16.msra.mxu0 0
        %1106 = vmatprep.subr.bf16.mxu0 0
        %1107 = vmatpush1.bf16.msra.mxu0 0
        %1108 = vmatprep.subr.bf16.mxu0 0
        %1109 = vmatpush1.bf16.msra.mxu0 0
        %1110 = vmatprep.subr.bf16.mxu0 0
        %1111 = vmatpush1.bf16.msra.mxu0 0
        %1112 = vmatprep.subr.bf16.mxu0 0
        %1113 = vmatpush1.bf16.msra.mxu0 0
        %1114 = vmatprep.subr.bf16.mxu0 0
        %1115 = vmatpush1.bf16.msra.mxu0 0
        %1116 = vmatprep.subr.bf16.mxu0 0
        %1117 = vmatpush1.bf16.msra.mxu0 0
        %1118 = vmatprep.subr.bf16.mxu0 0
        %1119 = vmatpush1.bf16.msra.mxu0 0
        %1120 = vmatprep.subr.bf16.mxu0 0
        %1121 = vmatpush1.bf16.msra.mxu0 0
        %1122 = vmatprep.subr.bf16.mxu0 0
        %1123 = vmatpush1.bf16.msra.mxu0 0
        %1124 = vmatprep.mubr.bf16.mxu0 0
        %1125 = vmatmul.mubr.bf16.gmra.mrb[0].mxu0 %v1087
        %v1126 = vpop.f32.mrb[0].mxu0
        %v1127 = vadd.f32 0.0, %v1126
        %v1128 = vpop.f32.mrb[0].mxu0
        %v1129 = vpop.f32.mrb[0].mxu0
        %v1130 = vpop.f32.mrb[0].mxu0
        %1131 = vdwg.mxu0
        %1132 = vrot.lane.b32.xlu0 %v398, 64
        %v1133 = vpop.permute.xlu0 %1132
        %v1135 = vsel %vm794, %v888, 0
        %v1138 = vsel %vm896, %v1133, 0
        %1140 = vmatprep.subr.bf16.mxu0 0
        %1141 = vmatpush1.bf16.msra.mxu0 %v1138
        %1142 = vmatprep.subr.bf16.mxu0 0
        %1143 = vmatpush1.bf16.msra.mxu0 0
        %1144 = vmatprep.subr.bf16.mxu0 0
        %1145 = vmatpush1.bf16.msra.mxu0 0
        %1146 = vmatprep.subr.bf16.mxu0 0
        %1147 = vmatpush1.bf16.msra.mxu0 0
        %1148 = vmatprep.subr.bf16.mxu0 0
        %1149 = vmatpush1.bf16.msra.mxu0 0
        %1150 = vmatprep.subr.bf16.mxu0 0
        %1151 = vmatpush1.bf16.msra.mxu0 0
        %1152 = vmatprep.subr.bf16.mxu0 0
        %1153 = vmatpush1.bf16.msra.mxu0 0
        %1154 = vmatprep.subr.bf16.mxu0 0
        %1155 = vmatpush1.bf16.msra.mxu0 0
        %1156 = vmatprep.subr.bf16.mxu0 0
        %1157 = vmatpush1.bf16.msra.mxu0 0
        %1158 = vmatprep.subr.bf16.mxu0 0
        %1159 = vmatpush1.bf16.msra.mxu0 0
        %1160 = vmatprep.subr.bf16.mxu0 0
        %1161 = vmatpush1.bf16.msra.mxu0 0
        %1162 = vmatprep.subr.bf16.mxu0 0
        %1163 = vmatpush1.bf16.msra.mxu0 0
        %1164 = vmatprep.subr.bf16.mxu0 0
        %1165 = vmatpush1.bf16.msra.mxu0 0
        %1166 = vmatprep.subr.bf16.mxu0 0
        %1167 = vmatpush1.bf16.msra.mxu0 0
        %1168 = vmatprep.subr.bf16.mxu0 0
        %1169 = vmatpush1.bf16.msra.mxu0 0
        %1170 = vmatprep.subr.bf16.mxu0 0
        %1171 = vmatpush1.bf16.msra.mxu0 0
        %1172 = vmatprep.mubr.bf16.mxu0 0
        %1173 = vmatmul.mubr.bf16.gmra.mrb[0].mxu0 %v1135
        %v1174 = vpop.f32.mrb[0].mxu0
        %v1175 = vadd.f32 0.0, %v1174
        %v1176 = vpop.f32.mrb[0].mxu0
        %v1177 = vpop.f32.mrb[0].mxu0
        %v1178 = vpop.f32.mrb[0].mxu0
        %1179 = vdwg.mxu0
        %1180 = vrot.lane.b32.xlu0 %v399, 64
        %v1181 = vpop.permute.xlu0 %1180
        %v1183 = vsel %vm794, %v889, 0
        %v1186 = vsel %vm896, %v1181, 0
        %1188 = vmatprep.subr.bf16.mxu0 0
        %1189 = vmatpush1.bf16.msra.mxu0 %v1186
        %1190 = vmatprep.subr.bf16.mxu0 0
        %1191 = vmatpush1.bf16.msra.mxu0 0
        %1192 = vmatprep.subr.bf16.mxu0 0
        %1193 = vmatpush1.bf16.msra.mxu0 0
        %1194 = vmatprep.subr.bf16.mxu0 0
        %1195 = vmatpush1.bf16.msra.mxu0 0
        %1196 = vmatprep.subr.bf16.mxu0 0
        %1197 = vmatpush1.bf16.msra.mxu0 0
        %1198 = vmatprep.subr.bf16.mxu0 0
        %1199 = vmatpush1.bf16.msra.mxu0 0
        %1200 = vmatprep.subr.bf16.mxu0 0
        %1201 = vmatpush1.bf16.msra.mxu0 0
        %1202 = vmatprep.subr.bf16.mxu0 0
        %1203 = vmatpush1.bf16.msra.mxu0 0
        %1204 = vmatprep.subr.bf16.mxu0 0
        %1205 = vmatpush1.bf16.msra.mxu0 0
        %1206 = vmatprep.subr.bf16.mxu0 0
        %1207 = vmatpush1.bf16.msra.mxu0 0
        %1208 = vmatprep.subr.bf16.mxu0 0
        %1209 = vmatpush1.bf16.msra.mxu0 0
        %1210 = vmatprep.subr.bf16.mxu0 0
        %1211 = vmatpush1.bf16.msra.mxu0 0
        %1212 = vmatprep.subr.bf16.mxu0 0
        %1213 = vmatpush1.bf16.msra.mxu0 0
        %1214 = vmatprep.subr.bf16.mxu0 0
        %1215 = vmatpush1.bf16.msra.mxu0 0
        %1216 = vmatprep.subr.bf16.mxu0 0
        %1217 = vmatpush1.bf16.msra.mxu0 0
        %1218 = vmatprep.subr.bf16.mxu0 0
        %1219 = vmatpush1.bf16.msra.mxu0 0
        %1220 = vmatprep.mubr.bf16.mxu0 0
        %1221 = vmatmul.mubr.bf16.gmra.mrb[0].mxu0 %v1183
        %v1222 = vpop.f32.mrb[0].mxu0
        %v1223 = vadd.f32 0.0, %v1222
        %v1224 = vpop.f32.mrb[0].mxu0
        %v1225 = vpop.f32.mrb[0].mxu0
        %v1226 = vpop.f32.mrb[0].mxu0
        %1227 = vdwg.mxu0
        %1228 = vrot.lane.b32.xlu0 %v400, 64
        %v1229 = vpop.permute.xlu0 %1228
        %v1231 = vsel %vm794, %v890, 0
        %v1234 = vsel %vm896, %v1229, 0
        %1236 = vmatprep.subr.bf16.mxu0 0
        %1237 = vmatpush1.bf16.msra.mxu0 %v1234
        %1238 = vmatprep.subr.bf16.mxu0 0
        %1239 = vmatpush1.bf16.msra.mxu0 0
        %1240 = vmatprep.subr.bf16.mxu0 0
        %1241 = vmatpush1.bf16.msra.mxu0 0
        %1242 = vmatprep.subr.bf16.mxu0 0
        %1243 = vmatpush1.bf16.msra.mxu0 0
        %1244 = vmatprep.subr.bf16.mxu0 0
        %1245 = vmatpush1.bf16.msra.mxu0 0
        %1246 = vmatprep.subr.bf16.mxu0 0
        %1247 = vmatpush1.bf16.msra.mxu0 0
        %1248 = vmatprep.subr.bf16.mxu0 0
        %1249 = vmatpush1.bf16.msra.mxu0 0
        %1250 = vmatprep.subr.bf16.mxu0 0
        %1251 = vmatpush1.bf16.msra.mxu0 0
        %1252 = vmatprep.subr.bf16.mxu0 0
        %1253 = vmatpush1.bf16.msra.mxu0 0
        %1254 = vmatprep.subr.bf16.mxu0 0
        %1255 = vmatpush1.bf16.msra.mxu0 0
        %1256 = vmatprep.subr.bf16.mxu0 0
        %1257 = vmatpush1.bf16.msra.mxu0 0
        %1258 = vmatprep.subr.bf16.mxu0 0
        %1259 = vmatpush1.bf16.msra.mxu0 0
        %1260 = vmatprep.subr.bf16.mxu0 0
        %1261 = vmatpush1.bf16.msra.mxu0 0
        %1262 = vmatprep.subr.bf16.mxu0 0
        %1263 = vmatpush1.bf16.msra.mxu0 0
        %1264 = vmatprep.subr.bf16.mxu0 0
        %1265 = vmatpush1.bf16.msra.mxu0 0
        %1266 = vmatprep.subr.bf16.mxu0 0
        %1267 = vmatpush1.bf16.msra.mxu0 0
        %1268 = vmatprep.mubr.bf16.mxu0 0
        %1269 = vmatmul.mubr.bf16.gmra.mrb[0].mxu0 %v1231
        %v1270 = vpop.f32.mrb[0].mxu0
        %v1271 = vadd.f32 0.0, %v1270
        %v1272 = vpop.f32.mrb[0].mxu0
        %v1273 = vpop.f32.mrb[0].mxu0
        %v1274 = vpop.f32.mrb[0].mxu0
        %1275 = vdwg.mxu0
        %1276 = vst.msk [vmem:[#allocation2] sm:$0xff] %vm404, %v935
        %1278 = vrot.lane.b32.xlu0 %v983, 4
        %v1279 = vpop.permute.xlu0 %1278
        %vm1281 = vcmask 64544
        %1282 = vst.msk [vmem:[#allocation2] sm:$0xff] %vm1281, %v1279
        %1284 = vrot.lane.b32.xlu0 %v1031, 8
        %v1285 = vpop.permute.xlu0 %1284
        %vm1287 = vcmask 97344
        %1288 = vst.msk [vmem:[#allocation2] sm:$0xff] %vm1287, %v1285
        %1290 = vrot.lane.b32.xlu0 %v1079, 12
        %v1291 = vpop.permute.xlu0 %1290
        %vm1293 = vcmask 130144
        %1294 = vst.msk [vmem:[#allocation2] sm:$0xff] %vm1293, %v1291
        %1296 = vrot.lane.b32.xlu0 %v1127, 16
        %v1297 = vpop.permute.xlu0 %1296
        %vm1299 = vcmask 162944
        %1300 = vst.msk [vmem:[#allocation2] sm:$0xff] %vm1299, %v1297
        %1302 = vrot.lane.b32.xlu0 %v1175, 20
        %v1303 = vpop.permute.xlu0 %1302
        %vm1305 = vcmask 195744
        %1306 = vst.msk [vmem:[#allocation2] sm:$0xff] %vm1305, %v1303
        %1308 = vrot.lane.b32.xlu0 %v1223, 24
        %v1309 = vpop.permute.xlu0 %1308
        %vm1311 = vcmask 228544
        %1312 = vst.msk [vmem:[#allocation2] sm:$0xff] %vm1311, %v1309
        %1314 = vrot.lane.b32.xlu0 %v1271, 28
        %v1315 = vpop.permute.xlu0 %1314
        %vm1317 = vcmask 261344
        %1318 = vst.msk [vmem:[#allocation2] sm:$0xff] %vm1317, %v1315
        %v1319 = vld [vmem:[#allocation2] sm:$0xff]
        %v1320 = vpack.c.bf16 %v1319, %v1319
        %v1325 = vunpack.c.l.b16 %v253
        %v1326 = vunpack.c.l.b16 %v254
        %v1327 = vunpack.c.l.b16 %v255
        %v1328 = vunpack.c.l.b16 %v256
        %v1329 = vpack.c.b16 %v1326, %v1325
        %v1330 = vpack.c.b16 %v1328, %v1327
        %1333 = vrot.lane.b32.xlu0 %v314, 32
        %v1334 = vpop.permute.xlu0 %1333
        %v1337 = vsel %vm281, %v1320, 0
        %1339 = vmatprep.subr.bf16.mxu0 0
        %1340 = vmatpush1.bf16.msra.mxu0 %v1329
        %1341 = vmatprep.subr.bf16.mxu0 0
        %1342 = vmatpush1.bf16.msra.mxu0 %v1330
        %1343 = vmatprep.subr.bf16.mxu0 0
        %1344 = vmatpush1.bf16.msra.mxu0 0
        %1345 = vmatprep.subr.bf16.mxu0 0
        %1346 = vmatpush1.bf16.msra.mxu0 0
        %1347 = vmatprep.subr.bf16.mxu0 0
        %1348 = vmatpush1.bf16.msra.mxu0 0
        %1349 = vmatprep.subr.bf16.mxu0 0
        %1350 = vmatpush1.bf16.msra.mxu0 0
        %1351 = vmatprep.subr.bf16.mxu0 0
        %1352 = vmatpush1.bf16.msra.mxu0 0
        %1353 = vmatprep.subr.bf16.mxu0 0
        %1354 = vmatpush1.bf16.msra.mxu0 0
        %1355 = vmatprep.subr.bf16.mxu0 0
        %1356 = vmatpush1.bf16.msra.mxu0 0
        %1357 = vmatprep.subr.bf16.mxu0 0
        %1358 = vmatpush1.bf16.msra.mxu0 0
        %1359 = vmatprep.subr.bf16.mxu0 0
        %1360 = vmatpush1.bf16.msra.mxu0 0
        %1361 = vmatprep.subr.bf16.mxu0 0
        %1362 = vmatpush1.bf16.msra.mxu0 0
        %1363 = vmatprep.subr.bf16.mxu0 0
        %1364 = vmatpush1.bf16.msra.mxu0 0
        %1365 = vmatprep.subr.bf16.mxu0 0
        %1366 = vmatpush1.bf16.msra.mxu0 0
        %1367 = vmatprep.subr.bf16.mxu0 0
        %1368 = vmatpush1.bf16.msra.mxu0 0
        %1369 = vmatprep.subr.bf16.mxu0 0
        %1370 = vmatpush1.bf16.msra.mxu0 0
        %1371 = vmatprep.mubr.bf16.mxu0 0
        %1372 = vmatmul.mubr.bf16.gmra.mrb[0].mxu0 %v1337
        %v1373 = vpop.f32.mrb[0].mxu0
        %v1374 = vadd.f32 %v1334, %v1373
        %v1375 = vpop.f32.mrb[0].mxu0
        %v1376 = vpop.f32.mrb[0].mxu0
        %v1377 = vpop.f32.mrb[0].mxu0
        %1378 = vdwg.mxu0
        %v1379 = vadd.f32 %v248, %v1374
        %v1380 = vsel %vm281, %v1379, 0.0
        %1381 = vadd.xlane.f32.xlu0 %v1380
        %v1382 = vpop.xlane.xlu0 %1381
        %v1383 = vmul.f32 %v1382, %v285
        %v1384 = vsub.f32 %v1379, %v1383
        %v1385 = vmul.f32 %v1384, %v1384
        %v1386 = vsel %vm281, %v1385, 0.0
        %1387 = vadd.xlane.f32.xlu0 %v1386
        %v1388 = vpop.xlane.xlu0 %1387
        %v1389 = vmul.f32 %v1388, %v285
        %v1390 = vadd.f32 %v1389, 1e-05
        %v1391 = vrsqrt.pop %v1390
        %v1392 = vmul.f32 %v1384, %v1391
        %1393 = vrot.lane.b32.xlu0 %v300, 32
        %v1394 = vpop.permute.xlu0 %1393
        %v1396 = vmul.f32 %v1392, %v1394
        %v1398 = vlaneseq
        %v1399 = vshrl.u32 %v1398, 7
        %v1400 = vsub.s32 0, %v1399
        %v1401 = vrot.slane %v280, %v1400
        %v1403 = vadd.f32 %v1396, %v1401
        %v1404 = vpack.c.bf16 %v1403, %v1403
        %v1406 = vlaneseq
        %v1407 = vshrl.u32 %v1406, 7
        %v1408 = vsub.s32 0, %v1407
        %v1409 = vrot.slane %v278, %v1408
        %v1415 = vunpack.c.l.b16 %v257
        %v1416 = vunpack.c.l.b16 %v258
        %v1417 = vunpack.c.l.b16 %v259
        %v1418 = vunpack.c.l.b16 %v260
        %v1419 = vpack.c.b16 %v1416, %v1415
        %v1420 = vpack.c.b16 %v1418, %v1417
        %v1424 = vsel %vm281, %v1404, 0
        %1426 = vmatprep.subr.bf16.mxu0 0
        %1427 = vmatpush1.bf16.msra.mxu0 %v1419
        %1428 = vmatprep.subr.bf16.mxu0 0
        %1429 = vmatpush1.bf16.msra.mxu0 %v1420
        %1430 = vmatprep.subr.bf16.mxu0 0
        %1431 = vmatpush1.bf16.msra.mxu0 0
        %1432 = vmatprep.subr.bf16.mxu0 0
        %1433 = vmatpush1.bf16.msra.mxu0 0
        %1434 = vmatprep.subr.bf16.mxu0 0
        %1435 = vmatpush1.bf16.msra.mxu0 0
        %1436 = vmatprep.subr.bf16.mxu0 0
        %1437 = vmatpush1.bf16.msra.mxu0 0
        %1438 = vmatprep.subr.bf16.mxu0 0
        %1439 = vmatpush1.bf16.msra.mxu0 0
        %1440 = vmatprep.subr.bf16.mxu0 0
        %1441 = vmatpush1.bf16.msra.mxu0 0
        %1442 = vmatprep.subr.bf16.mxu0 0
        %1443 = vmatpush1.bf16.msra.mxu0 0
        %1444 = vmatprep.subr.bf16.mxu0 0
        %1445 = vmatpush1.bf16.msra.mxu0 0
        %1446 = vmatprep.subr.bf16.mxu0 0
        %1447 = vmatpush1.bf16.msra.mxu0 0
        %1448 = vmatprep.subr.bf16.mxu0 0
        %1449 = vmatpush1.bf16.msra.mxu0 0
        %1450 = vmatprep.subr.bf16.mxu0 0
        %1451 = vmatpush1.bf16.msra.mxu0 0
        %1452 = vmatprep.subr.bf16.mxu0 0
        %1453 = vmatpush1.bf16.msra.mxu0 0
        %1454 = vmatprep.subr.bf16.mxu0 0
        %1455 = vmatpush1.bf16.msra.mxu0 0
        %1456 = vmatprep.subr.bf16.mxu0 0
        %1457 = vmatpush1.bf16.msra.mxu0 0
        %1458 = vmatprep.mubr.bf16.mxu0 0
        %1459 = vmatmul.mubr.bf16.gmra.mrb[0].mxu0 %v1424
        %v1460 = vpop.f32.mrb[0].mxu0
        %v1461 = vadd.f32 %v1409, %v1460
        %v1462 = vpop.f32.mrb[0].mxu0
        %v1463 = vpop.f32.mrb[0].mxu0
        %v1464 = vpop.f32.mrb[0].mxu0
        %1465 = vdwg.mxu0
        %v1466 = vmax.f32 %v1461, 0.0
        %v1467 = vpack.c.bf16 %v1466, %v1466
        %v1485 = vunpack.c.l.b16 %v261
        %v1486 = vunpack.c.l.b16 %v262
        %v1487 = vunpack.c.l.b16 %v263
        %v1488 = vunpack.c.l.b16 %v264
        %v1489 = vunpack.c.l.b16 %v265
        %v1490 = vunpack.c.l.b16 %v266
        %v1491 = vunpack.c.l.b16 %v267
        %v1492 = vunpack.c.l.b16 %v268
        %v1493 = vunpack.c.l.b16 %v269
        %v1494 = vunpack.c.l.b16 %v270
        %v1495 = vunpack.c.l.b16 %v271
        %v1496 = vunpack.c.l.b16 %v272
        %v1497 = vunpack.c.l.b16 %v273
        %v1498 = vunpack.c.l.b16 %v274
        %v1499 = vunpack.c.l.b16 %v275
        %v1500 = vunpack.c.l.b16 %v276
        %v1501 = vpack.c.b16 %v1486, %v1485
        %v1502 = vpack.c.b16 %v1488, %v1487
        %v1503 = vpack.c.b16 %v1490, %v1489
        %v1504 = vpack.c.b16 %v1492, %v1491
        %v1505 = vpack.c.b16 %v1494, %v1493
        %v1506 = vpack.c.b16 %v1496, %v1495
        %v1507 = vpack.c.b16 %v1498, %v1497
        %v1508 = vpack.c.b16 %v1500, %v1499
        %1517 = vmatprep.subr.bf16.mxu0 0
        %1518 = vmatpush1.bf16.msra.mxu0 %v1501
        %1519 = vmatprep.subr.bf16.mxu0 0
        %1520 = vmatpush1.bf16.msra.mxu0 %v1502
        %1521 = vmatprep.subr.bf16.mxu0 0
        %1522 = vmatpush1.bf16.msra.mxu0 %v1503
        %1523 = vmatprep.subr.bf16.mxu0 0
        %1524 = vmatpush1.bf16.msra.mxu0 %v1504
        %1525 = vmatprep.subr.bf16.mxu0 0
        %1526 = vmatpush1.bf16.msra.mxu0 %v1505
        %1527 = vmatprep.subr.bf16.mxu0 0
        %1528 = vmatpush1.bf16.msra.mxu0 %v1506
        %1529 = vmatprep.subr.bf16.mxu0 0
        %1530 = vmatpush1.bf16.msra.mxu0 %v1507
        %1531 = vmatprep.subr.bf16.mxu0 0
        %1532 = vmatpush1.bf16.msra.mxu0 %v1508
        %1533 = vmatprep.subr.bf16.mxu0 0
        %1534 = vmatpush1.bf16.msra.mxu0 0
        %1535 = vmatprep.subr.bf16.mxu0 0
        %1536 = vmatpush1.bf16.msra.mxu0 0
        %1537 = vmatprep.subr.bf16.mxu0 0
        %1538 = vmatpush1.bf16.msra.mxu0 0
        %1539 = vmatprep.subr.bf16.mxu0 0
        %1540 = vmatpush1.bf16.msra.mxu0 0
        %1541 = vmatprep.subr.bf16.mxu0 0
        %1542 = vmatpush1.bf16.msra.mxu0 0
        %1543 = vmatprep.subr.bf16.mxu0 0
        %1544 = vmatpush1.bf16.msra.mxu0 0
        %1545 = vmatprep.subr.bf16.mxu0 0
        %1546 = vmatpush1.bf16.msra.mxu0 0
        %1547 = vmatprep.subr.bf16.mxu0 0
        %1548 = vmatpush1.bf16.msra.mxu0 0
        %1549 = vmatprep.mubr.bf16.mxu0 0
        %1550 = vmatmul.mubr.bf16.gmra.mrb[0].mxu0 %v1467
        %v1551 = vpop.f32.mrb[0].mxu0
        %v1552 = vadd.f32 %v300, %v1551
        %v1553 = vpop.f32.mrb[0].mxu0
        %v1554 = vpop.f32.mrb[0].mxu0
        %v1555 = vpop.f32.mrb[0].mxu0
        %1556 = vdwg.mxu0
        %v1557 = vadd.f32 %v1379, %v1552
        %1558 = vst.msk [vmem:[%s242] sm:$0xff] %vm281, %v1557
        %s1559 = sand.u32 %s159, 1
        %s1560 = scalar_lea.sflag [#allocation4], %s1559
        %s1561 = sand.u32 %s159, 1
        %s1562 = smul.addr %s1561, 8
        %s1563 = scalar_lea.vmem [#allocation3], %s1562
        // Predicated region
        $region45: #{tpu_custom_call.1} parent=43 // pred_check
          %p1564 = pneg %p169
        $region46: #{tpu_custom_call.1} parent=43 // pred_check_branch
          %1566 = sbr.rel (%p1564) target = $region48
        $region47: #{tpu_custom_call.1} parent=43 // pred_region
          %s1568 = ssub.s32 128, 128
          %1569 = vsyncadd %s1560, %s1568
          %s1570 = smul.addr %s20, 128
          %s1571 = scalar_lea.hbm %s6, %s1570
          %s1573 = sshll.u32 %s1563, 4
          %s1574 = int_to_ptr.vmem [resolvable:$true] %s1573
          %1576 = dma.vmem_to_hbm [thread:$0]  %s1574, 128, %s1571, %s1560
        $region48: #{tpu_custom_call.1} parent=43 // pred_fallthru
          _
      $region44: #{tpu_custom_call.1} parent=5 // pred_fallthru
        _
      %p1577 = scmp.le.s32.totalorder 2, %s15
      // Predicated region
      $region49: #{tpu_custom_call.1} parent=5 // pred_check
        %p1578 = pneg %p1577
      $region50: #{tpu_custom_call.1} parent=5 // pred_check_branch
        %1580 = sbr.rel (%p1578) target = $region52
      $region51: #{tpu_custom_call.1} parent=5 // pred_region
        %s1581 = ssub.s32 %s15, 2
        // Predicated region
        $region53: #{tpu_custom_call.1} parent=51 // pred_check
          %p1582 = pneg %p175
        $region54: #{tpu_custom_call.1} parent=51 // pred_check_branch
          %1584 = sbr.rel (%p1582) target = $region56
        $region55: #{tpu_custom_call.1} parent=51 // pred_region
          %s1585 = sand.u32 %s160, 1
          %s1586 = scalar_lea.sflag [#allocation4], %s1585
          %s1587 = sand.u32 %s160, 1
          %s1588 = smul.addr %s1587, 8
          %s1589 = scalar_lea.vmem [#allocation3], %s1588
          %1590 = dma.done %s1586, 128
        $region56: #{tpu_custom_call.1} parent=51 // pred_fallthru
          _
      $region52: #{tpu_custom_call.1} parent=5 // pred_fallthru
        _
    $region6: #{tpu_custom_call.1} parent=1 // loop_footer
      %s19 = sadd.s32 1, %s15
    $region7: #{tpu_custom_call.1} parent=1 // loop_footer_branch
      %14 = sbr.rel target = $region3
    $region8: #{tpu_custom_call.1} parent=1 // loop_exit
      _
    %1591 = vsyncpa [#allocation4], 1
    %s1592 = scalar_lea.sflag [#allocation4], 1
    %1593 = vsyncpa %s1592, 1

// kernel: tpu_custom_call.1
$region0: #{tpu_custom_call.1}
  #allocation0 [shape = 'u32[]', space=smem, size = 0x4, offset = 0x4, fixed_abs, tag = 'smem constant byte address 0x4 - core index']
  #allocation1 [shape = 'u32[144,128]{1,0:T(1,128)}', space=vmem, size = 0x12000, scoped, tag = 'internal scratch']
  #allocation2 [shape = 'f32[8,32]{1,0:T(8,128)}', space=vmem, size = 0x1000, scoped, tag = 'scratch operand']
  %s0 = inlined_call_operand.vmem [shape: f32[16,32], index: 0, kind: input, shape index: {}]
  %s1 = inlined_call_operand.vmem [shape: bf16[32,96], index: 1, kind: input, shape index: {}]
  %s2 = inlined_call_operand.vmem [shape: bf16[32,32], index: 2, kind: input, shape index: {}]
  %s3 = inlined_call_operand.vmem [shape: bf16[32,128], index: 3, kind: input, shape index: {}]
  %s4 = inlined_call_operand.vmem [shape: bf16[128,32], index: 4, kind: input, shape index: {}]
  %s5 = inlined_call_operand.vmem [shape: f32[1,416], index: 5, kind: input, shape index: {}]
  %s6 = inlined_call_operand.hbm [shape: f32[16,32], index: 6, kind: output, shape index: {}]
  %s7 = sld [smem:[#allocation0]]
  $region57: #{tpu_custom_call.1} parent=0
    _
  %s9 = ssub.s32 1, %s7
  %s10 = scalar_select 0, %s9, %s7
  $region1: #{tpu_custom_call.1} parent=0
    #allocation3 [shape = 'u8[8192]{0}', space=vmem, size = 0x2000, scoped, tag = 'output window, operand 0']
    #allocation4 [shape = 's32[2]{0}', space=sflag, size = 0x8, scoped, tag = 'scoped memory for tpu_custom_call.1']
    %11 = vsyncpa [#allocation4], 0
    %s12 = scalar_lea.sflag [#allocation4], 1
    %13 = vsyncpa %s12, 0
    loop: start=0, step=1, limit=4
    $region2: #{tpu_custom_call.1} parent=1 // loop_pre_header
      _
    $region3: #{tpu_custom_call.1} parent=1 // loop_header
      %s15 = sphi 0, %s19
      %p16 = scmp.ge.s32.totalorder %s15, 4
      %s25 = sphi 0, %s27
      %s28 = sphi 0, %s25
      %s29 = sphi 0, %s28
      %s45 = sphi 0, %s29
      %s49 = sphi 0, %s49
      %s51 = sphi 0, %s49
      %s52 = sphi 0, %s51
      %s66 = sphi 0, %s52
      %s70 = sphi 0, %s70
      %s72 = sphi 0, %s70
      %s73 = sphi 0, %s72
      %s87 = sphi 0, %s73
      %s91 = sphi 0, %s91
      %s93 = sphi 0, %s91
      %s94 = sphi 0, %s93
      %s108 = sphi 0, %s94
      %s112 = sphi 0, %s112
      %s114 = sphi 0, %s112
      %s115 = sphi 0, %s114
      %s129 = sphi 0, %s115
      %s133 = sphi 0, %s133
      %s135 = sphi 0, %s133
      %s136 = sphi 0, %s135
      %s150 = sphi 0, %s136
      %s156 = sphi 0, %s158
      %s159 = sphi 0, %s156
      %s160 = sphi 0, %s159
      %s176 = sphi 0, %s160
    $region4: #{tpu_custom_call.1} parent=1 // loop_header_branch
      %18 = sbr.rel (%p16) target = $region8
    $region5: #{tpu_custom_call.1} parent=1 // loop_body
      %s20 = ssub.s32 %s15, 1
      %s21 = ssub.s32 %s15, 2
      %s22 = sadd.s32 %s15, 1
      %s23 = ssub.s32 %s15, %s22
      %p24 = scmp.eq.s32.totalorder %s23, 0
      %s26 = sadd.s32 %s25, 1
      %s27 = scalar_select %p24, %s25, %s26
      %p30 = pneg %p24
      %p31 = scmp.eq.s32.totalorder %s15, 1
      %p32 = por %p30, %p31
      %p33 = scmp.ne.s32.totalorder %s25, %s28
      %p34 = scmp.eq.s32.totalorder %s15, 0
      %p35 = por %p33, %p34
      %p36 = scmp.ne.s32.totalorder %s25, %s28
      %p37 = scmp.eq.s32.totalorder %s20, 1
      %p38 = por %p36, %p37
      %p39 = scmp.ne.s32.totalorder %s28, %s29
      %p40 = scmp.eq.s32.totalorder %s20, 0
      %p41 = por %p39, %p40
      %p42 = scmp.ne.s32.totalorder %s28, %s29
      %p43 = scmp.eq.s32.totalorder %s21, 1
      %p44 = por %p42, %p43
      %p46 = scmp.ne.s32.totalorder %s29, %s45
      %p47 = scmp.eq.s32.totalorder %s21, 0
      %p48 = por %p46, %p47
      %s50 = sadd.s32 %s49, 1
      %p53 = scmp.eq.s32.totalorder %s15, 1
      %p54 = scmp.ne.s32.totalorder %s49, %s51
      %p55 = scmp.eq.s32.totalorder %s15, 0
      %p56 = por %p54, %p55
      %p57 = scmp.ne.s32.totalorder %s49, %s51
      %p58 = scmp.eq.s32.totalorder %s20, 1
      %p59 = por %p57, %p58
      %p60 = scmp.ne.s32.totalorder %s51, %s52
      %p61 = scmp.eq.s32.totalorder %s20, 0
      %p62 = por %p60, %p61
      %p63 = scmp.ne.s32.totalorder %s51, %s52
      %p64 = scmp.eq.s32.totalorder %s21, 1
      %p65 = por %p63, %p64
      %p67 = scmp.ne.s32.totalorder %s52, %s66
      %p68 = scmp.eq.s32.totalorder %s21, 0
      %p69 = por %p67, %p68
      %s71 = sadd.s32 %s70, 1
      %p74 = scmp.eq.s32.totalorder %s15, 1
      %p75 = scmp.ne.s32.totalorder %s70, %s72
      %p76 = scmp.eq.s32.totalorder %s15, 0
      %p77 = por %p75, %p76
      %p78 = scmp.ne.s32.totalorder %s70, %s72
      %p79 = scmp.eq.s32.totalorder %s20, 1
      %p80 = por %p78, %p79
      %p81 = scmp.ne.s32.totalorder %s72, %s73
      %p82 = scmp.eq.s32.totalorder %s20, 0
      %p83 = por %p81, %p82
      %p84 = scmp.ne.s32.totalorder %s72, %s73
      %p85 = scmp.eq.s32.totalorder %s21, 1
      %p86 = por %p84, %p85
      %p88 = scmp.ne.s32.totalorder %s73, %s87
      %p89 = scmp.eq.s32.totalorder %s21, 0
      %p90 = por %p88, %p89
      %s92 = sadd.s32 %s91, 1
      %p95 = scmp.eq.s32.totalorder %s15, 1
      %p96 = scmp.ne.s32.totalorder %s91, %s93
      %p97 = scmp.eq.s32.totalorder %s15, 0
      %p98 = por %p96, %p97
      %p99 = scmp.ne.s32.totalorder %s91, %s93
      %p100 = scmp.eq.s32.totalorder %s20, 1
      %p101 = por %p99, %p100
      %p102 = scmp.ne.s32.totalorder %s93, %s94
      %p103 = scmp.eq.s32.totalorder %s20, 0
      %p104 = por %p102, %p103
      %p105 = scmp.ne.s32.totalorder %s93, %s94
      %p106 = scmp.eq.s32.totalorder %s21, 1
      %p107 = por %p105, %p106
      %p109 = scmp.ne.s32.totalorder %s94, %s108
      %p110 = scmp.eq.s32.totalorder %s21, 0
      %p111 = por %p109, %p110
      %s113 = sadd.s32 %s112, 1
      %p116 = scmp.eq.s32.totalorder %s15, 1
      %p117 = scmp.ne.s32.totalorder %s112, %s114
      %p118 = scmp.eq.s32.totalorder %s15, 0
      %p119 = por %p117, %p118
      %p120 = scmp.ne.s32.totalorder %s112, %s114
      %p121 = scmp.eq.s32.totalorder %s20, 1
      %p122 = por %p120, %p121
      %p123 = scmp.ne.s32.totalorder %s114, %s115
      %p124 = scmp.eq.s32.totalorder %s20, 0
      %p125 = por %p123, %p124
      %p126 = scmp.ne.s32.totalorder %s114, %s115
      %p127 = scmp.eq.s32.totalorder %s21, 1
      %p128 = por %p126, %p127
      %p130 = scmp.ne.s32.totalorder %s115, %s129
      %p131 = scmp.eq.s32.totalorder %s21, 0
      %p132 = por %p130, %p131
      %s134 = sadd.s32 %s133, 1
      %p137 = scmp.eq.s32.totalorder %s15, 1
      %p138 = scmp.ne.s32.totalorder %s133, %s135
      %p139 = scmp.eq.s32.totalorder %s15, 0
      %p140 = por %p138, %p139
      %p141 = scmp.ne.s32.totalorder %s133, %s135
      %p142 = scmp.eq.s32.totalorder %s20, 1
      %p143 = por %p141, %p142
      %p144 = scmp.ne.s32.totalorder %s135, %s136
      %p145 = scmp.eq.s32.totalorder %s20, 0
      %p146 = por %p144, %p145
      %p147 = scmp.ne.s32.totalorder %s135, %s136
      %p148 = scmp.eq.s32.totalorder %s21, 1
      %p149 = por %p147, %p148
      %p151 = scmp.ne.s32.totalorder %s136, %s150
      %p152 = scmp.eq.s32.totalorder %s21, 0
      %p153 = por %p151, %p152
      %s154 = ssub.s32 %s15, %s22
      %p155 = scmp.eq.s32.totalorder %s154, 0
      %s157 = sadd.s32 %s156, 1
      %s158 = scalar_select %p155, %s156, %s157
      %p161 = pneg %p155
      %p162 = scmp.eq.s32.totalorder %s15, 1
      %p163 = por %p161, %p162
      %p164 = scmp.ne.s32.totalorder %s156, %s159
      %p165 = scmp.eq.s32.totalorder %s15, 0
      %p166 = por %p164, %p165
      %p167 = scmp.ne.s32.totalorder %s156, %s159
      %p168 = scmp.eq.s32.totalorder %s20, 1
      %p169 = por %p167, %p168
      %p170 = scmp.ne.s32.totalorder %s159, %s160
      %p171 = scmp.eq.s32.totalorder %s20, 0
      %p172 = por %p170, %p171
      %p173 = scmp.ne.s32.totalorder %s159, %s160
      %p174 = scmp.eq.s32.totalorder %s21, 1
      %p175 = por %p173, %p174
      %p177 = scmp.ne.s32.totalorder %s160, %s176
      %p178 = scmp.eq.s32.totalorder %s21, 0
      %p179 = por %p177, %p178
      %p180 = scmp.le.s32.totalorder 1, %s15
      %p181 = scmp.lt.s32.totalorder %s15, 3
      %p182 = pnand %p180, %p181
      %p183 = pneg %p182
      // Predicated region
      $region9: #{tpu_custom_call.1} parent=5 // pred_check
        _
      $region10: #{tpu_custom_call.1} parent=5 // pred_check_branch
        %185 = sbr.rel (%p182) target = $region12
      $region11: #{tpu_custom_call.1} parent=5 // pred_region
        %s186 = ssub.s32 %s15, 1
        // Predicated region
        $region13: #{tpu_custom_call.1} parent=11 // pred_check
          %p187 = pneg %p62
        $region14: #{tpu_custom_call.1} parent=11 // pred_check_branch
          %189 = sbr.rel (%p187) target = $region16
        $region15: #{tpu_custom_call.1} parent=11 // pred_region
          _
        $region16: #{tpu_custom_call.1} parent=11 // pred_fallthru
          _
        // Predicated region
        $region17: #{tpu_custom_call.1} parent=11 // pred_check
          %p190 = pneg %p83
        $region18: #{tpu_custom_call.1} parent=11 // pred_check_branch
          %192 = sbr.rel (%p190) target = $region20
        $region19: #{tpu_custom_call.1} parent=11 // pred_region
          _
        $region20: #{tpu_custom_call.1} parent=11 // pred_fallthru
          _
        // Predicated region
        $region21: #{tpu_custom_call.1} parent=11 // pred_check
          %p193 = pneg %p104
        $region22: #{tpu_custom_call.1} parent=11 // pred_check_branch
          %195 = sbr.rel (%p193) target = $region24
        $region23: #{tpu_custom_call.1} parent=11 // pred_region
          _
        $region24: #{tpu_custom_call.1} parent=11 // pred_fallthru
          _
        // Predicated region
        $region25: #{tpu_custom_call.1} parent=11 // pred_check
          %p196 = pneg %p125
        $region26: #{tpu_custom_call.1} parent=11 // pred_check_branch
          %198 = sbr.rel (%p196) target = $region28
        $region27: #{tpu_custom_call.1} parent=11 // pred_region
          _
        $region28: #{tpu_custom_call.1} parent=11 // pred_fallthru
          _
        // Predicated region
        $region29: #{tpu_custom_call.1} parent=11 // pred_check
          %p199 = pneg %p146
        $region30: #{tpu_custom_call.1} parent=11 // pred_check_branch
          %201 = sbr.rel (%p199) target = $region32
        $region31: #{tpu_custom_call.1} parent=11 // pred_region
          _
        $region32: #{tpu_custom_call.1} parent=11 // pred_fallthru
          _
      $region12: #{tpu_custom_call.1} parent=5 // pred_fallthru
        _
      %p202 = scmp.lt.s32.totalorder %s15, 2
      // Predicated region
      $region33: #{tpu_custom_call.1} parent=5 // pred_check
        %p203 = pneg %p202
      $region34: #{tpu_custom_call.1} parent=5 // pred_check_branch
        %205 = sbr.rel (%p203) target = $region36
      $region35: #{tpu_custom_call.1} parent=5 // pred_region
        // Predicated region
        $region37: #{tpu_custom_call.1} parent=35 // pred_check
          %p206 = pneg %p35
        $region38: #{tpu_custom_call.1} parent=35 // pred_check_branch
          %208 = sbr.rel (%p206) target = $region40
        $region39: #{tpu_custom_call.1} parent=35 // pred_region
          %p209 = scmp.lt.s32.totalorder %s15, 1
          %s210 = scalar_select %p209, %s15, 1
          %s211 = smul.addr %s210, 8
          %s212 = scalar_lea.vmem %s0, %s211
        $region40: #{tpu_custom_call.1} parent=35 // pred_fallthru
          _
      $region36: #{tpu_custom_call.1} parent=5 // pred_fallthru
        _
      %p213 = scmp.le.s32.totalorder 1, %s15
      %p214 = scmp.lt.s32.totalorder %s15, 3
      %p215 = pnand %p213, %p214
      %p216 = pneg %p215
      // Predicated region
      $region41: #{tpu_custom_call.1} parent=5 // pred_check
        _
      $region42: #{tpu_custom_call.1} parent=5 // pred_check_branch
        %218 = sbr.rel (%p215) target = $region44
      $region43: #{tpu_custom_call.1} parent=5 // pred_region
        %s219 = ssub.s32 %s15, 1
        %p220 = scmp.lt.s32.totalorder %s20, 1
        %s221 = scalar_select %p220, %s20, 1
        %s222 = smul.addr %s221, 8
        %s223 = scalar_lea.vmem %s0, %s222
        %p224 = pneg %p41
        %p225 = pneg %p38
        %p226 = pneg %p62
        %p227 = pneg %p59
        %p228 = pneg %p83
        %p229 = pneg %p80
        %p230 = pneg %p104
        %p231 = pneg %p101
        %p232 = pneg %p125
        %p233 = pneg %p122
        %p234 = pneg %p146
        %p235 = pneg %p143
        %p236 = pneg %p172
        %p237 = pneg %p169
        %s238 = sand.u32 %s159, 1
        %s239 = scalar_lea.sflag [#allocation4], %s238
        %s240 = sand.u32 %s159, 1
        %s241 = smul.addr %s240, 8
        %s242 = scalar_lea.vmem [#allocation3], %s241
        %p243 = scmp.lt.s32.totalorder %s20, 1
        %s244 = scalar_select %p243, %s20, 1
        %s245 = smul.addr %s244, 8
        %s246 = scalar_lea.vmem %s0, %s245
        %v248 = vld [vmem:[%s246] sm:$0xff]
        %v249 = vld [vmem:[%s1] sm:$0xf]
        %v250 = vld [vmem:[%s1 + $0x4] sm:$0xf]
        %v251 = vld [vmem:[%s1 + $0x8] sm:$0xf]
        %v252 = vld [vmem:[%s1 + $0xc] sm:$0xf]
        %v253 = vld [vmem:[%s2] sm:$0xf]
        %v254 = vld [vmem:[%s2 + $0x4] sm:$0xf]
        %v255 = vld [vmem:[%s2 + $0x8] sm:$0xf]
        %v256 = vld [vmem:[%s2 + $0xc] sm:$0xf]
        %v257 = vld [vmem:[%s3] sm:$0xf]
        %v258 = vld [vmem:[%s3 + $0x4] sm:$0xf]
        %v259 = vld [vmem:[%s3 + $0x8] sm:$0xf]
        %v260 = vld [vmem:[%s3 + $0xc] sm:$0xf]
        %v261 = vld [vmem:[%s4] sm:$0xf]
        %v262 = vld [vmem:[%s4 + $0x4] sm:$0xf]
        %v263 = vld [vmem:[%s4 + $0x8] sm:$0xf]
        %v264 = vld [vmem:[%s4 + $0xc] sm:$0xf]
        %v265 = vld [vmem:[%s4 + $0x10] sm:$0xf]
        %v266 = vld [vmem:[%s4 + $0x14] sm:$0xf]
        %v267 = vld [vmem:[%s4 + $0x18] sm:$0xf]
        %v268 = vld [vmem:[%s4 + $0x1c] sm:$0xf]
        %v269 = vld [vmem:[%s4 + $0x20] sm:$0xf]
        %v270 = vld [vmem:[%s4 + $0x24] sm:$0xf]
        %v271 = vld [vmem:[%s4 + $0x28] sm:$0xf]
        %v272 = vld [vmem:[%s4 + $0x2c] sm:$0xf]
        %v273 = vld [vmem:[%s4 + $0x30] sm:$0xf]
        %v274 = vld [vmem:[%s4 + $0x34] sm:$0xf]
        %v275 = vld [vmem:[%s4 + $0x38] sm:$0xf]
        %v276 = vld [vmem:[%s4 + $0x3c] sm:$0xf]
        %v277 = vld [vmem:[%s5] sm:$0x1]
        %v278 = vld [vmem:[%s5 + $0x1] sm:$0x1]
        %v279 = vld [vmem:[%s5 + $0x2] sm:$0x1]
        %v280 = vld [vmem:[%s5 + $0x3] sm:$0x1]
        %vm281 = vcmask 261120
        %v282 = vsel %vm281, %v248, 0.0
        %283 = vadd.xlane.f32.xlu0 %v282
        %v284 = vpop.xlane.xlu0 %283
        %v285 = vrcp.pop 32.0
        %v286 = vmul.f32 %v284, %v285
        %v287 = vsub.f32 %v248, %v286
        %v288 = vmul.f32 %v287, %v287
        %v289 = vsel %vm281, %v288, 0.0
        %290 = vadd.xlane.f32.xlu0 %v289
        %v291 = vpop.xlane.xlu0 %290
        %v292 = vmul.f32 %v291, %v285
        %v293 = vadd.f32 %v292, 1e-05
        %v294 = vrsqrt.pop %v293
        %v295 = vmul.f32 %v287, %v294
        %v297 = vlaneseq
        %v298 = vshrl.u32 %v297, 7
        %v299 = vsub.s32 0, %v298
        %v300 = vrot.slane %v279, %v299
        %301 = vrot.lane.b32.xlu0 %v300, 96
        %v302 = vpop.permute.xlu0 %301
        %v304 = vmul.f32 %v295, %v302
        %305 = vrot.lane.b32.xlu0 %v300, 64
        %v306 = vpop.permute.xlu0 %305
        %v308 = vadd.f32 %v304, %v306
        %v309 = vpack.c.bf16 %v308, %v308
        %v311 = vlaneseq
        %v312 = vshrl.u32 %v311, 7
        %v313 = vsub.s32 0, %v312
        %v314 = vrot.slane %v277, %v313
        %v320 = vunpack.c.l.b16 %v249
        %v321 = vunpack.c.l.b16 %v250
        %v322 = vunpack.c.l.b16 %v251
        %v323 = vunpack.c.l.b16 %v252
        %v324 = vpack.c.b16 %v321, %v320
        %v325 = vpack.c.b16 %v323, %v322
        %v329 = vsel %vm281, %v309, 0
        %331 = vmatprep.subr.bf16.mxu0 0
        %332 = vmatpush1.bf16.msra.mxu0 %v324
        %333 = vmatprep.subr.bf16.mxu0 0
        %334 = vmatpush1.bf16.msra.mxu0 %v325
        %335 = vmatprep.subr.bf16.mxu0 0
        %336 = vmatpush1.bf16.msra.mxu0 0
        %337 = vmatprep.subr.bf16.mxu0 0
        %338 = vmatpush1.bf16.msra.mxu0 0
        %339 = vmatprep.subr.bf16.mxu0 0
        %340 = vmatpush1.bf16.msra.mxu0 0
        %341 = vmatprep.subr.bf16.mxu0 0
        %342 = vmatpush1.bf16.msra.mxu0 0
        %343 = vmatprep.subr.bf16.mxu0 0
        %344 = vmatpush1.bf16.msra.mxu0 0
        %345 = vmatprep.subr.bf16.mxu0 0
        %346 = vmatpush1.bf16.msra.mxu0 0
        %347 = vmatprep.subr.bf16.mxu0 0
        %348 = vmatpush1.bf16.msra.mxu0 0
        %349 = vmatprep.subr.bf16.mxu0 0
        %350 = vmatpush1.bf16.msra.mxu0 0
        %351 = vmatprep.subr.bf16.mxu0 0
        %352 = vmatpush1.bf16.msra.mxu0 0
        %353 = vmatprep.subr.bf16.mxu0 0
        %354 = vmatpush1.bf16.msra.mxu0 0
        %355 = vmatprep.subr.bf16.mxu0 0
        %356 = vmatpush1.bf16.msra.mxu0 0
        %357 = vmatprep.subr.bf16.mxu0 0
        %358 = vmatpush1.bf16.msra.mxu0 0
        %359 = vmatprep.subr.bf16.mxu0 0
        %360 = vmatpush1.bf16.msra.mxu0 0
        %361 = vmatprep.subr.bf16.mxu0 0
        %362 = vmatpush1.bf16.msra.mxu0 0
        %363 = vmatprep.mubr.bf16.mxu0 0
        %364 = vmatmul.mubr.bf16.gmra.mrb[0].mxu0 %v329
        %v365 = vpop.f32.mrb[0].mxu0
        %v366 = vadd.f32 %v314, %v365
        %v367 = vpop.f32.mrb[0].mxu0
        %v368 = vpop.f32.mrb[0].mxu0
        %v369 = vpop.f32.mrb[0].mxu0
        %370 = vdwg.mxu0
        %372 = vrot.lane.b32.xlu0 %v366, 124
        %v373 = vpop.permute.xlu0 %372
        %375 = vrot.lane.b32.xlu0 %v366, 120
        %v376 = vpop.permute.xlu0 %375
        %378 = vrot.lane.b32.xlu0 %v366, 116
        %v379 = vpop.permute.xlu0 %378
        %381 = vrot.lane.b32.xlu0 %v366, 112
        %v382 = vpop.permute.xlu0 %381
        %384 = vrot.lane.b32.xlu0 %v366, 108
        %v385 = vpop.permute.xlu0 %384
        %387 = vrot.lane.b32.xlu0 %v366, 104
        %v388 = vpop.permute.xlu0 %387
        %390 = vrot.lane.b32.xlu0 %v366, 100
        %v391 = vpop.permute.xlu0 %390
        %v393 = vpack.c.bf16 %v366, %v366
        %v394 = vpack.c.bf16 %v373, %v373
        %v395 = vpack.c.bf16 %v376, %v376
        %v396 = vpack.c.bf16 %v379, %v379
        %v397 = vpack.c.bf16 %v382, %v382
        %v398 = vpack.c.bf16 %v385, %v385
        %v399 = vpack.c.bf16 %v388, %v388
        %v400 = vpack.c.bf16 %v391, %v391
        %402 = vrot.lane.b32.xlu0 %v393, 96
        %v403 = vpop.permute.xlu0 %402
        %vm404 = vcmask 31744
        %v406 = vsel %vm404, %v393, 0
        %v409 = vsel %vm404, %v403, 0
        %411 = vmatprep.subr.bf16.mxu0 0
        %412 = vmatpush1.bf16.xpose.msra.mxu0 %v409
        %413 = vmatprep.subr.bf16.mxu0 0
        %414 = vmatpush1.bf16.xpose.msra.mxu0 0
        %415 = vmatprep.subr.bf16.mxu0 0
        %416 = vmatpush1.bf16.xpose.msra.mxu0 0
        %417 = vmatprep.subr.bf16.mxu0 0
        %418 = vmatpush1.bf16.xpose.msra.mxu0 0
        %419 = vmatprep.subr.bf16.mxu0 0
        %420 = vmatpush1.bf16.xpose.msra.mxu0 0
        %421 = vmatprep.subr.bf16.mxu0 0
        %422 = vmatpush1.bf16.xpose.msra.mxu0 0
        %423 = vmatprep.subr.bf16.mxu0 0
        %424 = vmatpush1.bf16.xpose.msra.mxu0 0
        %425 = vmatprep.subr.bf16.mxu0 0
        %426 = vmatpush1.bf16.xpose.msra.mxu0 0
        %427 = vmatprep.subr.bf16.mxu0 0
        %428 = vmatpush1.bf16.xpose.msra.mxu0 0
        %429 = vmatprep.subr.bf16.mxu0 0
        %430 = vmatpush1.bf16.xpose.msra.mxu0 0
        %431 = vmatprep.subr.bf16.mxu0 0
        %432 = vmatpush1.bf16.xpose.msra.mxu0 0
        %433 = vmatprep.subr.bf16.mxu0 0
        %434 = vmatpush1.bf16.xpose.msra.mxu0 0
        %435 = vmatprep.subr.bf16.mxu0 0
        %436 = vmatpush1.bf16.xpose.msra.mxu0 0
        %437 = vmatprep.subr.bf16.mxu0 0
        %438 = vmatpush1.bf16.xpose.msra.mxu0 0
        %439 = vmatprep.subr.bf16.mxu0 0
        %440 = vmatpush1.bf16.xpose.msra.mxu0 0
        %441 = vmatprep.subr.bf16.mxu0 0
        %442 = vmatpush1.bf16.xpose.msra.mxu0 0
        %443 = vmatprep.mubr.bf16.mxu0 0
        %444 = vmatmul.mubr.bf16.gmra.mrb[0].mxu0 %v406
        %v445 = vpop.f32.mrb[0].mxu0
        %v446 = vadd.f32 0.0, %v445
        %v447 = vpop.f32.mrb[0].mxu0
        %v448 = vpop.f32.mrb[0].mxu0
        %v449 = vpop.f32.mrb[0].mxu0
        %450 = vdwg.mxu0
        %452 = vrot.lane.b32.xlu0 %v394, 96
        %v453 = vpop.permute.xlu0 %452
        %v455 = vsel %vm404, %v394, 0
        %v458 = vsel %vm404, %v453, 0
        %460 = vmatprep.subr.bf16.mxu0 0
        %461 = vmatpush1.bf16.xpose.msra.mxu0 %v458
        %462 = vmatprep.subr.bf16.mxu0 0
        %463 = vmatpush1.bf16.xpose.msra.mxu0 0
        %464 = vmatprep.subr.bf16.mxu0 0
        %465 = vmatpush1.bf16.xpose.msra.mxu0 0
        %466 = vmatprep.subr.bf16.mxu0 0
        %467 = vmatpush1.bf16.xpose.msra.mxu0 0
        %468 = vmatprep.subr.bf16.mxu0 0
        %469 = vmatpush1.bf16.xpose.msra.mxu0 0
        %470 = vmatprep.subr.bf16.mxu0 0
        %471 = vmatpush1.bf16.xpose.msra.mxu0 0
        %472 = vmatprep.subr.bf16.mxu0 0
        %473 = vmatpush1.bf16.xpose.msra.mxu0 0
        %474 = vmatprep.subr.bf16.mxu0 0
        %475 = vmatpush1.bf16.xpose.msra.mxu0 0
        %476 = vmatprep.subr.bf16.mxu0 0
        %477 = vmatpush1.bf16.xpose.msra.mxu0 0
        %478 = vmatprep.subr.bf16.mxu0 0
        %479 = vmatpush1.bf16.xpose.msra.mxu0 0
        %480 = vmatprep.subr.bf16.mxu0 0
        %481 = vmatpush1.bf16.xpose.msra.mxu0 0
        %482 = vmatprep.subr.bf16.mxu0 0
        %483 = vmatpush1.bf16.xpose.msra.mxu0 0
        %484 = vmatprep.subr.bf16.mxu0 0
        %485 = vmatpush1.bf16.xpose.msra.mxu0 0
        %486 = vmatprep.subr.bf16.mxu0 0
        %487 = vmatpush1.bf16.xpose.msra.mxu0 0
        %488 = vmatprep.subr.bf16.mxu0 0
        %489 = vmatpush1.bf16.xpose.msra.mxu0 0
        %490 = vmatprep.subr.bf16.mxu0 0
        %491 = vmatpush1.bf16.xpose.msra.mxu0 0
        %492 = vmatprep.mubr.bf16.mxu0 0
        %493 = vmatmul.mubr.bf16.gmra.mrb[0].mxu0 %v455
        %v494 = vpop.f32.mrb[0].mxu0
        %v495 = vadd.f32 0.0, %v494
        %v496 = vpop.f32.mrb[0].mxu0
        %v497 = vpop.f32.mrb[0].mxu0
        %v498 = vpop.f32.mrb[0].mxu0
        %499 = vdwg.mxu0
        %501 = vrot.lane.b32.xlu0 %v395, 96
        %v502 = vpop.permute.xlu0 %501
        %v504 = vsel %vm404, %v395, 0
        %v507 = vsel %vm404, %v502, 0
        %509 = vmatprep.subr.bf16.mxu0 0
        %510 = vmatpush1.bf16.xpose.msra.mxu0 %v507
        %511 = vmatprep.subr.bf16.mxu0 0
        %512 = vmatpush1.bf16.xpose.msra.mxu0 0
        %513 = vmatprep.subr.bf16.mxu0 0
        %514 = vmatpush1.bf16.xpose.msra.mxu0 0
        %515 = vmatprep.subr.bf16.mxu0 0
        %516 = vmatpush1.bf16.xpose.msra.mxu0 0
        %517 = vmatprep.subr.bf16.mxu0 0
        %518 = vmatpush1.bf16.xpose.msra.mxu0 0
        %519 = vmatprep.subr.bf16.mxu0 0
        %520 = vmatpush1.bf16.xpose.msra.mxu0 0
        %521 = vmatprep.subr.bf16.mxu0 0
        %522 = vmatpush1.bf16.xpose.msra.mxu0 0
        %523 = vmatprep.subr.bf16.mxu0 0
        %524 = vmatpush1.bf16.xpose.msra.mxu0 0
        %525 = vmatprep.subr.bf16.mxu0 0
        %526 = vmatpush1.bf16.xpose.msra.mxu0 0
        %527 = vmatprep.subr.bf16.mxu0 0
        %528 = vmatpush1.bf16.xpose.msra.mxu0 0
        %529 = vmatprep.subr.bf16.mxu0 0
        %530 = vmatpush1.bf16.xpose.msra.mxu0 0
        %531 = vmatprep.subr.bf16.mxu0 0
        %532 = vmatpush1.bf16.xpose.msra.mxu0 0
        %533 = vmatprep.subr.bf16.mxu0 0
        %534 = vmatpush1.bf16.xpose.msra.mxu0 0
        %535 = vmatprep.subr.bf16.mxu0 0
        %536 = vmatpush1.bf16.xpose.msra.mxu0 0
        %537 = vmatprep.subr.bf16.mxu0 0
        %538 = vmatpush1.bf16.xpose.msra.mxu0 0
        %539 = vmatprep.subr.bf16.mxu0 0
        %540 = vmatpush1.bf16.xpose.msra.mxu0 0
        %541 = vmatprep.mubr.bf16.mxu0 0
        %542 = vmatmul.mubr.bf16.gmra.mrb[0].mxu0 %v504
        %v543 = vpop.f32.mrb[0].mxu0
        %v544 = vadd.f32 0.0, %v543
        %v545 = vpop.f32.mrb[0].mxu0
        %v546 = vpop.f32.mrb[0].mxu0
        %v547 = vpop.f32.mrb[0].mxu0
        %548 = vdwg.mxu0
        %550 = vrot.lane.b32.xlu0 %v396, 96
        %v551 = vpop.permute.xlu0 %550
        %v553 = vsel %vm404, %v396, 0
        %v556 = vsel %vm404, %v551, 0
        %558 = vmatprep.subr.bf16.mxu0 0
        %559 = vmatpush1.bf16.xpose.msra.mxu0 %v556
        %560 = vmatprep.subr.bf16.mxu0 0
        %561 = vmatpush1.bf16.xpose.msra.mxu0 0
        %562 = vmatprep.subr.bf16.mxu0 0
        %563 = vmatpush1.bf16.xpose.msra.mxu0 0
        %564 = vmatprep.subr.bf16.mxu0 0
        %565 = vmatpush1.bf16.xpose.msra.mxu0 0
        %566 = vmatprep.subr.bf16.mxu0 0
        %567 = vmatpush1.bf16.xpose.msra.mxu0 0
        %568 = vmatprep.subr.bf16.mxu0 0
        %569 = vmatpush1.bf16.xpose.msra.mxu0 0
        %570 = vmatprep.subr.bf16.mxu0 0
        %571 = vmatpush1.bf16.xpose.msra.mxu0 0
        %572 = vmatprep.subr.bf16.mxu0 0
        %573 = vmatpush1.bf16.xpose.msra.mxu0 0
        %574 = vmatprep.subr.bf16.mxu0 0
        %575 = vmatpush1.bf16.xpose.msra.mxu0 0
        %576 = vmatprep.subr.bf16.mxu0 0
        %577 = vmatpush1.bf16.xpose.msra.mxu0 0
        %578 = vmatprep.subr.bf16.mxu0 0
        %579 = vmatpush1.bf16.xpose.msra.mxu0 0
        %580 = vmatprep.subr.bf16.mxu0 0
        %581 = vmatpush1.bf16.xpose.msra.mxu0 0
        %582 = vmatprep.subr.bf16.mxu0 0
        %583 = vmatpush1.bf16.xpose.msra.mxu0 0
        %584 = vmatprep.subr.bf16.mxu0 0
        %585 = vmatpush1.bf16.xpose.msra.mxu0 0
        %586 = vmatprep.subr.bf16.mxu0 0
        %587 = vmatpush1.bf16.xpose.msra.mxu0 0
        %588 = vmatprep.subr.bf16.mxu0 0
        %589 = vmatpush1.bf16.xpose.msra.mxu0 0
        %590 = vmatprep.mubr.bf16.mxu0 0
        %591 = vmatmul.mubr.bf16.gmra.mrb[0].mxu0 %v553
        %v592 = vpop.f32.mrb[0].mxu0
        %v593 = vadd.f32 0.0, %v592
        %v594 = vpop.f32.mrb[0].mxu0
        %v595 = vpop.f32.mrb[0].mxu0
        %v596 = vpop.f32.mrb[0].mxu0
        %597 = vdwg.mxu0
        %599 = vrot.lane.b32.xlu0 %v397, 96
        %v600 = vpop.permute.xlu0 %599
        %v602 = vsel %vm404, %v397, 0
        %v605 = vsel %vm404, %v600, 0
        %607 = vmatprep.subr.bf16.mxu0 0
        %608 = vmatpush1.bf16.xpose.msra.mxu0 %v605
        %609 = vmatprep.subr.bf16.mxu0 0
        %610 = vmatpush1.bf16.xpose.msra.mxu0 0
        %611 = vmatprep.subr.bf16.mxu0 0
        %612 = vmatpush1.bf16.xpose.msra.mxu0 0
        %613 = vmatprep.subr.bf16.mxu0 0
        %614 = vmatpush1.bf16.xpose.msra.mxu0 0
        %615 = vmatprep.subr.bf16.mxu0 0
        %616 = vmatpush1.bf16.xpose.msra.mxu0 0
        %617 = vmatprep.subr.bf16.mxu0 0
        %618 = vmatpush1.bf16.xpose.msra.mxu0 0
        %619 = vmatprep.subr.bf16.mxu0 0
        %620 = vmatpush1.bf16.xpose.msra.mxu0 0
        %621 = vmatprep.subr.bf16.mxu0 0
        %622 = vmatpush1.bf16.xpose.msra.mxu0 0
        %623 = vmatprep.subr.bf16.mxu0 0
        %624 = vmatpush1.bf16.xpose.msra.mxu0 0
        %625 = vmatprep.subr.bf16.mxu0 0
        %626 = vmatpush1.bf16.xpose.msra.mxu0 0
        %627 = vmatprep.subr.bf16.mxu0 0
        %628 = vmatpush1.bf16.xpose.msra.mxu0 0
        %629 = vmatprep.subr.bf16.mxu0 0
        %630 = vmatpush1.bf16.xpose.msra.mxu0 0
        %631 = vmatprep.subr.bf16.mxu0 0
        %632 = vmatpush1.bf16.xpose.msra.mxu0 0
        %633 = vmatprep.subr.bf16.mxu0 0
        %634 = vmatpush1.bf16.xpose.msra.mxu0 0
        %635 = vmatprep.subr.bf16.mxu0 0
        %636 = vmatpush1.bf16.xpose.msra.mxu0 0
        %637 = vmatprep.subr.bf16.mxu0 0
        %638 = vmatpush1.bf16.xpose.msra.mxu0 0
        %639 = vmatprep.mubr.bf16.mxu0 0
        %640 = vmatmul.mubr.bf16.gmra.mrb[0].mxu0 %v602
        %v641 = vpop.f32.mrb[0].mxu0
        %v642 = vadd.f32 0.0, %v641
        %v643 = vpop.f32.mrb[0].mxu0
        %v644 = vpop.f32.mrb[0].mxu0
        %v645 = vpop.f32.mrb[0].mxu0
        %646 = vdwg.mxu0
        %648 = vrot.lane.b32.xlu0 %v398, 96
        %v649 = vpop.permute.xlu0 %648
        %v651 = vsel %vm404, %v398, 0
        %v654 = vsel %vm404, %v649, 0
        %656 = vmatprep.subr.bf16.mxu0 0
        %657 = vmatpush1.bf16.xpose.msra.mxu0 %v654
        %658 = vmatprep.subr.bf16.mxu0 0
        %659 = vmatpush1.bf16.xpose.msra.mxu0 0
        %660 = vmatprep.subr.bf16.mxu0 0
        %661 = vmatpush1.bf16.xpose.msra.mxu0 0
        %662 = vmatprep.subr.bf16.mxu0 0
        %663 = vmatpush1.bf16.xpose.msra.mxu0 0
        %664 = vmatprep.subr.bf16.mxu0 0
        %665 = vmatpush1.bf16.xpose.msra.mxu0 0
        %666 = vmatprep.subr.bf16.mxu0 0
        %667 = vmatpush1.bf16.xpose.msra.mxu0 0
        %668 = vmatprep.subr.bf16.mxu0 0
        %669 = vmatpush1.bf16.xpose.msra.mxu0 0
        %670 = vmatprep.subr.bf16.mxu0 0
        %671 = vmatpush1.bf16.xpose.msra.mxu0 0
        %672 = vmatprep.subr.bf16.mxu0 0
        %673 = vmatpush1.bf16.xpose.msra.mxu0 0
        %674 = vmatprep.subr.bf16.mxu0 0
        %675 = vmatpush1.bf16.xpose.msra.mxu0 0
        %676 = vmatprep.subr.bf16.mxu0 0
        %677 = vmatpush1.bf16.xpose.msra.mxu0 0
        %678 = vmatprep.subr.bf16.mxu0 0
        %679 = vmatpush1.bf16.xpose.msra.mxu0 0
        %680 = vmatprep.subr.bf16.mxu0 0
        %681 = vmatpush1.bf16.xpose.msra.mxu0 0
        %682 = vmatprep.subr.bf16.mxu0 0
        %683 = vmatpush1.bf16.xpose.msra.mxu0 0
        %684 = vmatprep.subr.bf16.mxu0 0
        %685 = vmatpush1.bf16.xpose.msra.mxu0 0
        %686 = vmatprep.subr.bf16.mxu0 0
        %687 = vmatpush1.bf16.xpose.msra.mxu0 0
        %688 = vmatprep.mubr.bf16.mxu0 0
        %689 = vmatmul.mubr.bf16.gmra.mrb[0].mxu0 %v651
        %v690 = vpop.f32.mrb[0].mxu0
        %v691 = vadd.f32 0.0, %v690
        %v692 = vpop.f32.mrb[0].mxu0
        %v693 = vpop.f32.mrb[0].mxu0
        %v694 = vpop.f32.mrb[0].mxu0
        %695 = vdwg.mxu0
        %697 = vrot.lane.b32.xlu0 %v399, 96
        %v698 = vpop.permute.xlu0 %697
        %v700 = vsel %vm404, %v399, 0
        %v703 = vsel %vm404, %v698, 0
        %705 = vmatprep.subr.bf16.mxu0 0
        %706 = vmatpush1.bf16.xpose.msra.mxu0 %v703
        %707 = vmatprep.subr.bf16.mxu0 0
        %708 = vmatpush1.bf16.xpose.msra.mxu0 0
        %709 = vmatprep.subr.bf16.mxu0 0
        %710 = vmatpush1.bf16.xpose.msra.mxu0 0
        %711 = vmatprep.subr.bf16.mxu0 0
        %712 = vmatpush1.bf16.xpose.msra.mxu0 0
        %713 = vmatprep.subr.bf16.mxu0 0
        %714 = vmatpush1.bf16.xpose.msra.mxu0 0
        %715 = vmatprep.subr.bf16.mxu0 0
        %716 = vmatpush1.bf16.xpose.msra.mxu0 0
        %717 = vmatprep.subr.bf16.mxu0 0
        %718 = vmatpush1.bf16.xpose.msra.mxu0 0
        %719 = vmatprep.subr.bf16.mxu0 0
        %720 = vmatpush1.bf16.xpose.msra.mxu0 0
        %721 = vmatprep.subr.bf16.mxu0 0
        %722 = vmatpush1.bf16.xpose.msra.mxu0 0
        %723 = vmatprep.subr.bf16.mxu0 0
        %724 = vmatpush1.bf16.xpose.msra.mxu0 0
        %725 = vmatprep.subr.bf16.mxu0 0
        %726 = vmatpush1.bf16.xpose.msra.mxu0 0
        %727 = vmatprep.subr.bf16.mxu0 0
        %728 = vmatpush1.bf16.xpose.msra.mxu0 0
        %729 = vmatprep.subr.bf16.mxu0 0
        %730 = vmatpush1.bf16.xpose.msra.mxu0 0
        %731 = vmatprep.subr.bf16.mxu0 0
        %732 = vmatpush1.bf16.xpose.msra.mxu0 0
        %733 = vmatprep.subr.bf16.mxu0 0
        %734 = vmatpush1.bf16.xpose.msra.mxu0 0
        %735 = vmatprep.subr.bf16.mxu0 0
        %736 = vmatpush1.bf16.xpose.msra.mxu0 0
        %737 = vmatprep.mubr.bf16.mxu0 0
        %738 = vmatmul.mubr.bf16.gmra.mrb[0].mxu0 %v700
        %v739 = vpop.f32.mrb[0].mxu0
        %v740 = vadd.f32 0.0, %v739
        %v741 = vpop.f32.mrb[0].mxu0
        %v742 = vpop.f32.mrb[0].mxu0
        %v743 = vpop.f32.mrb[0].mxu0
        %744 = vdwg.mxu0
        %746 = vrot.lane.b32.xlu0 %v400, 96
        %v747 = vpop.permute.xlu0 %746
        %v749 = vsel %vm404, %v400, 0
        %v752 = vsel %vm404, %v747, 0
        %754 = vmatprep.subr.bf16.mxu0 0
        %755 = vmatpush1.bf16.xpose.msra.mxu0 %v752
        %756 = vmatprep.subr.bf16.mxu0 0
        %757 = vmatpush1.bf16.xpose.msra.mxu0 0
        %758 = vmatprep.subr.bf16.mxu0 0
        %759 = vmatpush1.bf16.xpose.msra.mxu0 0
        %760 = vmatprep.subr.bf16.mxu0 0
        %761 = vmatpush1.bf16.xpose.msra.mxu0 0
        %762 = vmatprep.subr.bf16.mxu0 0
        %763 = vmatpush1.bf16.xpose.msra.mxu0 0
        %764 = vmatprep.subr.bf16.mxu0 0
        %765 = vmatpush1.bf16.xpose.msra.mxu0 0
        %766 = vmatprep.subr.bf16.mxu0 0
        %767 = vmatpush1.bf16.xpose.msra.mxu0 0
        %768 = vmatprep.subr.bf16.mxu0 0
        %769 = vmatpush1.bf16.xpose.msra.mxu0 0
        %770 = vmatprep.subr.bf16.mxu0 0
        %771 = vmatpush1.bf16.xpose.msra.mxu0 0
        %772 = vmatprep.subr.bf16.mxu0 0
        %773 = vmatpush1.bf16.xpose.msra.mxu0 0
        %774 = vmatprep.subr.bf16.mxu0 0
        %775 = vmatpush1.bf16.xpose.msra.mxu0 0
        %776 = vmatprep.subr.bf16.mxu0 0
        %777 = vmatpush1.bf16.xpose.msra.mxu0 0
        %778 = vmatprep.subr.bf16.mxu0 0
        %779 = vmatpush1.bf16.xpose.msra.mxu0 0
        %780 = vmatprep.subr.bf16.mxu0 0
        %781 = vmatpush1.bf16.xpose.msra.mxu0 0
        %782 = vmatprep.subr.bf16.mxu0 0
        %783 = vmatpush1.bf16.xpose.msra.mxu0 0
        %784 = vmatprep.subr.bf16.mxu0 0
        %785 = vmatpush1.bf16.xpose.msra.mxu0 0
        %786 = vmatprep.mubr.bf16.mxu0 0
        %787 = vmatmul.mubr.bf16.gmra.mrb[0].mxu0 %v749
        %v788 = vpop.f32.mrb[0].mxu0
        %v789 = vadd.f32 0.0, %v788
        %v790 = vpop.f32.mrb[0].mxu0
        %v791 = vpop.f32.mrb[0].mxu0
        %v792 = vpop.f32.mrb[0].mxu0
        %793 = vdwg.mxu0
        %vm794 = vcmask 64512
        %v795 = vsel %vm794, %v446, -inf
        %796 = vmax.xlane.f32.xlu0 %v795
        %v797 = vpop.xlane.xlu0 %796
        %v798 = vsel %vm794, %v495, -inf
        %799 = vmax.xlane.f32.xlu0 %v798
        %v800 = vpop.xlane.xlu0 %799
        %v801 = vsel %vm794, %v544, -inf
        %802 = vmax.xlane.f32.xlu0 %v801
        %v803 = vpop.xlane.xlu0 %802
        %v804 = vsel %vm794, %v593, -inf
        %805 = vmax.xlane.f32.xlu0 %v804
        %v806 = vpop.xlane.xlu0 %805
        %v807 = vsel %vm794, %v642, -inf
        %808 = vmax.xlane.f32.xlu0 %v807
        %v809 = vpop.xlane.xlu0 %808
        %v810 = vsel %vm794, %v691, -inf
        %811 = vmax.xlane.f32.xlu0 %v810
        %v812 = vpop.xlane.xlu0 %811
        %v813 = vsel %vm794, %v740, -inf
        %814 = vmax.xlane.f32.xlu0 %v813
        %v815 = vpop.xlane.xlu0 %814
        %v816 = vsel %vm794, %v789, -inf
        %817 = vmax.xlane.f32.xlu0 %v816
        %v818 = vpop.xlane.xlu0 %817
        %v819 = vsub.f32 %v446, %v797
        %v820 = vsub.f32 %v495, %v800
        %v821 = vsub.f32 %v544, %v803
        %v822 = vsub.f32 %v593, %v806
        %v823 = vsub.f32 %v642, %v809
        %v824 = vsub.f32 %v691, %v812
        %v825 = vsub.f32 %v740, %v815
        %v826 = vsub.f32 %v789, %v818
        %v827 = vmul.f32 %v819, 1.442695
        %v828 = vpow.pop %v827
        %v829 = vmul.f32 %v820, 1.442695
        %v830 = vpow.pop %v829
        %v831 = vmul.f32 %v821, 1.442695
        %v832 = vpow.pop %v831
        %v833 = vmul.f32 %v822, 1.442695
        %v834 = vpow.pop %v833
        %v835 = vmul.f32 %v823, 1.442695
        %v836 = vpow.pop %v835
        %v837 = vmul.f32 %v824, 1.442695
        %v838 = vpow.pop %v837
        %v839 = vmul.f32 %v825, 1.442695
        %v840 = vpow.pop %v839
        %v841 = vmul.f32 %v826, 1.442695
        %v842 = vpow.pop %v841
        %v843 = vsel %vm794, %v828, 0.0
        %844 = vadd.xlane.f32.xlu0 %v843
        %v845 = vpop.xlane.xlu0 %844
        %v846 = vsel %vm794, %v830, 0.0
        %847 = vadd.xlane.f32.xlu0 %v846
        %v848 = vpop.xlane.xlu0 %847
        %v849 = vsel %vm794, %v832, 0.0
        %850 = vadd.xlane.f32.xlu0 %v849
        %v851 = vpop.xlane.xlu0 %850
        %v852 = vsel %vm794, %v834, 0.0
        %853 = vadd.xlane.f32.xlu0 %v852
        %v854 = vpop.xlane.xlu0 %853
        %v855 = vsel %vm794, %v836, 0.0
        %856 = vadd.xlane.f32.xlu0 %v855
        %v857 = vpop.xlane.xlu0 %856
        %v858 = vsel %vm794, %v838, 0.0
        %859 = vadd.xlane.f32.xlu0 %v858
        %v860 = vpop.xlane.xlu0 %859
        %v861 = vsel %vm794, %v840, 0.0
        %862 = vadd.xlane.f32.xlu0 %v861
        %v863 = vpop.xlane.xlu0 %862
        %v864 = vsel %vm794, %v842, 0.0
        %865 = vadd.xlane.f32.xlu0 %v864
        %v866 = vpop.xlane.xlu0 %865
        %v867 = vrcp.pop %v845
        %v868 = vrcp.pop %v848
        %v869 = vrcp.pop %v851
        %v870 = vrcp.pop %v854
        %v871 = vrcp.pop %v857
        %v872 = vrcp.pop %v860
        %v873 = vrcp.pop %v863
        %v874 = vrcp.pop %v866
        %v875 = vmul.f32 %v828, %v867
        %v876 = vmul.f32 %v830, %v868
        %v877 = vmul.f32 %v832, %v869
        %v878 = vmul.f32 %v834, %v870
        %v879 = vmul.f32 %v836, %v871
        %v880 = vmul.f32 %v838, %v872
        %v881 = vmul.f32 %v840, %v873
        %v882 = vmul.f32 %v842, %v874
        %v883 = vpack.c.bf16 %v875, %v875
        %v884 = vpack.c.bf16 %v876, %v876
        %v885 = vpack.c.bf16 %v877, %v877
        %v886 = vpack.c.bf16 %v878, %v878
        %v887 = vpack.c.bf16 %v879, %v879
        %v888 = vpack.c.bf16 %v880, %v880
        %v889 = vpack.c.bf16 %v881, %v881
        %v890 = vpack.c.bf16 %v882, %v882
        %891 = vrot.lane.b32.xlu0 %v393, 64
        %v892 = vpop.permute.xlu0 %891
        %v894 = vsel %vm794, %v883, 0
        %vm896 = vcmask 1043456
        %v898 = vsel %vm896, %v892, 0
        %900 = vmatprep.subr.bf16.mxu0 0
        %901 = vmatpush1.bf16.msra.mxu0 %v898
        %902 = vmatprep.subr.bf16.mxu0 0
        %903 = vmatpush1.bf16.msra.mxu0 0
        %904 = vmatprep.subr.bf16.mxu0 0
        %905 = vmatpush1.bf16.msra.mxu0 0
        %906 = vmatprep.subr.bf16.mxu0 0
        %907 = vmatpush1.bf16.msra.mxu0 0
        %908 = vmatprep.subr.bf16.mxu0 0
        %909 = vmatpush1.bf16.msra.mxu0 0
        %910 = vmatprep.subr.bf16.mxu0 0
        %911 = vmatpush1.bf16.msra.mxu0 0
        %912 = vmatprep.subr.bf16.mxu0 0
        %913 = vmatpush1.bf16.msra.mxu0 0
        %914 = vmatprep.subr.bf16.mxu0 0
        %915 = vmatpush1.bf16.msra.mxu0 0
        %916 = vmatprep.subr.bf16.mxu0 0
        %917 = vmatpush1.bf16.msra.mxu0 0
        %918 = vmatprep.subr.bf16.mxu0 0
        %919 = vmatpush1.bf16.msra.mxu0 0
        %920 = vmatprep.subr.bf16.mxu0 0
        %921 = vmatpush1.bf16.msra.mxu0 0
        %922 = vmatprep.subr.bf16.mxu0 0
        %923 = vmatpush1.bf16.msra.mxu0 0
        %924 = vmatprep.subr.bf16.mxu0 0
        %925 = vmatpush1.bf16.msra.mxu0 0
        %926 = vmatprep.subr.bf16.mxu0 0
        %927 = vmatpush1.bf16.msra.mxu0 0
        %928 = vmatprep.subr.bf16.mxu0 0
        %929 = vmatpush1.bf16.msra.mxu0 0
        %930 = vmatprep.subr.bf16.mxu0 0
        %931 = vmatpush1.bf16.msra.mxu0 0
        %932 = vmatprep.mubr.bf16.mxu0 0
        %933 = vmatmul.mubr.bf16.gmra.mrb[0].mxu0 %v894
        %v934 = vpop.f32.mrb[0].mxu0
        %v935 = vadd.f32 0.0, %v934
        %v936 = vpop.f32.mrb[0].mxu0
        %v937 = vpop.f32.mrb[0].mxu0
        %v938 = vpop.f32.mrb[0].mxu0
        %939 = vdwg.mxu0
        %940 = vrot.lane.b32.xlu0 %v394, 64
        %v941 = vpop.permute.xlu0 %940
        %v943 = vsel %vm794, %v884, 0
        %v946 = vsel %vm896, %v941, 0
        %948 = vmatprep.subr.bf16.mxu0 0
        %949 = vmatpush1.bf16.msra.mxu0 %v946
        %950 = vmatprep.subr.bf16.mxu0 0
        %951 = vmatpush1.bf16.msra.mxu0 0
        %952 = vmatprep.subr.bf16.mxu0 0
        %953 = vmatpush1.bf16.msra.mxu0 0
        %954 = vmatprep.subr.bf16.mxu0 0
        %955 = vmatpush1.bf16.msra.mxu0 0
        %956 = vmatprep.subr.bf16.mxu0 0
        %957 = vmatpush1.bf16.msra.mxu0 0
        %958 = vmatprep.subr.bf16.mxu0 0
        %959 = vmatpush1.bf16.msra.mxu0 0
        %960 = vmatprep.subr.bf16.mxu0 0
        %961 = vmatpush1.bf16.msra.mxu0 0
        %962 = vmatprep.subr.bf16.mxu0 0
        %963 = vmatpush1.bf16.msra.mxu0 0
        %964 = vmatprep.subr.bf16.mxu0 0
        %965 = vmatpush1.bf16.msra.mxu0 0
        %966 = vmatprep.subr.bf16.mxu0 0
        %967 = vmatpush1.bf16.msra.mxu0 0
        %968 = vmatprep.subr.bf16.mxu0 0
        %969 = vmatpush1.bf16.msra.mxu0 0
        %970 = vmatprep.subr.bf16.mxu0 0
        %971 = vmatpush1.bf16.msra.mxu0 0
        %972 = vmatprep.subr.bf16.mxu0 0
        %973 = vmatpush1.bf16.msra.mxu0 0
        %974 = vmatprep.subr.bf16.mxu0 0
        %975 = vmatpush1.bf16.msra.mxu0 0
        %976 = vmatprep.subr.bf16.mxu0 0
        %977 = vmatpush1.bf16.msra.mxu0 0
        %978 = vmatprep.subr.bf16.mxu0 0
        %979 = vmatpush1.bf16.msra.mxu0 0
        %980 = vmatprep.mubr.bf16.mxu0 0
        %981 = vmatmul.mubr.bf16.gmra.mrb[0].mxu0 %v943
        %v982 = vpop.f32.mrb[0].mxu0
        %v983 = vadd.f32 0.0, %v982
        %v984 = vpop.f32.mrb[0].mxu0
        %v985 = vpop.f32.mrb[0].mxu0
        %v986 = vpop.f32.mrb[0].mxu0
        %987 = vdwg.mxu0
        %988 = vrot.lane.b32.xlu0 %v395, 64
        %v989 = vpop.permute.xlu0 %988
        %v991 = vsel %vm794, %v885, 0
        %v994 = vsel %vm896, %v989, 0
        %996 = vmatprep.subr.bf16.mxu0 0
        %997 = vmatpush1.bf16.msra.mxu0 %v994
        %998 = vmatprep.subr.bf16.mxu0 0
        %999 = vmatpush1.bf16.msra.mxu0 0
        %1000 = vmatprep.subr.bf16.mxu0 0
        %1001 = vmatpush1.bf16.msra.mxu0 0
        %1002 = vmatprep.subr.bf16.mxu0 0
        %1003 = vmatpush1.bf16.msra.mxu0 0
        %1004 = vmatprep.subr.bf16.mxu0 0
        %1005 = vmatpush1.bf16.msra.mxu0 0
        %1006 = vmatprep.subr.bf16.mxu0 0
        %1007 = vmatpush1.bf16.msra.mxu0 0
        %1008 = vmatprep.subr.bf16.mxu0 0
        %1009 = vmatpush1.bf16.msra.mxu0 0
        %1010 = vmatprep.subr.bf16.mxu0 0
        %1011 = vmatpush1.bf16.msra.mxu0 0
        %1012 = vmatprep.subr.bf16.mxu0 0
        %1013 = vmatpush1.bf16.msra.mxu0 0
        %1014 = vmatprep.subr.bf16.mxu0 0
        %1015 = vmatpush1.bf16.msra.mxu0 0
        %1016 = vmatprep.subr.bf16.mxu0 0
        %1017 = vmatpush1.bf16.msra.mxu0 0
        %1018 = vmatprep.subr.bf16.mxu0 0
        %1019 = vmatpush1.bf16.msra.mxu0 0
        %1020 = vmatprep.subr.bf16.mxu0 0
        %1021 = vmatpush1.bf16.msra.mxu0 0
        %1022 = vmatprep.subr.bf16.mxu0 0
        %1023 = vmatpush1.bf16.msra.mxu0 0
        %1024 = vmatprep.subr.bf16.mxu0 0
        %1025 = vmatpush1.bf16.msra.mxu0 0
        %1026 = vmatprep.subr.bf16.mxu0 0
        %1027 = vmatpush1.bf16.msra.mxu0 0
        %1028 = vmatprep.mubr.bf16.mxu0 0
        %1029 = vmatmul.mubr.bf16.gmra.mrb[0].mxu0 %v991
        %v1030 = vpop.f32.mrb[0].mxu0
        %v1031 = vadd.f32 0.0, %v1030
        %v1032 = vpop.f32.mrb[0].mxu0
        %v1033 = vpop.f32.mrb[0].mxu0
        %v1034 = vpop.f32.mrb[0].mxu0
        %1035 = vdwg.mxu0
        %1036 = vrot.lane.b32.xlu0 %v396, 64
        %v1037 = vpop.permute.xlu0 %1036
        %v1039 = vsel %vm794, %v886, 0
        %v1042 = vsel %vm896, %v1037, 0
        %1044 = vmatprep.subr.bf16.mxu0 0
        %1045 = vmatpush1.bf16.msra.mxu0 %v1042
        %1046 = vmatprep.subr.bf16.mxu0 0
        %1047 = vmatpush1.bf16.msra.mxu0 0
        %1048 = vmatprep.subr.bf16.mxu0 0
        %1049 = vmatpush1.bf16.msra.mxu0 0
        %1050 = vmatprep.subr.bf16.mxu0 0
        %1051 = vmatpush1.bf16.msra.mxu0 0
        %1052 = vmatprep.subr.bf16.mxu0 0
        %1053 = vmatpush1.bf16.msra.mxu0 0
        %1054 = vmatprep.subr.bf16.mxu0 0
        %1055 = vmatpush1.bf16.msra.mxu0 0
        %1056 = vmatprep.subr.bf16.mxu0 0
        %1057 = vmatpush1.bf16.msra.mxu0 0
        %1058 = vmatprep.subr.bf16.mxu0 0
        %1059 = vmatpush1.bf16.msra.mxu0 0
        %1060 = vmatprep.subr.bf16.mxu0 0
        %1061 = vmatpush1.bf16.msra.mxu0 0
        %1062 = vmatprep.subr.bf16.mxu0 0
        %1063 = vmatpush1.bf16.msra.mxu0 0
        %1064 = vmatprep.subr.bf16.mxu0 0
        %1065 = vmatpush1.bf16.msra.mxu0 0
        %1066 = vmatprep.subr.bf16.mxu0 0
        %1067 = vmatpush1.bf16.msra.mxu0 0
        %1068 = vmatprep.subr.bf16.mxu0 0
        %1069 = vmatpush1.bf16.msra.mxu0 0
        %1070 = vmatprep.subr.bf16.mxu0 0
        %1071 = vmatpush1.bf16.msra.mxu0 0
        %1072 = vmatprep.subr.bf16.mxu0 0
        %1073 = vmatpush1.bf16.msra.mxu0 0
        %1074 = vmatprep.subr.bf16.mxu0 0
        %1075 = vmatpush1.bf16.msra.mxu0 0
        %1076 = vmatprep.mubr.bf16.mxu0 0
        %1077 = vmatmul.mubr.bf16.gmra.mrb[0].mxu0 %v1039
        %v1078 = vpop.f32.mrb[0].mxu0
        %v1079 = vadd.f32 0.0, %v1078
        %v1080 = vpop.f32.mrb[0].mxu0
        %v1081 = vpop.f32.mrb[0].mxu0
        %v1082 = vpop.f32.mrb[0].mxu0
        %1083 = vdwg.mxu0
        %1084 = vrot.lane.b32.xlu0 %v397, 64
        %v1085 = vpop.permute.xlu0 %1084
        %v1087 = vsel %vm794, %v887, 0
        %v1090 = vsel %vm896, %v1085, 0
        %1092 = vmatprep.subr.bf16.mxu0 0
        %1093 = vmatpush1.bf16.msra.mxu0 %v1090
        %1094 = vmatprep.subr.bf16.mxu0 0
        %1095 = vmatpush1.bf16.msra.mxu0 0
        %1096 = vmatprep.subr.bf16.mxu0 0
        %1097 = vmatpush1.bf16.msra.mxu0 0
        %1098 = vmatprep.subr.bf16.mxu0 0
        %1099 = vmatpush1.bf16.msra.mxu0 0
        %1100 = vmatprep.subr.bf16.mxu0 0
        %1101 = vmatpush1.bf16.msra.mxu0 0
        %1102 = vmatprep.subr.bf16.mxu0 0
        %1103 = vmatpush1.bf16.msra.mxu0 0
        %1104 = vmatprep.subr.bf16.mxu0 0
        %1105 = vmatpush1.bf16.msra.mxu0 0
        %1106 = vmatprep.subr.bf16.mxu0 0
        %1107 = vmatpush1.bf16.msra.mxu0 0
        %1108 = vmatprep.subr.bf16.mxu0 0
        %1109 = vmatpush1.bf16.msra.mxu0 0
        %1110 = vmatprep.subr.bf16.mxu0 0
        %1111 = vmatpush1.bf16.msra.mxu0 0
        %1112 = vmatprep.subr.bf16.mxu0 0
        %1113 = vmatpush1.bf16.msra.mxu0 0
        %1114 = vmatprep.subr.bf16.mxu0 0
        %1115 = vmatpush1.bf16.msra.mxu0 0
        %1116 = vmatprep.subr.bf16.mxu0 0
        %1117 = vmatpush1.bf16.msra.mxu0 0
        %1118 = vmatprep.subr.bf16.mxu0 0
        %1119 = vmatpush1.bf16.msra.mxu0 0
        %1120 = vmatprep.subr.bf16.mxu0 0
        %1121 = vmatpush1.bf16.msra.mxu0 0
        %1122 = vmatprep.subr.bf16.mxu0 0
        %1123 = vmatpush1.bf16.msra.mxu0 0
        %1124 = vmatprep.mubr.bf16.mxu0 0
        %1125 = vmatmul.mubr.bf16.gmra.mrb[0].mxu0 %v1087
        %v1126 = vpop.f32.mrb[0].mxu0
        %v1127 = vadd.f32 0.0, %v1126
        %v1128 = vpop.f32.mrb[0].mxu0
        %v1129 = vpop.f32.mrb[0].mxu0
        %v1130 = vpop.f32.mrb[0].mxu0
        %1131 = vdwg.mxu0
        %1132 = vrot.lane.b32.xlu0 %v398, 64
        %v1133 = vpop.permute.xlu0 %1132
        %v1135 = vsel %vm794, %v888, 0
        %v1138 = vsel %vm896, %v1133, 0
        %1140 = vmatprep.subr.bf16.mxu0 0
        %1141 = vmatpush1.bf16.msra.mxu0 %v1138
        %1142 = vmatprep.subr.bf16.mxu0 0
        %1143 = vmatpush1.bf16.msra.mxu0 0
        %1144 = vmatprep.subr.bf16.mxu0 0
        %1145 = vmatpush1.bf16.msra.mxu0 0
        %1146 = vmatprep.subr.bf16.mxu0 0
        %1147 = vmatpush1.bf16.msra.mxu0 0
        %1148 = vmatprep.subr.bf16.mxu0 0
        %1149 = vmatpush1.bf16.msra.mxu0 0
        %1150 = vmatprep.subr.bf16.mxu0 0
        %1151 = vmatpush1.bf16.msra.mxu0 0
        %1152 = vmatprep.subr.bf16.mxu0 0
        %1153 = vmatpush1.bf16.msra.mxu0 0
        %1154 = vmatprep.subr.bf16.mxu0 0
        %1155 = vmatpush1.bf16.msra.mxu0 0
        %1156 = vmatprep.subr.bf16.mxu0 0
        %1157 = vmatpush1.bf16.msra.mxu0 0
        %1158 = vmatprep.subr.bf16.mxu0 0
        %1159 = vmatpush1.bf16.msra.mxu0 0
        %1160 = vmatprep.subr.bf16.mxu0 0
        %1161 = vmatpush1.bf16.msra.mxu0 0
        %1162 = vmatprep.subr.bf16.mxu0 0
        %1163 = vmatpush1.bf16.msra.mxu0 0
        %1164 = vmatprep.subr.bf16.mxu0 0
        %1165 = vmatpush1.bf16.msra.mxu0 0
        %1166 = vmatprep.subr.bf16.mxu0 0
        %1167 = vmatpush1.bf16.msra.mxu0 0
        %1168 = vmatprep.subr.bf16.mxu0 0
        %1169 = vmatpush1.bf16.msra.mxu0 0
        %1170 = vmatprep.subr.bf16.mxu0 0
        %1171 = vmatpush1.bf16.msra.mxu0 0
        %1172 = vmatprep.mubr.bf16.mxu0 0
        %1173 = vmatmul.mubr.bf16.gmra.mrb[0].mxu0 %v1135
        %v1174 = vpop.f32.mrb[0].mxu0
        %v1175 = vadd.f32 0.0, %v1174
        %v1176 = vpop.f32.mrb[0].mxu0
        %v1177 = vpop.f32.mrb[0].mxu0
        %v1178 = vpop.f32.mrb[0].mxu0
        %1179 = vdwg.mxu0
        %1180 = vrot.lane.b32.xlu0 %v399, 64
        %v1181 = vpop.permute.xlu0 %1180
        %v1183 = vsel %vm794, %v889, 0
        %v1186 = vsel %vm896, %v1181, 0
        %1188 = vmatprep.subr.bf16.mxu0 0
        %1189 = vmatpush1.bf16.msra.mxu0 %v1186
        %1190 = vmatprep.subr.bf16.mxu0 0
        %1191 = vmatpush1.bf16.msra.mxu0 0
        %1192 = vmatprep.subr.bf16.mxu0 0
        %1193 = vmatpush1.bf16.msra.mxu0 0
        %1194 = vmatprep.subr.bf16.mxu0 0
        %1195 = vmatpush1.bf16.msra.mxu0 0
        %1196 = vmatprep.subr.bf16.mxu0 0
        %1197 = vmatpush1.bf16.msra.mxu0 0
        %1198 = vmatprep.subr.bf16.mxu0 0
        %1199 = vmatpush1.bf16.msra.mxu0 0
        %1200 = vmatprep.subr.bf16.mxu0 0
        %1201 = vmatpush1.bf16.msra.mxu0 0
        %1202 = vmatprep.subr.bf16.mxu0 0
        %1203 = vmatpush1.bf16.msra.mxu0 0
        %1204 = vmatprep.subr.bf16.mxu0 0
        %1205 = vmatpush1.bf16.msra.mxu0 0
        %1206 = vmatprep.subr.bf16.mxu0 0
        %1207 = vmatpush1.bf16.msra.mxu0 0
        %1208 = vmatprep.subr.bf16.mxu0 0
        %1209 = vmatpush1.bf16.msra.mxu0 0
        %1210 = vmatprep.subr.bf16.mxu0 0
        %1211 = vmatpush1.bf16.msra.mxu0 0
        %1212 = vmatprep.subr.bf16.mxu0 0
        %1213 = vmatpush1.bf16.msra.mxu0 0
        %1214 = vmatprep.subr.bf16.mxu0 0
        %1215 = vmatpush1.bf16.msra.mxu0 0
        %1216 = vmatprep.subr.bf16.mxu0 0
        %1217 = vmatpush1.bf16.msra.mxu0 0
        %1218 = vmatprep.subr.bf16.mxu0 0
        %1219 = vmatpush1.bf16.msra.mxu0 0
        %1220 = vmatprep.mubr.bf16.mxu0 0
        %1221 = vmatmul.mubr.bf16.gmra.mrb[0].mxu0 %v1183
        %v1222 = vpop.f32.mrb[0].mxu0
        %v1223 = vadd.f32 0.0, %v1222
        %v1224 = vpop.f32.mrb[0].mxu0
        %v1225 = vpop.f32.mrb[0].mxu0
        %v1226 = vpop.f32.mrb[0].mxu0
        %1227 = vdwg.mxu0
        %1228 = vrot.lane.b32.xlu0 %v400, 64
        %v1229 = vpop.permute.xlu0 %1228
        %v1231 = vsel %vm794, %v890, 0
        %v1234 = vsel %vm896, %v1229, 0
        %1236 = vmatprep.subr.bf16.mxu0 0
        %1237 = vmatpush1.bf16.msra.mxu0 %v1234
        %1238 = vmatprep.subr.bf16.mxu0 0
        %1239 = vmatpush1.bf16.msra.mxu0 0
        %1240 = vmatprep.subr.bf16.mxu0 0
        %1241 = vmatpush1.bf16.msra.mxu0 0
        %1242 = vmatprep.subr.bf16.mxu0 0
        %1243 = vmatpush1.bf16.msra.mxu0 0
        %1244 = vmatprep.subr.bf16.mxu0 0
        %1245 = vmatpush1.bf16.msra.mxu0 0
        %1246 = vmatprep.subr.bf16.mxu0 0
        %1247 = vmatpush1.bf16.msra.mxu0 0
        %1248 = vmatprep.subr.bf16.mxu0 0
        %1249 = vmatpush1.bf16.msra.mxu0 0
        %1250 = vmatprep.subr.bf16.mxu0 0
        %1251 = vmatpush1.bf16.msra.mxu0 0
        %1252 = vmatprep.subr.bf16.mxu0 0
        %1253 = vmatpush1.bf16.msra.mxu0 0
        %1254 = vmatprep.subr.bf16.mxu0 0
        %1255 = vmatpush1.bf16.msra.mxu0 0
        %1256 = vmatprep.subr.bf16.mxu0 0
        %1257 = vmatpush1.bf16.msra.mxu0 0
        %1258 = vmatprep.subr.bf16.mxu0 0
        %1259 = vmatpush1.bf16.msra.mxu0 0
        %1260 = vmatprep.subr.bf16.mxu0 0
        %1261 = vmatpush1.bf16.msra.mxu0 0
        %1262 = vmatprep.subr.bf16.mxu0 0
        %1263 = vmatpush1.bf16.msra.mxu0 0
        %1264 = vmatprep.subr.bf16.mxu0 0
        %1265 = vmatpush1.bf16.msra.mxu0 0
        %1266 = vmatprep.subr.bf16.mxu0 0
        %1267 = vmatpush1.bf16.msra.mxu0 0
        %1268 = vmatprep.mubr.bf16.mxu0 0
        %1269 = vmatmul.mubr.bf16.gmra.mrb[0].mxu0 %v1231
        %v1270 = vpop.f32.mrb[0].mxu0
        %v1271 = vadd.f32 0.0, %v1270
        %v1272 = vpop.f32.mrb[0].mxu0
        %v1273 = vpop.f32.mrb[0].mxu0
        %v1274 = vpop.f32.mrb[0].mxu0
        %1275 = vdwg.mxu0
        %1276 = vst.msk [vmem:[#allocation2] sm:$0xff] %vm404, %v935
        %1278 = vrot.lane.b32.xlu0 %v983, 4
        %v1279 = vpop.permute.xlu0 %1278
        %vm1281 = vcmask 64544
        %1282 = vst.msk [vmem:[#allocation2] sm:$0xff] %vm1281, %v1279
        %1284 = vrot.lane.b32.xlu0 %v1031, 8
        %v1285 = vpop.permute.xlu0 %1284
        %vm1287 = vcmask 97344
        %1288 = vst.msk [vmem:[#allocation2] sm:$0xff] %vm1287, %v1285
        %1290 = vrot.lane.b32.xlu0 %v1079, 12
        %v1291 = vpop.permute.xlu0 %1290
        %vm1293 = vcmask 130144
        %1294 = vst.msk [vmem:[#allocation2] sm:$0xff] %vm1293, %v1291
        %1296 = vrot.lane.b32.xlu0 %v1127, 16
        %v1297 = vpop.permute.xlu0 %1296
        %vm1299 = vcmask 162944
        %1300 = vst.msk [vmem:[#allocation2] sm:$0xff] %vm1299, %v1297
        %1302 = vrot.lane.b32.xlu0 %v1175, 20
        %v1303 = vpop.permute.xlu0 %1302
        %vm1305 = vcmask 195744
        %1306 = vst.msk [vmem:[#allocation2] sm:$0xff] %vm1305, %v1303
        %1308 = vrot.lane.b32.xlu0 %v1223, 24
        %v1309 = vpop.permute.xlu0 %1308
        %vm1311 = vcmask 228544
        %1312 = vst.msk [vmem:[#allocation2] sm:$0xff] %vm1311, %v1309
        %1314 = vrot.lane.b32.xlu0 %v1271, 28
        %v1315 = vpop.permute.xlu0 %1314
        %vm1317 = vcmask 261344
        %1318 = vst.msk [vmem:[#allocation2] sm:$0xff] %vm1317, %v1315
        %v1319 = vld [vmem:[#allocation2] sm:$0xff]
        %v1320 = vpack.c.bf16 %v1319, %v1319
        %v1325 = vunpack.c.l.b16 %v253
        %v1326 = vunpack.c.l.b16 %v254
        %v1327 = vunpack.c.l.b16 %v255
        %v1328 = vunpack.c.l.b16 %v256
        %v1329 = vpack.c.b16 %v1326, %v1325
        %v1330 = vpack.c.b16 %v1328, %v1327
        %1333 = vrot.lane.b32.xlu0 %v314, 32
        %v1334 = vpop.permute.xlu0 %1333
        %v1337 = vsel %vm281, %v1320, 0
        %1339 = vmatprep.subr.bf16.mxu0 0
        %1340 = vmatpush1.bf16.msra.mxu0 %v1329
        %1341 = vmatprep.subr.bf16.mxu0 0
        %1342 = vmatpush1.bf16.msra.mxu0 %v1330
        %1343 = vmatprep.subr.bf16.mxu0 0
        %1344 = vmatpush1.bf16.msra.mxu0 0
        %1345 = vmatprep.subr.bf16.mxu0 0
        %1346 = vmatpush1.bf16.msra.mxu0 0
        %1347 = vmatprep.subr.bf16.mxu0 0
        %1348 = vmatpush1.bf16.msra.mxu0 0
        %1349 = vmatprep.subr.bf16.mxu0 0
        %1350 = vmatpush1.bf16.msra.mxu0 0
        %1351 = vmatprep.subr.bf16.mxu0 0
        %1352 = vmatpush1.bf16.msra.mxu0 0
        %1353 = vmatprep.subr.bf16.mxu0 0
        %1354 = vmatpush1.bf16.msra.mxu0 0
        %1355 = vmatprep.subr.bf16.mxu0 0
        %1356 = vmatpush1.bf16.msra.mxu0 0
        %1357 = vmatprep.subr.bf16.mxu0 0
        %1358 = vmatpush1.bf16.msra.mxu0 0
        %1359 = vmatprep.subr.bf16.mxu0 0
        %1360 = vmatpush1.bf16.msra.mxu0 0
        %1361 = vmatprep.subr.bf16.mxu0 0
        %1362 = vmatpush1.bf16.msra.mxu0 0
        %1363 = vmatprep.subr.bf16.mxu0 0
        %1364 = vmatpush1.bf16.msra.mxu0 0
        %1365 = vmatprep.subr.bf16.mxu0 0
        %1366 = vmatpush1.bf16.msra.mxu0 0
        %1367 = vmatprep.subr.bf16.mxu0 0
        %1368 = vmatpush1.bf16.msra.mxu0 0
        %1369 = vmatprep.subr.bf16.mxu0 0
        %1370 = vmatpush1.bf16.msra.mxu0 0
        %1371 = vmatprep.mubr.bf16.mxu0 0
        %1372 = vmatmul.mubr.bf16.gmra.mrb[0].mxu0 %v1337
        %v1373 = vpop.f32.mrb[0].mxu0
        %v1374 = vadd.f32 %v1334, %v1373
        %v1375 = vpop.f32.mrb[0].mxu0
        %v1376 = vpop.f32.mrb[0].mxu0
        %v1377 = vpop.f32.mrb[0].mxu0
        %1378 = vdwg.mxu0
        %v1379 = vadd.f32 %v248, %v1374
        %v1380 = vsel %vm281, %v1379, 0.0
        %1381 = vadd.xlane.f32.xlu0 %v1380
        %v1382 = vpop.xlane.xlu0 %1381
        %v1383 = vmul.f32 %v1382, %v285
        %v1384 = vsub.f32 %v1379, %v1383
        %v1385 = vmul.f32 %v1384, %v1384
        %v1386 = vsel %vm281, %v1385, 0.0
        %1387 = vadd.xlane.f32.xlu0 %v1386
        %v1388 = vpop.xlane.xlu0 %1387
        %v1389 = vmul.f32 %v1388, %v285
        %v1390 = vadd.f32 %v1389, 1e-05
        %v1391 = vrsqrt.pop %v1390
        %v1392 = vmul.f32 %v1384, %v1391
        %1393 = vrot.lane.b32.xlu0 %v300, 32
        %v1394 = vpop.permute.xlu0 %1393
        %v1396 = vmul.f32 %v1392, %v1394
        %v1398 = vlaneseq
        %v1399 = vshrl.u32 %v1398, 7
        %v1400 = vsub.s32 0, %v1399
        %v1401 = vrot.slane %v280, %v1400
        %v1403 = vadd.f32 %v1396, %v1401
        %v1404 = vpack.c.bf16 %v1403, %v1403
        %v1406 = vlaneseq
        %v1407 = vshrl.u32 %v1406, 7
        %v1408 = vsub.s32 0, %v1407
        %v1409 = vrot.slane %v278, %v1408
        %v1415 = vunpack.c.l.b16 %v257
        %v1416 = vunpack.c.l.b16 %v258
        %v1417 = vunpack.c.l.b16 %v259
        %v1418 = vunpack.c.l.b16 %v260
        %v1419 = vpack.c.b16 %v1416, %v1415
        %v1420 = vpack.c.b16 %v1418, %v1417
        %v1424 = vsel %vm281, %v1404, 0
        %1426 = vmatprep.subr.bf16.mxu0 0
        %1427 = vmatpush1.bf16.msra.mxu0 %v1419
        %1428 = vmatprep.subr.bf16.mxu0 0
        %1429 = vmatpush1.bf16.msra.mxu0 %v1420
        %1430 = vmatprep.subr.bf16.mxu0 0
        %1431 = vmatpush1.bf16.msra.mxu0 0
        %1432 = vmatprep.subr.bf16.mxu0 0
        %1433 = vmatpush1.bf16.msra.mxu0 0
        %1434 = vmatprep.subr.bf16.mxu0 0
        %1435 = vmatpush1.bf16.msra.mxu0 0
        %1436 = vmatprep.subr.bf16.mxu0 0
        %1437 = vmatpush1.bf16.msra.mxu0 0
        %1438 = vmatprep.subr.bf16.mxu0 0
        %1439 = vmatpush1.bf16.msra.mxu0 0
        %1440 = vmatprep.subr.bf16.mxu0 0
        %1441 = vmatpush1.bf16.msra.mxu0 0
        %1442 = vmatprep.subr.bf16.mxu0 0
        %1443 = vmatpush1.bf16.msra.mxu0 0
        %1444 = vmatprep.subr.bf16.mxu0 0
        %1445 = vmatpush1.bf16.msra.mxu0 0
        %1446 = vmatprep.subr.bf16.mxu0 0
        %1447 = vmatpush1.bf16.msra.mxu0 0
        %1448 = vmatprep.subr.bf16.mxu0 0
        %1449 = vmatpush1.bf16.msra.mxu0 0
        %1450 = vmatprep.subr.bf16.mxu0 0
        %1451 = vmatpush1.bf16.msra.mxu0 0
        %1452 = vmatprep.subr.bf16.mxu0 0
        %1453 = vmatpush1.bf16.msra.mxu0 0
        %1454 = vmatprep.subr.bf16.mxu0 0
        %1455 = vmatpush1.bf16.msra.mxu0 0
        %1456 = vmatprep.subr.bf16.mxu0 0
        %1457 = vmatpush1.bf16.msra.mxu0 0
        %1458 = vmatprep.mubr.bf16.mxu0 0
        %1459 = vmatmul.mubr.bf16.gmra.mrb[0].mxu0 %v1424
        %v1460 = vpop.f32.mrb[0].mxu0
        %v1461 = vadd.f32 %v1409, %v1460
        %v1462 = vpop.f32.mrb[0].mxu0
        %v1463 = vpop.f32.mrb[0].mxu0
        %v1464 = vpop.f32.mrb[0].mxu0
        %1465 = vdwg.mxu0
        %v1466 = vmax.f32 %v1461, 0.0
        %v1467 = vpack.c.bf16 %v1466, %v1466
        %v1485 = vunpack.c.l.b16 %v261
        %v1486 = vunpack.c.l.b16 %v262
        %v1487 = vunpack.c.l.b16 %v263
        %v1488 = vunpack.c.l.b16 %v264
        %v1489 = vunpack.c.l.b16 %v265
        %v1490 = vunpack.c.l.b16 %v266
        %v1491 = vunpack.c.l.b16 %v267
        %v1492 = vunpack.c.l.b16 %v268
        %v1493 = vunpack.c.l.b16 %v269
        %v1494 = vunpack.c.l.b16 %v270
        %v1495 = vunpack.c.l.b16 %v271
        %v1496 = vunpack.c.l.b16 %v272
        %v1497 = vunpack.c.l.b16 %v273
        %v1498 = vunpack.c.l.b16 %v274
        %v1499 = vunpack.c.l.b16 %v275
        %v1500 = vunpack.c.l.b16 %v276
        %v1501 = vpack.c.b16 %v1486, %v1485
        %v1502 = vpack.c.b16 %v1488, %v1487
        %v1503 = vpack.c.b16 %v1490, %v1489
        %v1504 = vpack.c.b16 %v1492, %v1491
        %v1505 = vpack.c.b16 %v1494, %v1493
        %v1506 = vpack.c.b16 %v1496, %v1495
        %v1507 = vpack.c.b16 %v1498, %v1497
        %v1508 = vpack.c.b16 %v1500, %v1499
        %1517 = vmatprep.subr.bf16.mxu0 0
        %1518 = vmatpush1.bf16.msra.mxu0 %v1501
        %1519 = vmatprep.subr.bf16.mxu0 0
        %1520 = vmatpush1.bf16.msra.mxu0 %v1502
        %1521 = vmatprep.subr.bf16.mxu0 0
        %1522 = vmatpush1.bf16.msra.mxu0 %v1503
        %1523 = vmatprep.subr.bf16.mxu0 0
        %1524 = vmatpush1.bf16.msra.mxu0 %v1504
        %1525 = vmatprep.subr.bf16.mxu0 0
        %1526 = vmatpush1.bf16.msra.mxu0 %v1505
        %1527 = vmatprep.subr.bf16.mxu0 0
        %1528 = vmatpush1.bf16.msra.mxu0 %v1506
        %1529 = vmatprep.subr.bf16.mxu0 0
        %1530 = vmatpush1.bf16.msra.mxu0 %v1507
        %1531 = vmatprep.subr.bf16.mxu0 0
        %1532 = vmatpush1.bf16.msra.mxu0 %v1508
        %1533 = vmatprep.subr.bf16.mxu0 0
        %1534 = vmatpush1.bf16.msra.mxu0 0
        %1535 = vmatprep.subr.bf16.mxu0 0
        %1536 = vmatpush1.bf16.msra.mxu0 0
        %1537 = vmatprep.subr.bf16.mxu0 0
        %1538 = vmatpush1.bf16.msra.mxu0 0
        %1539 = vmatprep.subr.bf16.mxu0 0
        %1540 = vmatpush1.bf16.msra.mxu0 0
        %1541 = vmatprep.subr.bf16.mxu0 0
        %1542 = vmatpush1.bf16.msra.mxu0 0
        %1543 = vmatprep.subr.bf16.mxu0 0
        %1544 = vmatpush1.bf16.msra.mxu0 0
        %1545 = vmatprep.subr.bf16.mxu0 0
        %1546 = vmatpush1.bf16.msra.mxu0 0
        %1547 = vmatprep.subr.bf16.mxu0 0
        %1548 = vmatpush1.bf16.msra.mxu0 0
        %1549 = vmatprep.mubr.bf16.mxu0 0
        %1550 = vmatmul.mubr.bf16.gmra.mrb[0].mxu0 %v1467
        %v1551 = vpop.f32.mrb[0].mxu0
        %v1552 = vadd.f32 %v300, %v1551
        %v1553 = vpop.f32.mrb[0].mxu0
        %v1554 = vpop.f32.mrb[0].mxu0
        %v1555 = vpop.f32.mrb[0].mxu0
        %1556 = vdwg.mxu0
        %v1557 = vadd.f32 %v1379, %v1552
        %1558 = vst.msk [vmem:[%s242] sm:$0xff] %vm281, %v1557
        %s1559 = sand.u32 %s159, 1
        %s1560 = scalar_lea.sflag [#allocation4], %s1559
        %s1561 = sand.u32 %s159, 1
        %s1562 = smul.addr %s1561, 8
        %s1563 = scalar_lea.vmem [#allocation3], %s1562
        // Predicated region
        $region45: #{tpu_custom_call.1} parent=43 // pred_check
          %p1564 = pneg %p169
        $region46: #{tpu_custom_call.1} parent=43 // pred_check_branch
          %1566 = sbr.rel (%p1564) target = $region48
        $region47: #{tpu_custom_call.1} parent=43 // pred_region
          %s1568 = ssub.s32 128, 128
          %1569 = vsyncadd %s1560, %s1568
          %s1570 = smul.addr %s20, 128
          %s1571 = scalar_lea.hbm %s6, %s1570
          %s1573 = sshll.u32 %s1563, 4
          %s1574 = int_to_ptr.vmem [resolvable:$true] %s1573
          %1576 = dma.vmem_to_hbm [thread:$0]  %s1574, 128, %s1571, %s1560
        $region48: #{tpu_custom_call.1} parent=43 // pred_fallthru
          _
      $region44: #{tpu_custom_call.1} parent=5 // pred_fallthru
        _
      %p1577 = scmp.le.s32.totalorder 2, %s15
      // Predicated region
      $region49: #{tpu_custom_call.1} parent=5 // pred_check
        %p1578 = pneg %p1577
      $region50: #{tpu_custom_call.1} parent=5 // pred_check_branch
        %1580 = sbr.rel (%p1578) target = $region52
      $region51: #{tpu_custom_call.1} parent=5 // pred_region
        %s1581 = ssub.s32 %s15, 2
        // Predicated region
        $region53: #{tpu_custom_call.1} parent=51 // pred_check
          %p1582 = pneg %p175
        $region54: #{tpu_custom_call.1} parent=51 // pred_check_branch
          %1584 = sbr.rel (%p1582) target = $region56
        $region55: #{tpu_custom_call.1} parent=51 // pred_region
          %s1585 = sand.u32 %s160, 1
          %s1586 = scalar_lea.sflag [#allocation4], %s1585
          %s1587 = sand.u32 %s160, 1
          %s1588 = smul.addr %s1587, 8
          %s1589 = scalar_lea.vmem [#allocation3], %s1588
          %1590 = dma.done %s1586, 128
        $region56: #{tpu_custom_call.1} parent=51 // pred_fallthru
          _
      $region52: #{tpu_custom_call.1} parent=5 // pred_fallthru
        _
    $region6: #{tpu_custom_call.1} parent=1 // loop_footer
      %s19 = sadd.s32 1, %s15
    $region7: #{tpu_custom_call.1} parent=1 // loop_footer_branch
      %14 = sbr.rel target = $region3
    $region8: #{tpu_custom_call.1} parent=1 // loop_exit
      _
    %1591 = vsyncpa [#allocation4], 1
    %s1592 = scalar_lea.sflag [#allocation4], 1
    %1593 = vsyncpa %s1592, 1

</llo_original>
